<compile_context>
chip_gen: v5e
topology: v5e:2x2
jax: 0.10.0
libtpu: 0.0.40
codegen_flags: <defaults>
</compile_context>

<pallas_src>
import functools

import jax
import jax.numpy as jnp
from jax.experimental import pallas as pl
from jax.experimental.pallas import tpu as pltpu


# ------------------------------ helpers -------------------------------------
def _round_up(x, m):
    return (x + m - 1) // m * m


@functools.lru_cache(maxsize=None)
def _vmem_limit_bytes():
    # Portable across v5e/v6e (128 MiB VMEM) and v7x (64 MiB/TC): ~3/4 of
    # physical, capped at 96 MiB.
    cap = 64 * 1024 * 1024
    try:
        cap = int(getattr(pltpu.get_tpu_info(), "vmem_capacity_bytes", cap))
    except Exception:
        pass
    return int(min(cap * 3 // 4, 96 * 1024 * 1024))


def _pick_tm(m_pad, k, n, n_out):
    """Row-tile choice: must fit the chip-derived VMEM limit, guarantees >= 2
    programs on the 'parallel' grid axis (v7x megacore), prefers 256-multiples
    (v6e/v7x MXU is 2x256^2). Returns None if nothing fits (-> XLA fallback)."""
    budget = _vmem_limit_bytes()

    def fits(t):
        x_b = 2 * t * k * 2           # double-buffered bf16 patch tile
        w_b = 2 * k * n * 2           # resident bf16 weights (count 2 bufs)
        o_b = n_out * 2 * t * n * 4   # outputs (f32 worst case), 2 bufs
        return x_b + w_b + o_b + (2 << 20) <= budget

    cands = [t for t in (1024, 512, 256, 128, 64, 32, 16)
             if t <= m_pad and m_pad % t == 0 and fits(t)]
    if not cands:
        return None
    limit = m_pad // 2 if m_pad >= 64 else m_pad
    pref = [t for t in cands if t <= limit] or cands
    best256 = [t for t in pref if t % 256 == 0]
    return max(best256) if best256 else max(pref)


# ----------------------------- Pallas kernel --------------------------------
def _conv_mm_kernel(x_ref, w_ref, b_ref, *o_refs, mode):
    """One (tm, K) x (K, N) bf16 MXU matmul tile, f32 accumulation, fused bias.
    mode: 'linear' -> f32 pre-activation only; 'relu' -> bf16 activation only;
    'both' -> f32 pre-activation tap AND bf16 ReLU'd activation (fused tap)."""
    acc = jnp.dot(x_ref[...], w_ref[...], preferred_element_type=jnp.float32)
    acc = acc + b_ref[...]
    if mode == "linear":
        o_refs[0][...] = acc
    elif mode == "relu":
        o_refs[0][...] = jnp.maximum(acc, 0.0).astype(o_refs[0].dtype)
    else:  # both
        o_refs[0][...] = acc
        o_refs[1][...] = jnp.maximum(acc, 0.0).astype(o_refs[1].dtype)


_SMALL_M_ROWS = 128  # below this, pallas_call fixed cost dominates -> XLA dot


def _finish(out_f32, mode):
    if mode == "linear":
        return out_f32
    act = jnp.maximum(out_f32, 0.0).astype(jnp.bfloat16)
    if mode == "relu":
        return act
    return out_f32, act


def conv_matmul(patches, w_mat, bias, *, mode):
    """patches: (M, K) bf16, w_mat: (K_pad, N) bf16 (pre-packed), bias: (1, N) f32.
    Returns f32 pre-activation and/or bf16 ReLU'd activation per `mode`."""
    M, K = patches.shape
    Kw, N = w_mat.shape
    if Kw != K:  # weights were K-padded at prep time (only conv1_1: 27 -> 32)
        patches = jnp.pad(patches, ((0, 0), (0, Kw - K)))
        K = Kw
    n_out = 2 if mode == "both" else 1

    if M < _SMALL_M_ROWS:
        # Deep layers at tiny spatial size: a handful of MXU rows; Pallas
        # launch/grid overhead dominates, so use plain XLA (perf review).
        out = jnp.dot(patches, w_mat, preferred_element_type=jnp.float32) + bias
        return _finish(out, mode)

    m_pad = _round_up(M, 16) if M < 256 else _round_up(M, 128)
    tm = _pick_tm(m_pad, K, N, n_out)
    if tm is None:  # cannot fit VMEM (not reachable for this net) -> XLA
        out = jnp.dot(patches, w_mat, preferred_element_type=jnp.float32) + bias
        return _finish(out, mode)

    xp = patches if m_pad == M else jnp.pad(patches, ((0, m_pad - M), (0, 0)))

    out_dtypes = {"linear": (jnp.float32,),
                  "relu": (jnp.bfloat16,),
                  "both": (jnp.float32, jnp.bfloat16)}[mode]
    out_shape = tuple(jax.ShapeDtypeStruct((m_pad, N), dt) for dt in out_dtypes)
    out_specs = tuple(pl.BlockSpec((tm, N), lambda i: (i, 0)) for _ in out_dtypes)

    out_bytes = sum(m_pad * N * jnp.dtype(dt).itemsize for dt in out_dtypes)
    cost = pl.CostEstimate(
        flops=2 * m_pad * K * N,
        transcendentals=0,
        bytes_accessed=m_pad * K * 2 + K * N * 2 + N * 4 + out_bytes,
    )

    res = pl.pallas_call(
        functools.partial(_conv_mm_kernel, mode=mode),
        out_shape=out_shape,
        grid=(m_pad // tm,),
        in_specs=[
            pl.BlockSpec((tm, K), lambda i: (i, 0)),     # patches row tile
            pl.BlockSpec((K, N), lambda i: (0, 0)),      # resident weights
            pl.BlockSpec((1, N), lambda i: (0, 0)),      # bias
        ],
        out_specs=out_specs,
        compiler_params=pltpu.CompilerParams(
            dimension_semantics=("parallel",),
            vmem_limit_bytes=_vmem_limit_bytes(),
        ),
        cost_estimate=cost,
    )(xp, w_mat, bias)

    res = tuple(r[:M] if m_pad != M else r for r in res)
    return res if mode == "both" else res[0]


# ------------------------------ JAX glue ------------------------------------
def conv3x3_same(x_nhwc, w_mat, bias, *, mode):
    """3x3 conv, stride 1, pad 1 ('same') == F.pad(x,(1,1,1,1)) + Conv2d(k=3).
    x_nhwc: (N,H,W,C) bf16.  Returns per `mode`: 'linear' -> f32 pre-activation,
    'relu' -> bf16 activation, 'both' -> (f32 pre-activation, bf16 activation)."""
    Nb, H, W, C = x_nhwc.shape
    Cout = w_mat.shape[1]
    xp = jnp.pad(x_nhwc, ((0, 0), (1, 1), (1, 1), (0, 0)))
    # im2col in bf16: tap order (ky, kx) outer, input channel inner.
    # TODO(synk): fuse these 9 shifted reads into the kernel (halo'd row blocks
    # via manual DMA) instead of materializing the (M, 9*C) patch matrix.
    cols = [xp[:, ky:ky + H, kx:kx + W, :] for ky in range(3) for kx in range(3)]
    patches = jnp.concatenate(cols, axis=-1).reshape(Nb * H * W, 9 * C)
    res = conv_matmul(patches, w_mat, bias, mode=mode)
    if mode == "both":
        tap, act = res
        return tap.reshape(Nb, H, W, Cout), act.reshape(Nb, H, W, Cout)
    return res.reshape(Nb, H, W, Cout)


def maxpool_2x2(x_nhwc):
    # F.pad(x, (0,1,0,1), value=-inf) + max_pool2d(kernel=2, stride=2)
    xp = jnp.pad(x_nhwc, ((0, 0), (0, 1), (0, 1), (0, 0)),
                 constant_values=-jnp.inf)
    return jax.lax.reduce_window(
        xp, jnp.asarray(-jnp.inf, x_nhwc.dtype), jax.lax.max,
        (1, 2, 2, 1), (1, 2, 2, 1), "VALID")


_LAYER_CFG = [
    ("conv1_1", 3, 64), ("conv1_2", 64, 64),
    ("conv2_1", 64, 128), ("conv2_2", 128, 128),
    ("conv3_1", 128, 256), ("conv3_2", 256, 256), ("conv3_3", 256, 256),
    ("conv4_1", 256, 512), ("conv4_2", 512, 512), ("conv4_3", 512, 512),
    ("conv5_1", 512, 512),
]


def init_params(key):
    """Deterministic synthetic init (PyTorch-Conv2d-style uniform bounds)."""
    params = {}
    for name, cin, cout in _LAYER_CFG:
        key, kw, kb = jax.random.split(key, 3)
        bound = 1.0 / float(jnp.sqrt(cin * 9))
        w = jax.random.uniform(kw, (cout, cin, 3, 3), jnp.float32, -bound, bound)
        b = jax.random.uniform(kb, (cout,), jnp.float32, -bound, bound)
        params[name] = (w, b)
    return params


def prepare_params(params):
    """One-time weight packing: OIHW f32 -> (9*Cin [rounded to 16], Cout) bf16
    matmul weights (tap order matches the im2col layout) + f32 (1, Cout) bias."""
    prepared = {}
    for name, (w, b) in params.items():
        cout, cin = w.shape[0], w.shape[1]
        k = 9 * cin
        k_pad = _round_up(k, 16)  # bf16 sublane packing; only conv1_1 (27->32)
        # torch weight (Cout, Cin, kh, kw) -> (kh, kw, Cin, Cout) -> (9*Cin, Cout)
        w_mat = jnp.transpose(w, (2, 3, 1, 0)).reshape(k, cout)
        if k_pad != k:
            w_mat = jnp.pad(w_mat, ((0, k_pad - k), (0, 0)))
        prepared[name] = (w_mat.astype(jnp.bfloat16),
                          b.astype(jnp.float32).reshape(1, cout))
    return prepared


def cropped_vgg19(prepared, x_nchw):
    """NCHW f32 in -> list of the five pre-ReLU NCHW f32 taps (torch module)."""
    h = jnp.transpose(x_nchw, (0, 2, 3, 1)).astype(jnp.bfloat16)

    conv1_1, h = conv3x3_same(h, *prepared["conv1_1"], mode="both")
    h = conv3x3_same(h, *prepared["conv1_2"], mode="relu")
    h = maxpool_2x2(h)

    conv2_1, h = conv3x3_same(h, *prepared["conv2_1"], mode="both")
    h = conv3x3_same(h, *prepared["conv2_2"], mode="relu")
    h = maxpool_2x2(h)

    conv3_1, h = conv3x3_same(h, *prepared["conv3_1"], mode="both")
    h = conv3x3_same(h, *prepared["conv3_2"], mode="relu")
    h = conv3x3_same(h, *prepared["conv3_3"], mode="relu")
    h = maxpool_2x2(h)

    conv4_1, h = conv3x3_same(h, *prepared["conv4_1"], mode="both")
    h = conv3x3_same(h, *prepared["conv4_2"], mode="relu")
    h = conv3x3_same(h, *prepared["conv4_3"], mode="relu")
    h = maxpool_2x2(h)

    conv5_1 = conv3x3_same(h, *prepared["conv5_1"], mode="linear")

    outs = [conv1_1, conv2_1, conv3_1, conv4_1, conv5_1]
    return [jnp.transpose(o, (0, 3, 1, 2)) for o in outs]


# -------------------------------- main ---------------------------------------
if __name__ == "__main__":
    key = jax.random.PRNGKey(0)
    kp, kx = jax.random.split(key)
    params = init_params(kp)
    prepared = prepare_params(params)  # one-time weight packing (perf review)

    # Small input consistent with the module: NCHW, 3 input channels.
    x = jax.random.normal(kx, (2, 3, 16, 16), dtype=jnp.float32)

    fwd = jax.jit(cropped_vgg19)
    outs = jax.block_until_ready(fwd(prepared, x))

    expected_shapes = [
        (2, 64, 16, 16),
        (2, 128, 8, 8),
        (2, 256, 4, 4),
        (2, 512, 2, 2),
        (2, 512, 1, 1),
    ]
    assert [tuple(o.shape) for o in outs] == expected_shapes
    assert all(o.dtype == jnp.float32 for o in outs)
    assert all(bool(jnp.all(jnp.isfinite(o))) for o in outs)

    print("KERNEL_OK")
</pallas_src>

<mosaic_0001>
module attributes {stable_mosaic.version = 11 : i64} {
  func.func @_conv_mm_kernel(%arg0: i32, %arg1: memref<256x32xbf16, #tpu.memory_space<vmem>>, %arg2: memref<32x64xbf16, #tpu.memory_space<vmem>>, %arg3: memref<1x64xf32, #tpu.memory_space<vmem>>, %arg4: memref<256x64xf32, #tpu.memory_space<vmem>>, %arg5: memref<256x64xbf16, #tpu.memory_space<vmem>>) attributes {dimension_semantics = [#tpu.dimension_semantics<parallel>], iteration_bounds = array<i64: 2>, scalar_prefetch = 0 : i64, scratch_operands = 0 : i64, tpu.core_type = #tpu.core_type<tc>, window_params = [{transform_indices = @transform_0, window_bounds = array<i64: 256, 32>}, {pipeline_mode = #tpu.pipeline_mode<synchronous>, transform_indices = @transform_1, window_bounds = array<i64: 32, 64>}, {pipeline_mode = #tpu.pipeline_mode<synchronous>, transform_indices = @transform_2, window_bounds = array<i64: 1, 64>}, {transform_indices = @transform_3, window_bounds = array<i64: 256, 64>}, {transform_indices = @transform_4, window_bounds = array<i64: 256, 64>}]} {
    %c0 = arith.constant 0 : index
    %c0_0 = arith.constant 0 : index
    %0 = vector.load %arg1[%c0, %c0_0] : memref<256x32xbf16, #tpu.memory_space<vmem>>, vector<256x32xbf16>
    %c0_1 = arith.constant 0 : index
    %c0_2 = arith.constant 0 : index
    %1 = vector.load %arg2[%c0_1, %c0_2] : memref<32x64xbf16, #tpu.memory_space<vmem>>, vector<32x64xbf16>
    %cst = arith.constant dense<0.000000e+00> : vector<256x64xf32>
    %2 = tpu.matmul %0, %1, %cst {dimension_numbers = #tpu.dot_dimension_numbers<[1], [0], [0], [1], [0, 0, 1, 1], [], []>} : vector<256x32xbf16>, vector<32x64xbf16>, vector<256x64xf32> -> vector<256x64xf32>
    %c0_3 = arith.constant 0 : index
    %c0_4 = arith.constant 0 : index
    %3 = vector.load %arg3[%c0_3, %c0_4] : memref<1x64xf32, #tpu.memory_space<vmem>>, vector<1x64xf32>
    %4 = vector.broadcast %3 : vector<1x64xf32> to vector<256x64xf32>
    %5 = arith.addf %2, %4 : vector<256x64xf32>
    %c0_5 = arith.constant 0 : index
    %c0_6 = arith.constant 0 : index
    %6 = vector.load %arg4[%c0_5, %c0_6] : memref<256x64xf32, #tpu.memory_space<vmem>>, vector<256x64xf32>
    tpu.vector_store %arg4[%c0_5, %c0_6], %5 {strides = array<i32>} : memref<256x64xf32, #tpu.memory_space<vmem>>, vector<256x64xf32>,
    %cst_7 = arith.constant 0.000000e+00 : f32
    %7 = vector.broadcast %cst_7 : f32 to vector<256x64xf32>
    %8 = arith.maximumf %5, %7 : vector<256x64xf32>
    %9 = arith.truncf %8 : vector<256x64xf32> to vector<256x64xbf16>
    %c0_8 = arith.constant 0 : index
    %c0_9 = arith.constant 0 : index
    %10 = vector.load %arg5[%c0_8, %c0_9] : memref<256x64xbf16, #tpu.memory_space<vmem>>, vector<256x64xbf16>
    tpu.vector_store %arg5[%c0_8, %c0_9], %9 {strides = array<i32>} : memref<256x64xbf16, #tpu.memory_space<vmem>>, vector<256x64xbf16>,
    return
  }
  func.func @transform_0(%arg0: i32) -> (i32, i32) {
    %c0_i32 = arith.constant 0 : i32
    %c0_i32_0 = arith.constant 0 : i32
    return %arg0, %c0_i32 : i32, i32
  }
  func.func @transform_1(%arg0: i32) -> (i32, i32) {
    %c0_i32 = arith.constant 0 : i32
    %c0_i32_0 = arith.constant 0 : i32
    %c0_i32_1 = arith.constant 0 : i32
    return %c0_i32, %c0_i32_0 : i32, i32
  }
  func.func @transform_2(%arg0: i32) -> (i32, i32) {
    %c0_i32 = arith.constant 0 : i32
    %c0_i32_0 = arith.constant 0 : i32
    %c0_i32_1 = arith.constant 0 : i32
    return %c0_i32, %c0_i32_0 : i32, i32
  }
  func.func @transform_3(%arg0: i32) -> (i32, i32) {
    %c0_i32 = arith.constant 0 : i32
    %c0_i32_0 = arith.constant 0 : i32
    return %arg0, %c0_i32 : i32, i32
  }
  func.func @transform_4(%arg0: i32) -> (i32, i32) {
    %c0_i32 = arith.constant 0 : i32
    %c0_i32_0 = arith.constant 0 : i32
    return %arg0, %c0_i32 : i32, i32
  }
}

module attributes {stable_mosaic.version = 11 : i64} {
  func.func @_conv_mm_kernel(%arg0: i32, %arg1: memref<256x576xbf16, #tpu.memory_space<vmem>>, %arg2: memref<576x64xbf16, #tpu.memory_space<vmem>>, %arg3: memref<1x64xf32, #tpu.memory_space<vmem>>, %arg4: memref<256x64xbf16, #tpu.memory_space<vmem>>) attributes {dimension_semantics = [#tpu.dimension_semantics<parallel>], iteration_bounds = array<i64: 2>, scalar_prefetch = 0 : i64, scratch_operands = 0 : i64, tpu.core_type = #tpu.core_type<tc>, window_params = [{transform_indices = @transform_0, window_bounds = array<i64: 256, 576>}, {pipeline_mode = #tpu.pipeline_mode<synchronous>, transform_indices = @transform_1, window_bounds = array<i64: 576, 64>}, {pipeline_mode = #tpu.pipeline_mode<synchronous>, transform_indices = @transform_2, window_bounds = array<i64: 1, 64>}, {transform_indices = @transform_3, window_bounds = array<i64: 256, 64>}]} {
    %c0 = arith.constant 0 : index
    %c0_0 = arith.constant 0 : index
    %0 = vector.load %arg1[%c0, %c0_0] : memref<256x576xbf16, #tpu.memory_space<vmem>>, vector<256x576xbf16>
    %c0_1 = arith.constant 0 : index
    %c0_2 = arith.constant 0 : index
    %1 = vector.load %arg2[%c0_1, %c0_2] : memref<576x64xbf16, #tpu.memory_space<vmem>>, vector<576x64xbf16>
    %cst = arith.constant dense<0.000000e+00> : vector<256x64xf32>
    %2 = tpu.matmul %0, %1, %cst {dimension_numbers = #tpu.dot_dimension_numbers<[1], [0], [0], [1], [0, 0, 1, 1], [], []>} : vector<256x576xbf16>, vector<576x64xbf16>, vector<256x64xf32> -> vector<256x64xf32>
    %c0_3 = arith.constant 0 : index
    %c0_4 = arith.constant 0 : index
    %3 = vector.load %arg3[%c0_3, %c0_4] : memref<1x64xf32, #tpu.memory_space<vmem>>, vector<1x64xf32>
    %4 = vector.broadcast %3 : vector<1x64xf32> to vector<256x64xf32>
    %5 = arith.addf %2, %4 : vector<256x64xf32>
    %cst_5 = arith.constant 0.000000e+00 : f32
    %6 = vector.broadcast %cst_5 : f32 to vector<256x64xf32>
    %7 = arith.maximumf %5, %6 : vector<256x64xf32>
    %8 = arith.truncf %7 : vector<256x64xf32> to vector<256x64xbf16>
    %c0_6 = arith.constant 0 : index
    %c0_7 = arith.constant 0 : index
    %9 = vector.load %arg4[%c0_6, %c0_7] : memref<256x64xbf16, #tpu.memory_space<vmem>>, vector<256x64xbf16>
    tpu.vector_store %arg4[%c0_6, %c0_7], %8 {strides = array<i32>} : memref<256x64xbf16, #tpu.memory_space<vmem>>, vector<256x64xbf16>,
    return
  }
  func.func @transform_0(%arg0: i32) -> (i32, i32) {
    %c0_i32 = arith.constant 0 : i32
    %c0_i32_0 = arith.constant 0 : i32
    return %arg0, %c0_i32 : i32, i32
  }
  func.func @transform_1(%arg0: i32) -> (i32, i32) {
    %c0_i32 = arith.constant 0 : i32
    %c0_i32_0 = arith.constant 0 : i32
    %c0_i32_1 = arith.constant 0 : i32
    return %c0_i32, %c0_i32_0 : i32, i32
  }
  func.func @transform_2(%arg0: i32) -> (i32, i32) {
    %c0_i32 = arith.constant 0 : i32
    %c0_i32_0 = arith.constant 0 : i32
    %c0_i32_1 = arith.constant 0 : i32
    return %c0_i32, %c0_i32_0 : i32, i32
  }
  func.func @transform_3(%arg0: i32) -> (i32, i32) {
    %c0_i32 = arith.constant 0 : i32
    %c0_i32_0 = arith.constant 0 : i32
    return %arg0, %c0_i32 : i32, i32
  }
}

module attributes {stable_mosaic.version = 11 : i64} {
  func.func @_conv_mm_kernel(%arg0: i32, %arg1: memref<64x576xbf16, #tpu.memory_space<vmem>>, %arg2: memref<576x128xbf16, #tpu.memory_space<vmem>>, %arg3: memref<1x128xf32, #tpu.memory_space<vmem>>, %arg4: memref<64x128xf32, #tpu.memory_space<vmem>>, %arg5: memref<64x128xbf16, #tpu.memory_space<vmem>>) attributes {dimension_semantics = [#tpu.dimension_semantics<parallel>], iteration_bounds = array<i64: 2>, scalar_prefetch = 0 : i64, scratch_operands = 0 : i64, tpu.core_type = #tpu.core_type<tc>, window_params = [{transform_indices = @transform_0, window_bounds = array<i64: 64, 576>}, {pipeline_mode = #tpu.pipeline_mode<synchronous>, transform_indices = @transform_1, window_bounds = array<i64: 576, 128>}, {pipeline_mode = #tpu.pipeline_mode<synchronous>, transform_indices = @transform_2, window_bounds = array<i64: 1, 128>}, {transform_indices = @transform_3, window_bounds = array<i64: 64, 128>}, {transform_indices = @transform_4, window_bounds = array<i64: 64, 128>}]} {
    %c0 = arith.constant 0 : index
    %c0_0 = arith.constant 0 : index
    %0 = vector.load %arg1[%c0, %c0_0] : memref<64x576xbf16, #tpu.memory_space<vmem>>, vector<64x576xbf16>
    %c0_1 = arith.constant 0 : index
    %c0_2 = arith.constant 0 : index
    %1 = vector.load %arg2[%c0_1, %c0_2] : memref<576x128xbf16, #tpu.memory_space<vmem>>, vector<576x128xbf16>
    %cst = arith.constant dense<0.000000e+00> : vector<64x128xf32>
    %2 = tpu.matmul %0, %1, %cst {dimension_numbers = #tpu.dot_dimension_numbers<[1], [0], [0], [1], [0, 0, 1, 1], [], []>} : vector<64x576xbf16>, vector<576x128xbf16>, vector<64x128xf32> -> vector<64x128xf32>
    %c0_3 = arith.constant 0 : index
    %c0_4 = arith.constant 0 : index
    %3 = vector.load %arg3[%c0_3, %c0_4] : memref<1x128xf32, #tpu.memory_space<vmem>>, vector<1x128xf32>
    %4 = vector.broadcast %3 : vector<1x128xf32> to vector<64x128xf32>
    %5 = arith.addf %2, %4 : vector<64x128xf32>
    %c0_5 = arith.constant 0 : index
    %c0_6 = arith.constant 0 : index
    %6 = vector.load %arg4[%c0_5, %c0_6] : memref<64x128xf32, #tpu.memory_space<vmem>>, vector<64x128xf32>
    tpu.vector_store %arg4[%c0_5, %c0_6], %5 {strides = array<i32>} : memref<64x128xf32, #tpu.memory_space<vmem>>, vector<64x128xf32>,
    %cst_7 = arith.constant 0.000000e+00 : f32
    %7 = vector.broadcast %cst_7 : f32 to vector<64x128xf32>
    %8 = arith.maximumf %5, %7 : vector<64x128xf32>
    %9 = arith.truncf %8 : vector<64x128xf32> to vector<64x128xbf16>
    %c0_8 = arith.constant 0 : index
    %c0_9 = arith.constant 0 : index
    %10 = vector.load %arg5[%c0_8, %c0_9] : memref<64x128xbf16, #tpu.memory_space<vmem>>, vector<64x128xbf16>
    tpu.vector_store %arg5[%c0_8, %c0_9], %9 {strides = array<i32>} : memref<64x128xbf16, #tpu.memory_space<vmem>>, vector<64x128xbf16>,
    return
  }
  func.func @transform_0(%arg0: i32) -> (i32, i32) {
    %c0_i32 = arith.constant 0 : i32
    %c0_i32_0 = arith.constant 0 : i32
    return %arg0, %c0_i32 : i32, i32
  }
  func.func @transform_1(%arg0: i32) -> (i32, i32) {
    %c0_i32 = arith.constant 0 : i32
    %c0_i32_0 = arith.constant 0 : i32
    %c0_i32_1 = arith.constant 0 : i32
    return %c0_i32, %c0_i32_0 : i32, i32
  }
  func.func @transform_2(%arg0: i32) -> (i32, i32) {
    %c0_i32 = arith.constant 0 : i32
    %c0_i32_0 = arith.constant 0 : i32
    %c0_i32_1 = arith.constant 0 : i32
    return %c0_i32, %c0_i32_0 : i32, i32
  }
  func.func @transform_3(%arg0: i32) -> (i32, i32) {
    %c0_i32 = arith.constant 0 : i32
    %c0_i32_0 = arith.constant 0 : i32
    return %arg0, %c0_i32 : i32, i32
  }
  func.func @transform_4(%arg0: i32) -> (i32, i32) {
    %c0_i32 = arith.constant 0 : i32
    %c0_i32_0 = arith.constant 0 : i32
    return %arg0, %c0_i32 : i32, i32
  }
}

module attributes {stable_mosaic.version = 11 : i64} {
  func.func @_conv_mm_kernel(%arg0: i32, %arg1: memref<64x1152xbf16, #tpu.memory_space<vmem>>, %arg2: memref<1152x128xbf16, #tpu.memory_space<vmem>>, %arg3: memref<1x128xf32, #tpu.memory_space<vmem>>, %arg4: memref<64x128xbf16, #tpu.memory_space<vmem>>) attributes {dimension_semantics = [#tpu.dimension_semantics<parallel>], iteration_bounds = array<i64: 2>, scalar_prefetch = 0 : i64, scratch_operands = 0 : i64, tpu.core_type = #tpu.core_type<tc>, window_params = [{transform_indices = @transform_0, window_bounds = array<i64: 64, 1152>}, {pipeline_mode = #tpu.pipeline_mode<synchronous>, transform_indices = @transform_1, window_bounds = array<i64: 1152, 128>}, {pipeline_mode = #tpu.pipeline_mode<synchronous>, transform_indices = @transform_2, window_bounds = array<i64: 1, 128>}, {transform_indices = @transform_3, window_bounds = array<i64: 64, 128>}]} {
    %c0 = arith.constant 0 : index
    %c0_0 = arith.constant 0 : index
    %0 = vector.load %arg1[%c0, %c0_0] : memref<64x1152xbf16, #tpu.memory_space<vmem>>, vector<64x1152xbf16>
    %c0_1 = arith.constant 0 : index
    %c0_2 = arith.constant 0 : index
    %1 = vector.load %arg2[%c0_1, %c0_2] : memref<1152x128xbf16, #tpu.memory_space<vmem>>, vector<1152x128xbf16>
    %cst = arith.constant dense<0.000000e+00> : vector<64x128xf32>
    %2 = tpu.matmul %0, %1, %cst {dimension_numbers = #tpu.dot_dimension_numbers<[1], [0], [0], [1], [0, 0, 1, 1], [], []>} : vector<64x1152xbf16>, vector<1152x128xbf16>, vector<64x128xf32> -> vector<64x128xf32>
    %c0_3 = arith.constant 0 : index
    %c0_4 = arith.constant 0 : index
    %3 = vector.load %arg3[%c0_3, %c0_4] : memref<1x128xf32, #tpu.memory_space<vmem>>, vector<1x128xf32>
    %4 = vector.broadcast %3 : vector<1x128xf32> to vector<64x128xf32>
    %5 = arith.addf %2, %4 : vector<64x128xf32>
    %cst_5 = arith.constant 0.000000e+00 : f32
    %6 = vector.broadcast %cst_5 : f32 to vector<64x128xf32>
    %7 = arith.maximumf %5, %6 : vector<64x128xf32>
    %8 = arith.truncf %7 : vector<64x128xf32> to vector<64x128xbf16>
    %c0_6 = arith.constant 0 : index
    %c0_7 = arith.constant 0 : index
    %9 = vector.load %arg4[%c0_6, %c0_7] : memref<64x128xbf16, #tpu.memory_space<vmem>>, vector<64x128xbf16>
    tpu.vector_store %arg4[%c0_6, %c0_7], %8 {strides = array<i32>} : memref<64x128xbf16, #tpu.memory_space<vmem>>, vector<64x128xbf16>,
    return
  }
  func.func @transform_0(%arg0: i32) -> (i32, i32) {
    %c0_i32 = arith.constant 0 : i32
    %c0_i32_0 = arith.constant 0 : i32
    return %arg0, %c0_i32 : i32, i32
  }
  func.func @transform_1(%arg0: i32) -> (i32, i32) {
    %c0_i32 = arith.constant 0 : i32
    %c0_i32_0 = arith.constant 0 : i32
    %c0_i32_1 = arith.constant 0 : i32
    return %c0_i32, %c0_i32_0 : i32, i32
  }
  func.func @transform_2(%arg0: i32) -> (i32, i32) {
    %c0_i32 = arith.constant 0 : i32
    %c0_i32_0 = arith.constant 0 : i32
    %c0_i32_1 = arith.constant 0 : i32
    return %c0_i32, %c0_i32_0 : i32, i32
  }
  func.func @transform_3(%arg0: i32) -> (i32, i32) {
    %c0_i32 = arith.constant 0 : i32
    %c0_i32_0 = arith.constant 0 : i32
    return %arg0, %c0_i32 : i32, i32
  }
}

</mosaic_0001>

<llo_original>
// kernel: cropped_vgg19.4
$region0: #{cropped_vgg19.4}
  #allocation0 [shape = 'u32[]', space=smem, size = 0x4, offset = 0x4, fixed_abs, tag = 'smem constant byte address 0x4 - core index']
  #allocation1 [shape = 'u32[72,128]{1,0:T(1,128)}', space=vmem, size = 0x9000, scoped, tag = 'internal scratch']
  %s0 = inlined_call_operand.vmem [shape: bf16[512,32], index: 0, kind: input, shape index: {}]
  %s1 = inlined_call_operand.hbm [shape: bf16[32,64], index: 1, kind: input, shape index: {}]
  %s2 = inlined_call_operand.hbm [shape: f32[1,64], index: 2, kind: input, shape index: {}]
  %s3 = inlined_call_operand.hbm [shape: f32[512,64], index: 3, kind: output, shape index: {0}]
  %s4 = inlined_call_operand.vmem [shape: bf16[512,64], index: 4, kind: output, shape index: {1}]
  %5 = xla_tuple %s3, %s4
  %s6 = sld [smem:[#allocation0]]
  $region61: #{cropped_vgg19.4} parent=0
    _
  %s8 = ssub.s32 1, %s6
  %s9 = scalar_select 0, %s8, %s6
  $region1: #{cropped_vgg19.4} parent=0
    #allocation2 [shape = 'u8[8192]{0}', space=vmem, size = 0x2000, scoped, tag = 'input window, operand 1, single buffered']
    #allocation3 [shape = 's32[2]{0}', space=sflag, size = 0x8, scoped, tag = 'scoped memory for cropped_vgg19.4']
    #allocation4 [shape = 's32[2]{0}', space=sflag, size = 0x8, scoped, tag = 'scoped memory for cropped_vgg19.4']
    #allocation5 [shape = 'u8[512]{0}', space=vmem, size = 0x400, scoped, tag = 'input window, operand 2, single buffered']
    #allocation6 [shape = 's32[1]{0}', space=sflag, size = 0x4, scoped, tag = 'scoped memory for cropped_vgg19.4']
    #allocation7 [shape = 'u8[262144]{0}', space=vmem, size = 0x40000, scoped, tag = 'output window, operand 0']
    %10 = vsyncpa [#allocation3], 0
    %11 = vsyncpa [#allocation6], 0
    %12 = vsyncpa [#allocation4], 0
    %s13 = scalar_lea.sflag [#allocation4], 1
    %14 = vsyncpa %s13, 0
    loop: start=0, step=1, limit=4
    $region2: #{cropped_vgg19.4} parent=1 // loop_pre_header
      _
    $region3: #{cropped_vgg19.4} parent=1 // loop_header
      %s16 = sphi 0, %s20
      %p17 = scmp.ge.s32.totalorder %s16, 4
      %s26 = sphi 0, %s28
      %s29 = sphi 0, %s26
      %s30 = sphi 0, %s29
      %s46 = sphi 0, %s30
      %s50 = sphi 0, %s50
      %s52 = sphi 0, %s50
      %s53 = sphi 0, %s52
      %s67 = sphi 0, %s53
      %s71 = sphi 0, %s71
      %s73 = sphi 0, %s71
      %s74 = sphi 0, %s73
      %s88 = sphi 0, %s74
      %s94 = sphi 0, %s96
      %s97 = sphi 0, %s94
      %s98 = sphi 0, %s97
      %s114 = sphi 0, %s98
      %s120 = sphi 0, %s122
      %s123 = sphi 0, %s120
      %s124 = sphi 0, %s123
      %s140 = sphi 0, %s124
    $region4: #{cropped_vgg19.4} parent=1 // loop_header_branch
      %19 = sbr.rel (%p17) target = $region8
    $region5: #{cropped_vgg19.4} parent=1 // loop_body
      %s21 = ssub.s32 %s16, 1
      %s22 = ssub.s32 %s16, 2
      %s23 = sadd.s32 %s16, 1
      %s24 = ssub.s32 %s16, %s23
      %p25 = scmp.eq.s32.totalorder %s24, 0
      %s27 = sadd.s32 %s26, 1
      %s28 = scalar_select %p25, %s26, %s27
      %p31 = pneg %p25
      %p32 = scmp.eq.s32.totalorder %s16, 1
      %p33 = por %p31, %p32
      %p34 = scmp.ne.s32.totalorder %s26, %s29
      %p35 = scmp.eq.s32.totalorder %s16, 0
      %p36 = por %p34, %p35
      %p37 = scmp.ne.s32.totalorder %s26, %s29
      %p38 = scmp.eq.s32.totalorder %s21, 1
      %p39 = por %p37, %p38
      %p40 = scmp.ne.s32.totalorder %s29, %s30
      %p41 = scmp.eq.s32.totalorder %s21, 0
      %p42 = por %p40, %p41
      %p43 = scmp.ne.s32.totalorder %s29, %s30
      %p44 = scmp.eq.s32.totalorder %s22, 1
      %p45 = por %p43, %p44
      %p47 = scmp.ne.s32.totalorder %s30, %s46
      %p48 = scmp.eq.s32.totalorder %s22, 0
      %p49 = por %p47, %p48
      %s51 = sadd.s32 %s50, 1
      %p54 = scmp.eq.s32.totalorder %s16, 1
      %p55 = scmp.ne.s32.totalorder %s50, %s52
      %p56 = scmp.eq.s32.totalorder %s16, 0
      %p57 = por %p55, %p56
      %p58 = scmp.ne.s32.totalorder %s50, %s52
      %p59 = scmp.eq.s32.totalorder %s21, 1
      %p60 = por %p58, %p59
      %p61 = scmp.ne.s32.totalorder %s52, %s53
      %p62 = scmp.eq.s32.totalorder %s21, 0
      %p63 = por %p61, %p62
      %p64 = scmp.ne.s32.totalorder %s52, %s53
      %p65 = scmp.eq.s32.totalorder %s22, 1
      %p66 = por %p64, %p65
      %p68 = scmp.ne.s32.totalorder %s53, %s67
      %p69 = scmp.eq.s32.totalorder %s22, 0
      %p70 = por %p68, %p69
      %s72 = sadd.s32 %s71, 1
      %p75 = scmp.eq.s32.totalorder %s16, 1
      %p76 = scmp.ne.s32.totalorder %s71, %s73
      %p77 = scmp.eq.s32.totalorder %s16, 0
      %p78 = por %p76, %p77
      %p79 = scmp.ne.s32.totalorder %s71, %s73
      %p80 = scmp.eq.s32.totalorder %s21, 1
      %p81 = por %p79, %p80
      %p82 = scmp.ne.s32.totalorder %s73, %s74
      %p83 = scmp.eq.s32.totalorder %s21, 0
      %p84 = por %p82, %p83
      %p85 = scmp.ne.s32.totalorder %s73, %s74
      %p86 = scmp.eq.s32.totalorder %s22, 1
      %p87 = por %p85, %p86
      %p89 = scmp.ne.s32.totalorder %s74, %s88
      %p90 = scmp.eq.s32.totalorder %s22, 0
      %p91 = por %p89, %p90
      %s92 = ssub.s32 %s16, %s23
      %p93 = scmp.eq.s32.totalorder %s92, 0
      %s95 = sadd.s32 %s94, 1
      %s96 = scalar_select %p93, %s94, %s95
      %p99 = pneg %p93
      %p100 = scmp.eq.s32.totalorder %s16, 1
      %p101 = por %p99, %p100
      %p102 = scmp.ne.s32.totalorder %s94, %s97
      %p103 = scmp.eq.s32.totalorder %s16, 0
      %p104 = por %p102, %p103
      %p105 = scmp.ne.s32.totalorder %s94, %s97
      %p106 = scmp.eq.s32.totalorder %s21, 1
      %p107 = por %p105, %p106
      %p108 = scmp.ne.s32.totalorder %s97, %s98
      %p109 = scmp.eq.s32.totalorder %s21, 0
      %p110 = por %p108, %p109
      %p111 = scmp.ne.s32.totalorder %s97, %s98
      %p112 = scmp.eq.s32.totalorder %s22, 1
      %p113 = por %p111, %p112
      %p115 = scmp.ne.s32.totalorder %s98, %s114
      %p116 = scmp.eq.s32.totalorder %s22, 0
      %p117 = por %p115, %p116
      %s118 = ssub.s32 %s16, %s23
      %p119 = scmp.eq.s32.totalorder %s118, 0
      %s121 = sadd.s32 %s120, 1
      %s122 = scalar_select %p119, %s120, %s121
      %p125 = pneg %p119
      %p126 = scmp.eq.s32.totalorder %s16, 1
      %p127 = por %p125, %p126
      %p128 = scmp.ne.s32.totalorder %s120, %s123
      %p129 = scmp.eq.s32.totalorder %s16, 0
      %p130 = por %p128, %p129
      %p131 = scmp.ne.s32.totalorder %s120, %s123
      %p132 = scmp.eq.s32.totalorder %s21, 1
      %p133 = por %p131, %p132
      %p134 = scmp.ne.s32.totalorder %s123, %s124
      %p135 = scmp.eq.s32.totalorder %s21, 0
      %p136 = por %p134, %p135
      %p137 = scmp.ne.s32.totalorder %s123, %s124
      %p138 = scmp.eq.s32.totalorder %s22, 1
      %p139 = por %p137, %p138
      %p141 = scmp.ne.s32.totalorder %s124, %s140
      %p142 = scmp.eq.s32.totalorder %s22, 0
      %p143 = por %p141, %p142
      %p144 = scmp.le.s32.totalorder 1, %s16
      %p145 = scmp.lt.s32.totalorder %s16, 3
      %p146 = pnand %p144, %p145
      %p147 = pneg %p146
      // Predicated region
      $region9: #{cropped_vgg19.4} parent=5 // pred_check
        _
      $region10: #{cropped_vgg19.4} parent=5 // pred_check_branch
        %149 = sbr.rel (%p146) target = $region12
      $region11: #{cropped_vgg19.4} parent=5 // pred_region
        %s150 = ssub.s32 %s16, 1
        // Predicated region
        $region13: #{cropped_vgg19.4} parent=11 // pred_check
          %p151 = pneg %p63
        $region14: #{cropped_vgg19.4} parent=11 // pred_check_branch
          %153 = sbr.rel (%p151) target = $region16
        $region15: #{cropped_vgg19.4} parent=11 // pred_region
          %155 = vsyncadd [#allocation3], 0
          %s156 = sshll.u32 %s1, 4
          %s157 = int_to_ptr.hbm [resolvable:$true] %s156
          %s158 = sshll.u32 [#allocation2], 4
          %s159 = int_to_ptr.vmem [resolvable:$true] %s158
          %164 = dma.hbm_to_vmem [thread:$0]  %s157, 256, %s159, [#allocation3], 64, 64, 4
        $region16: #{cropped_vgg19.4} parent=11 // pred_fallthru
          _
        // Predicated region
        $region17: #{cropped_vgg19.4} parent=11 // pred_check
          %p165 = pneg %p84
        $region18: #{cropped_vgg19.4} parent=11 // pred_check_branch
          %167 = sbr.rel (%p165) target = $region20
        $region19: #{cropped_vgg19.4} parent=11 // pred_region
          %169 = vsyncadd [#allocation6], 0
          %s171 = sshll.u32 %s2, 4
          %s172 = int_to_ptr.hbm [resolvable:$true] %s171
          %s173 = sshll.u32 [#allocation5], 4
          %s174 = int_to_ptr.vmem [resolvable:$true] %s173
          %176 = dma.hbm_to_vmem [thread:$0]  %s172, 16, %s174, [#allocation6]
        $region20: #{cropped_vgg19.4} parent=11 // pred_fallthru
          _
      $region12: #{cropped_vgg19.4} parent=5 // pred_fallthru
        _
      %p177 = scmp.lt.s32.totalorder %s16, 2
      // Predicated region
      $region21: #{cropped_vgg19.4} parent=5 // pred_check
        %p178 = pneg %p177
      $region22: #{cropped_vgg19.4} parent=5 // pred_check_branch
        %180 = sbr.rel (%p178) target = $region24
      $region23: #{cropped_vgg19.4} parent=5 // pred_region
        // Predicated region
        $region25: #{cropped_vgg19.4} parent=23 // pred_check
          %p181 = pneg %p36
        $region26: #{cropped_vgg19.4} parent=23 // pred_check_branch
          %183 = sbr.rel (%p181) target = $region28
        $region27: #{cropped_vgg19.4} parent=23 // pred_region
          %s184 = smul.u32 32, %s16
          %p185 = scmp.lt.s32.totalorder %s184, 63
          %s186 = scalar_select %p185, %s184, 63
          %s187 = smul.addr %s186, 4
          %s188 = scalar_lea.vmem %s0, %s187
          %s189 = smul.u32 32, %s16
        $region28: #{cropped_vgg19.4} parent=23 // pred_fallthru
          _
      $region24: #{cropped_vgg19.4} parent=5 // pred_fallthru
        _
      %p190 = scmp.le.s32.totalorder 1, %s16
      %p191 = scmp.lt.s32.totalorder %s16, 3
      %p192 = pnand %p190, %p191
      %p193 = pneg %p192
      // Predicated region
      $region29: #{cropped_vgg19.4} parent=5 // pred_check
        _
      $region30: #{cropped_vgg19.4} parent=5 // pred_check_branch
        %195 = sbr.rel (%p192) target = $region32
      $region31: #{cropped_vgg19.4} parent=5 // pred_region
        %s196 = ssub.s32 %s16, 1
        // Predicated region
        $region33: #{cropped_vgg19.4} parent=31 // pred_check
          %p197 = pneg %p63
        $region34: #{cropped_vgg19.4} parent=31 // pred_check_branch
          %199 = sbr.rel (%p197) target = $region36
        $region35: #{cropped_vgg19.4} parent=31 // pred_region
          %201 = dma.done [#allocation3], 256
        $region36: #{cropped_vgg19.4} parent=31 // pred_fallthru
          _
        // Predicated region
        $region37: #{cropped_vgg19.4} parent=31 // pred_check
          %p202 = pneg %p84
        $region38: #{cropped_vgg19.4} parent=31 // pred_check_branch
          %204 = sbr.rel (%p202) target = $region40
        $region39: #{cropped_vgg19.4} parent=31 // pred_region
          %206 = dma.done [#allocation6], 16
        $region40: #{cropped_vgg19.4} parent=31 // pred_fallthru
          _
        %s207 = smul.u32 32, %s21
        %p208 = scmp.lt.s32.totalorder %s207, 63
        %s209 = scalar_select %p208, %s207, 63
        %s210 = smul.addr %s209, 4
        %s211 = scalar_lea.vmem %s0, %s210
        %p212 = pneg %p42
        %p213 = pneg %p39
        %p214 = pneg %p63
        %p215 = pneg %p60
        %p216 = pneg %p84
        %p217 = pneg %p81
        %p218 = pneg %p110
        %p219 = pneg %p107
        %s220 = sand.u32 %s97, 1
        %s221 = scalar_lea.sflag [#allocation4], %s220
        %s222 = sand.u32 %s97, 1
        %s223 = smul.addr %s222, 256
        %s224 = scalar_lea.vmem [#allocation7], %s223
        %p225 = pneg %p136
        %p226 = pneg %p133
        %s227 = smul.u32 32, %s21
        %p228 = scmp.lt.s32.totalorder %s227, 63
        %s229 = scalar_select %p228, %s227, 63
        %s230 = smul.addr %s229, 4
        %s231 = scalar_lea.vmem %s4, %s230
        %s232 = smul.u32 32, %s21
        %p233 = scmp.lt.s32.totalorder %s232, 63
        %s234 = scalar_select %p233, %s232, 63
        %s235 = smul.addr %s234, 4
        %s236 = scalar_lea.vmem %s0, %s235
        %s237 = smul.u32 32, %s21
        %s238 = smul.u32 32, %s21
        %s239 = smul.u32 32, %s21
        %p240 = scmp.lt.s32.totalorder %s239, 63
        %s241 = scalar_select %p240, %s239, 63
        %s242 = smul.addr %s241, 4
        %s243 = scalar_lea.vmem %s4, %s242
        %s244 = smul.u32 32, %s21
        %v246 = vld [vmem:[%s236] sm:$0xf]
        %v247 = vld [vmem:[%s236 + $0x4] sm:$0xf]
        %v248 = vld [vmem:[%s236 + $0x8] sm:$0xf]
        %v249 = vld [vmem:[%s236 + $0xc] sm:$0xf]
        %v250 = vld [vmem:[%s236 + $0x10] sm:$0xf]
        %v251 = vld [vmem:[%s236 + $0x14] sm:$0xf]
        %v252 = vld [vmem:[%s236 + $0x18] sm:$0xf]
        %v253 = vld [vmem:[%s236 + $0x1c] sm:$0xf]
        %v254 = vld [vmem:[%s236 + $0x20] sm:$0xf]
        %v255 = vld [vmem:[%s236 + $0x24] sm:$0xf]
        %v256 = vld [vmem:[%s236 + $0x28] sm:$0xf]
        %v257 = vld [vmem:[%s236 + $0x2c] sm:$0xf]
        %v258 = vld [vmem:[%s236 + $0x30] sm:$0xf]
        %v259 = vld [vmem:[%s236 + $0x34] sm:$0xf]
        %v260 = vld [vmem:[%s236 + $0x38] sm:$0xf]
        %v261 = vld [vmem:[%s236 + $0x3c] sm:$0xf]
        %v262 = vld [vmem:[%s236 + $0x40] sm:$0xf]
        %v263 = vld [vmem:[%s236 + $0x44] sm:$0xf]
        %v264 = vld [vmem:[%s236 + $0x48] sm:$0xf]
        %v265 = vld [vmem:[%s236 + $0x4c] sm:$0xf]
        %v266 = vld [vmem:[%s236 + $0x50] sm:$0xf]
        %v267 = vld [vmem:[%s236 + $0x54] sm:$0xf]
        %v268 = vld [vmem:[%s236 + $0x58] sm:$0xf]
        %v269 = vld [vmem:[%s236 + $0x5c] sm:$0xf]
        %v270 = vld [vmem:[%s236 + $0x60] sm:$0xf]
        %v271 = vld [vmem:[%s236 + $0x64] sm:$0xf]
        %v272 = vld [vmem:[%s236 + $0x68] sm:$0xf]
        %v273 = vld [vmem:[%s236 + $0x6c] sm:$0xf]
        %v274 = vld [vmem:[%s236 + $0x70] sm:$0xf]
        %v275 = vld [vmem:[%s236 + $0x74] sm:$0xf]
        %v276 = vld [vmem:[%s236 + $0x78] sm:$0xf]
        %v277 = vld [vmem:[%s236 + $0x7c] sm:$0xf]
        %v278 = vld [vmem:[#allocation2] sm:$0xf]
        %v279 = vld [vmem:[#allocation2 + $0x4] sm:$0xf]
        %v280 = vld [vmem:[#allocation2 + $0x8] sm:$0xf]
        %v281 = vld [vmem:[#allocation2 + $0xc] sm:$0xf]
        %v282 = vld [vmem:[#allocation5] sm:$0x1]
        %v284 = vperm.slane %v282, 0
        %v318 = vunpack.c.l.b16 %v246
        %v319 = vunpack.c.l.b16 %v247
        %v320 = vunpack.c.l.b16 %v248
        %v321 = vunpack.c.l.b16 %v249
        %v322 = vunpack.c.l.b16 %v250
        %v323 = vunpack.c.l.b16 %v251
        %v324 = vunpack.c.l.b16 %v252
        %v325 = vunpack.c.l.b16 %v253
        %v326 = vunpack.c.l.b16 %v254
        %v327 = vunpack.c.l.b16 %v255
        %v328 = vunpack.c.l.b16 %v256
        %v329 = vunpack.c.l.b16 %v257
        %v330 = vunpack.c.l.b16 %v258
        %v331 = vunpack.c.l.b16 %v259
        %v332 = vunpack.c.l.b16 %v260
        %v333 = vunpack.c.l.b16 %v261
        %v334 = vunpack.c.l.b16 %v262
        %v335 = vunpack.c.l.b16 %v263
        %v336 = vunpack.c.l.b16 %v264
        %v337 = vunpack.c.l.b16 %v265
        %v338 = vunpack.c.l.b16 %v266
        %v339 = vunpack.c.l.b16 %v267
        %v340 = vunpack.c.l.b16 %v268
        %v341 = vunpack.c.l.b16 %v269
        %v342 = vunpack.c.l.b16 %v270
        %v343 = vunpack.c.l.b16 %v271
        %v344 = vunpack.c.l.b16 %v272
        %v345 = vunpack.c.l.b16 %v273
        %v346 = vunpack.c.l.b16 %v274
        %v347 = vunpack.c.l.b16 %v275
        %v348 = vunpack.c.l.b16 %v276
        %v349 = vunpack.c.l.b16 %v277
        %v350 = vpack.c.b16 %v319, %v318
        %v351 = vpack.c.b16 %v321, %v320
        %v352 = vpack.c.b16 %v323, %v322
        %v353 = vpack.c.b16 %v325, %v324
        %v354 = vpack.c.b16 %v327, %v326
        %v355 = vpack.c.b16 %v329, %v328
        %v356 = vpack.c.b16 %v331, %v330
        %v357 = vpack.c.b16 %v333, %v332
        %v358 = vpack.c.b16 %v335, %v334
        %v359 = vpack.c.b16 %v337, %v336
        %v360 = vpack.c.b16 %v339, %v338
        %v361 = vpack.c.b16 %v341, %v340
        %v362 = vpack.c.b16 %v343, %v342
        %v363 = vpack.c.b16 %v345, %v344
        %v364 = vpack.c.b16 %v347, %v346
        %v365 = vpack.c.b16 %v349, %v348
        %v370 = vunpack.c.l.b16 %v278
        %v371 = vunpack.c.l.b16 %v279
        %v372 = vunpack.c.l.b16 %v280
        %v373 = vunpack.c.l.b16 %v281
        %v374 = vpack.c.b16 %v371, %v370
        %v375 = vpack.c.b16 %v373, %v372
        %vm378 = vcmask 261120
        %v380 = vsel %vm378, %v350, 0
        %v383 = vsel %vm378, %v351, 0
        %v386 = vsel %vm378, %v352, 0
        %v389 = vsel %vm378, %v353, 0
        %v392 = vsel %vm378, %v354, 0
        %v395 = vsel %vm378, %v355, 0
        %v398 = vsel %vm378, %v356, 0
        %v401 = vsel %vm378, %v357, 0
        %v404 = vsel %vm378, %v358, 0
        %v407 = vsel %vm378, %v359, 0
        %v410 = vsel %vm378, %v360, 0
        %v413 = vsel %vm378, %v361, 0
        %v416 = vsel %vm378, %v362, 0
        %v419 = vsel %vm378, %v363, 0
        %v422 = vsel %vm378, %v364, 0
        %v425 = vsel %vm378, %v365, 0
        %427 = vmatpush.bf16.msra.mxu0 0
        %428 = vmatpush.bf16.msra.mxu0 0
        %429 = vmatpush.bf16.msra.mxu0 0
        %430 = vmatpush.bf16.msra.mxu0 0
        %431 = vmatpush.bf16.msra.mxu0 0
        %432 = vmatpush.bf16.msra.mxu0 0
        %433 = vmatpush.bf16.msra.mxu0 %v375
        %434 = vmatpush.bf16.msra.mxu0 %v374
        %435 = vmatmul.bf16.gmra.mxu0 %v380
        %v436 = vpop.f32.mrf.mxu0
        %v437 = vadd.f32 %v284, %v436
        %v438 = vpop.f32.mrf.mxu0
        %v439 = vadd.f32 %v284, %v438
        %440 = vmatmul.bf16.gmra.mxu0 %v383
        %v441 = vpop.f32.mrf.mxu0
        %v442 = vadd.f32 %v284, %v441
        %v443 = vpop.f32.mrf.mxu0
        %v444 = vadd.f32 %v284, %v443
        %445 = vmatmul.bf16.gmra.mxu0 %v386
        %v446 = vpop.f32.mrf.mxu0
        %v447 = vadd.f32 %v284, %v446
        %v448 = vpop.f32.mrf.mxu0
        %v449 = vadd.f32 %v284, %v448
        %450 = vmatmul.bf16.gmra.mxu0 %v389
        %v451 = vpop.f32.mrf.mxu0
        %v452 = vadd.f32 %v284, %v451
        %v453 = vpop.f32.mrf.mxu0
        %v454 = vadd.f32 %v284, %v453
        %455 = vmatmul.bf16.gmra.mxu0 %v392
        %v456 = vpop.f32.mrf.mxu0
        %v457 = vadd.f32 %v284, %v456
        %v458 = vpop.f32.mrf.mxu0
        %v459 = vadd.f32 %v284, %v458
        %460 = vmatmul.bf16.gmra.mxu0 %v395
        %v461 = vpop.f32.mrf.mxu0
        %v462 = vadd.f32 %v284, %v461
        %v463 = vpop.f32.mrf.mxu0
        %v464 = vadd.f32 %v284, %v463
        %465 = vmatmul.bf16.gmra.mxu0 %v398
        %v466 = vpop.f32.mrf.mxu0
        %v467 = vadd.f32 %v284, %v466
        %v468 = vpop.f32.mrf.mxu0
        %v469 = vadd.f32 %v284, %v468
        %470 = vmatmul.bf16.gmra.mxu0 %v401
        %v471 = vpop.f32.mrf.mxu0
        %v472 = vadd.f32 %v284, %v471
        %v473 = vpop.f32.mrf.mxu0
        %v474 = vadd.f32 %v284, %v473
        %475 = vmatmul.bf16.gmra.mxu0 %v404
        %v476 = vpop.f32.mrf.mxu0
        %v477 = vadd.f32 %v284, %v476
        %v478 = vpop.f32.mrf.mxu0
        %v479 = vadd.f32 %v284, %v478
        %480 = vmatmul.bf16.gmra.mxu0 %v407
        %v481 = vpop.f32.mrf.mxu0
        %v482 = vadd.f32 %v284, %v481
        %v483 = vpop.f32.mrf.mxu0
        %v484 = vadd.f32 %v284, %v483
        %485 = vmatmul.bf16.gmra.mxu0 %v410
        %v486 = vpop.f32.mrf.mxu0
        %v487 = vadd.f32 %v284, %v486
        %v488 = vpop.f32.mrf.mxu0
        %v489 = vadd.f32 %v284, %v488
        %490 = vmatmul.bf16.gmra.mxu0 %v413
        %v491 = vpop.f32.mrf.mxu0
        %v492 = vadd.f32 %v284, %v491
        %v493 = vpop.f32.mrf.mxu0
        %v494 = vadd.f32 %v284, %v493
        %495 = vmatmul.bf16.gmra.mxu0 %v416
        %v496 = vpop.f32.mrf.mxu0
        %v497 = vadd.f32 %v284, %v496
        %v498 = vpop.f32.mrf.mxu0
        %v499 = vadd.f32 %v284, %v498
        %500 = vmatmul.bf16.gmra.mxu0 %v419
        %v501 = vpop.f32.mrf.mxu0
        %v502 = vadd.f32 %v284, %v501
        %v503 = vpop.f32.mrf.mxu0
        %v504 = vadd.f32 %v284, %v503
        %505 = vmatmul.bf16.gmra.mxu0 %v422
        %v506 = vpop.f32.mrf.mxu0
        %v507 = vadd.f32 %v284, %v506
        %v508 = vpop.f32.mrf.mxu0
        %v509 = vadd.f32 %v284, %v508
        %510 = vmatmul.bf16.gmra.mxu0 %v425
        %v511 = vpop.f32.mrf.mxu0
        %v512 = vadd.f32 %v284, %v511
        %v513 = vpop.f32.mrf.mxu0
        %v514 = vadd.f32 %v284, %v513
        %515 = vdwg.mxu0
        %vm516 = vcmask 523264
        %517 = vst.msk [vmem:[%s224] sm:$0xff] %vm516, %v437
        %518 = vst.msk [vmem:[%s224 + $0x8] sm:$0xff] %vm516, %v439
        %519 = vst.msk [vmem:[%s224 + $0x10] sm:$0xff] %vm516, %v442
        %520 = vst.msk [vmem:[%s224 + $0x18] sm:$0xff] %vm516, %v444
        %521 = vst.msk [vmem:[%s224 + $0x20] sm:$0xff] %vm516, %v447
        %522 = vst.msk [vmem:[%s224 + $0x28] sm:$0xff] %vm516, %v449
        %523 = vst.msk [vmem:[%s224 + $0x30] sm:$0xff] %vm516, %v452
        %524 = vst.msk [vmem:[%s224 + $0x38] sm:$0xff] %vm516, %v454
        %525 = vst.msk [vmem:[%s224 + $0x40] sm:$0xff] %vm516, %v457
        %526 = vst.msk [vmem:[%s224 + $0x48] sm:$0xff] %vm516, %v459
        %527 = vst.msk [vmem:[%s224 + $0x50] sm:$0xff] %vm516, %v462
        %528 = vst.msk [vmem:[%s224 + $0x58] sm:$0xff] %vm516, %v464
        %529 = vst.msk [vmem:[%s224 + $0x60] sm:$0xff] %vm516, %v467
        %530 = vst.msk [vmem:[%s224 + $0x68] sm:$0xff] %vm516, %v469
        %531 = vst.msk [vmem:[%s224 + $0x70] sm:$0xff] %vm516, %v472
        %532 = vst.msk [vmem:[%s224 + $0x78] sm:$0xff] %vm516, %v474
        %533 = vst.msk [vmem:[%s224 + $0x80] sm:$0xff] %vm516, %v477
        %534 = vst.msk [vmem:[%s224 + $0x88] sm:$0xff] %vm516, %v479
        %535 = vst.msk [vmem:[%s224 + $0x90] sm:$0xff] %vm516, %v482
        %536 = vst.msk [vmem:[%s224 + $0x98] sm:$0xff] %vm516, %v484
        %537 = vst.msk [vmem:[%s224 + $0xa0] sm:$0xff] %vm516, %v487
        %538 = vst.msk [vmem:[%s224 + $0xa8] sm:$0xff] %vm516, %v489
        %539 = vst.msk [vmem:[%s224 + $0xb0] sm:$0xff] %vm516, %v492
        %540 = vst.msk [vmem:[%s224 + $0xb8] sm:$0xff] %vm516, %v494
        %541 = vst.msk [vmem:[%s224 + $0xc0] sm:$0xff] %vm516, %v497
        %542 = vst.msk [vmem:[%s224 + $0xc8] sm:$0xff] %vm516, %v499
        %543 = vst.msk [vmem:[%s224 + $0xd0] sm:$0xff] %vm516, %v502
        %544 = vst.msk [vmem:[%s224 + $0xd8] sm:$0xff] %vm516, %v504
        %545 = vst.msk [vmem:[%s224 + $0xe0] sm:$0xff] %vm516, %v507
        %546 = vst.msk [vmem:[%s224 + $0xe8] sm:$0xff] %vm516, %v509
        %547 = vst.msk [vmem:[%s224 + $0xf0] sm:$0xff] %vm516, %v512
        %548 = vst.msk [vmem:[%s224 + $0xf8] sm:$0xff] %vm516, %v514
        %v549 = vmax.f32 %v437, 0.0
        %v550 = vmax.f32 %v439, 0.0
        %v551 = vmax.f32 %v442, 0.0
        %v552 = vmax.f32 %v444, 0.0
        %v553 = vmax.f32 %v447, 0.0
        %v554 = vmax.f32 %v449, 0.0
        %v555 = vmax.f32 %v452, 0.0
        %v556 = vmax.f32 %v454, 0.0
        %v557 = vmax.f32 %v457, 0.0
        %v558 = vmax.f32 %v459, 0.0
        %v559 = vmax.f32 %v462, 0.0
        %v560 = vmax.f32 %v464, 0.0
        %v561 = vmax.f32 %v467, 0.0
        %v562 = vmax.f32 %v469, 0.0
        %v563 = vmax.f32 %v472, 0.0
        %v564 = vmax.f32 %v474, 0.0
        %v565 = vmax.f32 %v477, 0.0
        %v566 = vmax.f32 %v479, 0.0
        %v567 = vmax.f32 %v482, 0.0
        %v568 = vmax.f32 %v484, 0.0
        %v569 = vmax.f32 %v487, 0.0
        %v570 = vmax.f32 %v489, 0.0
        %v571 = vmax.f32 %v492, 0.0
        %v572 = vmax.f32 %v494, 0.0
        %v573 = vmax.f32 %v497, 0.0
        %v574 = vmax.f32 %v499, 0.0
        %v575 = vmax.f32 %v502, 0.0
        %v576 = vmax.f32 %v504, 0.0
        %v577 = vmax.f32 %v507, 0.0
        %v578 = vmax.f32 %v509, 0.0
        %v579 = vmax.f32 %v512, 0.0
        %v580 = vmax.f32 %v514, 0.0
        %v581 = vpack.c.bf16 %v549, %v549
        %v582 = vpack.c.bf16 %v550, %v550
        %v583 = vpack.c.bf16 %v551, %v551
        %v584 = vpack.c.bf16 %v552, %v552
        %v585 = vpack.c.bf16 %v553, %v553
        %v586 = vpack.c.bf16 %v554, %v554
        %v587 = vpack.c.bf16 %v555, %v555
        %v588 = vpack.c.bf16 %v556, %v556
        %v589 = vpack.c.bf16 %v557, %v557
        %v590 = vpack.c.bf16 %v558, %v558
        %v591 = vpack.c.bf16 %v559, %v559
        %v592 = vpack.c.bf16 %v560, %v560
        %v593 = vpack.c.bf16 %v561, %v561
        %v594 = vpack.c.bf16 %v562, %v562
        %v595 = vpack.c.bf16 %v563, %v563
        %v596 = vpack.c.bf16 %v564, %v564
        %v597 = vpack.c.bf16 %v565, %v565
        %v598 = vpack.c.bf16 %v566, %v566
        %v599 = vpack.c.bf16 %v567, %v567
        %v600 = vpack.c.bf16 %v568, %v568
        %v601 = vpack.c.bf16 %v569, %v569
        %v602 = vpack.c.bf16 %v570, %v570
        %v603 = vpack.c.bf16 %v571, %v571
        %v604 = vpack.c.bf16 %v572, %v572
        %v605 = vpack.c.bf16 %v573, %v573
        %v606 = vpack.c.bf16 %v574, %v574
        %v607 = vpack.c.bf16 %v575, %v575
        %v608 = vpack.c.bf16 %v576, %v576
        %v609 = vpack.c.bf16 %v577, %v577
        %v610 = vpack.c.bf16 %v578, %v578
        %v611 = vpack.c.bf16 %v579, %v579
        %v612 = vpack.c.bf16 %v580, %v580
        %vm613 = vcmask 519168
        %614 = vst.msk [vmem:[%s243] sm:$0xf] %vm613, %v581
        %615 = vst.msk [vmem:[%s243 + $0x4] sm:$0xf] %vm613, %v582
        %616 = vst.msk [vmem:[%s243 + $0x8] sm:$0xf] %vm613, %v583
        %617 = vst.msk [vmem:[%s243 + $0xc] sm:$0xf] %vm613, %v584
        %618 = vst.msk [vmem:[%s243 + $0x10] sm:$0xf] %vm613, %v585
        %619 = vst.msk [vmem:[%s243 + $0x14] sm:$0xf] %vm613, %v586
        %620 = vst.msk [vmem:[%s243 + $0x18] sm:$0xf] %vm613, %v587
        %621 = vst.msk [vmem:[%s243 + $0x1c] sm:$0xf] %vm613, %v588
        %622 = vst.msk [vmem:[%s243 + $0x20] sm:$0xf] %vm613, %v589
        %623 = vst.msk [vmem:[%s243 + $0x24] sm:$0xf] %vm613, %v590
        %624 = vst.msk [vmem:[%s243 + $0x28] sm:$0xf] %vm613, %v591
        %625 = vst.msk [vmem:[%s243 + $0x2c] sm:$0xf] %vm613, %v592
        %626 = vst.msk [vmem:[%s243 + $0x30] sm:$0xf] %vm613, %v593
        %627 = vst.msk [vmem:[%s243 + $0x34] sm:$0xf] %vm613, %v594
        %628 = vst.msk [vmem:[%s243 + $0x38] sm:$0xf] %vm613, %v595
        %629 = vst.msk [vmem:[%s243 + $0x3c] sm:$0xf] %vm613, %v596
        %630 = vst.msk [vmem:[%s243 + $0x40] sm:$0xf] %vm613, %v597
        %631 = vst.msk [vmem:[%s243 + $0x44] sm:$0xf] %vm613, %v598
        %632 = vst.msk [vmem:[%s243 + $0x48] sm:$0xf] %vm613, %v599
        %633 = vst.msk [vmem:[%s243 + $0x4c] sm:$0xf] %vm613, %v600
        %634 = vst.msk [vmem:[%s243 + $0x50] sm:$0xf] %vm613, %v601
        %635 = vst.msk [vmem:[%s243 + $0x54] sm:$0xf] %vm613, %v602
        %636 = vst.msk [vmem:[%s243 + $0x58] sm:$0xf] %vm613, %v603
        %637 = vst.msk [vmem:[%s243 + $0x5c] sm:$0xf] %vm613, %v604
        %638 = vst.msk [vmem:[%s243 + $0x60] sm:$0xf] %vm613, %v605
        %639 = vst.msk [vmem:[%s243 + $0x64] sm:$0xf] %vm613, %v606
        %640 = vst.msk [vmem:[%s243 + $0x68] sm:$0xf] %vm613, %v607
        %641 = vst.msk [vmem:[%s243 + $0x6c] sm:$0xf] %vm613, %v608
        %642 = vst.msk [vmem:[%s243 + $0x70] sm:$0xf] %vm613, %v609
        %643 = vst.msk [vmem:[%s243 + $0x74] sm:$0xf] %vm613, %v610
        %644 = vst.msk [vmem:[%s243 + $0x78] sm:$0xf] %vm613, %v611
        %645 = vst.msk [vmem:[%s243 + $0x7c] sm:$0xf] %vm613, %v612
        %s646 = sand.u32 %s97, 1
        %s647 = scalar_lea.sflag [#allocation4], %s646
        %s648 = sand.u32 %s97, 1
        %s649 = smul.addr %s648, 256
        %s650 = scalar_lea.vmem [#allocation7], %s649
        %s651 = smul.u32 32, %s21
        %p652 = scmp.lt.s32.totalorder %s651, 63
        %s653 = scalar_select %p652, %s651, 63
        %s654 = smul.addr %s653, 4
        %s655 = scalar_lea.vmem %s4, %s654
        // Predicated region
        $region41: #{cropped_vgg19.4} parent=31 // pred_check
          %p656 = pneg %p107
        $region42: #{cropped_vgg19.4} parent=31 // pred_check_branch
          %658 = sbr.rel (%p656) target = $region44
        $region43: #{cropped_vgg19.4} parent=31 // pred_region
          %s659 = smul.u32 32, %s21
          %661 = vsyncadd %s647, 0
          %s662 = smul.addr %s659, 8
          %s663 = scalar_lea.hbm %s3, %s662
          %s664 = sshll.u32 %s650, 4
          %s665 = int_to_ptr.vmem [resolvable:$true] %s664
          %s666 = sshll.u32 %s663, 4
          %s667 = int_to_ptr.hbm [resolvable:$true] %s666
          %672 = dma.vmem_to_hbm [thread:$0]  %s665, 4096, %s667, %s647, 128, 128, 8
        $region44: #{cropped_vgg19.4} parent=31 // pred_fallthru
          _
        // Predicated region
        $region45: #{cropped_vgg19.4} parent=31 // pred_check
          %p673 = pneg %p133
        $region46: #{cropped_vgg19.4} parent=31 // pred_check_branch
          %675 = sbr.rel (%p673) target = $region48
        $region47: #{cropped_vgg19.4} parent=31 // pred_region
          %s676 = smul.u32 32, %s21
        $region48: #{cropped_vgg19.4} parent=31 // pred_fallthru
          _
      $region32: #{cropped_vgg19.4} parent=5 // pred_fallthru
        _
      %p677 = scmp.le.s32.totalorder 2, %s16
      // Predicated region
      $region49: #{cropped_vgg19.4} parent=5 // pred_check
        %p678 = pneg %p677
      $region50: #{cropped_vgg19.4} parent=5 // pred_check_branch
        %680 = sbr.rel (%p678) target = $region52
      $region51: #{cropped_vgg19.4} parent=5 // pred_region
        %s681 = ssub.s32 %s16, 2
        // Predicated region
        $region53: #{cropped_vgg19.4} parent=51 // pred_check
          %p682 = pneg %p113
        $region54: #{cropped_vgg19.4} parent=51 // pred_check_branch
          %684 = sbr.rel (%p682) target = $region56
        $region55: #{cropped_vgg19.4} parent=51 // pred_region
          %s685 = sand.u32 %s98, 1
          %s686 = scalar_lea.sflag [#allocation4], %s685
          %s687 = sand.u32 %s98, 1
          %s688 = smul.addr %s687, 256
          %s689 = scalar_lea.vmem [#allocation7], %s688
          %691 = dma.done %s686, 4096
        $region56: #{cropped_vgg19.4} parent=51 // pred_fallthru
          _
        // Predicated region
        $region57: #{cropped_vgg19.4} parent=51 // pred_check
          %p692 = pneg %p139
        $region58: #{cropped_vgg19.4} parent=51 // pred_check_branch
          %694 = sbr.rel (%p692) target = $region60
        $region59: #{cropped_vgg19.4} parent=51 // pred_region
          %s695 = smul.u32 32, %s22
          %p696 = scmp.lt.s32.totalorder %s695, 63
          %s697 = scalar_select %p696, %s695, 63
          %s698 = smul.addr %s697, 4
          %s699 = scalar_lea.vmem %s4, %s698
        $region60: #{cropped_vgg19.4} parent=51 // pred_fallthru
          _
      $region52: #{cropped_vgg19.4} parent=5 // pred_fallthru
        _
    $region6: #{cropped_vgg19.4} parent=1 // loop_footer
      %s20 = sadd.s32 1, %s16
    $region7: #{cropped_vgg19.4} parent=1 // loop_footer_branch
      %15 = sbr.rel target = $region3
    $region8: #{cropped_vgg19.4} parent=1 // loop_exit
      _
    %700 = vsyncpa [#allocation3], 1
    %s701 = scalar_lea.sflag [#allocation3], 1
    %702 = vsyncpa %s701, 1
    %703 = vsyncpa [#allocation6], 1
    %704 = vsyncpa [#allocation4], 1
    %s705 = scalar_lea.sflag [#allocation4], 1
    %706 = vsyncpa %s705, 1

// kernel: cropped_vgg19.5
$region0: #{cropped_vgg19.5}
  #allocation0 [shape = 'u32[]', space=smem, size = 0x4, offset = 0x4, fixed_abs, tag = 'smem constant byte address 0x4 - core index']
  #allocation1 [shape = 'u32[72,128]{1,0:T(1,128)}', space=vmem, size = 0x9000, scoped, tag = 'internal scratch']
  %s0 = inlined_call_operand.vmem [shape: bf16[512,576], index: 0, kind: input, shape index: {}]
  %s1 = inlined_call_operand.vmem [shape: bf16[576,64], index: 1, kind: input, shape index: {}]
  %s2 = inlined_call_operand.hbm [shape: f32[1,64], index: 2, kind: input, shape index: {}]
  %s3 = inlined_call_operand.vmem [shape: bf16[512,64], index: 3, kind: output, shape index: {}]
  %s4 = sld [smem:[#allocation0]]
  $region49: #{cropped_vgg19.5} parent=0
    _
  %s6 = ssub.s32 1, %s4
  %s7 = scalar_select 0, %s6, %s4
  $region1: #{cropped_vgg19.5} parent=0
    #allocation2 [shape = 'u8[512]{0}', space=vmem, size = 0x400, scoped, tag = 'input window, operand 2, single buffered']
    #allocation3 [shape = 's32[2]{0}', space=sflag, size = 0x8, scoped, tag = 'scoped memory for cropped_vgg19.5']
    %8 = vsyncpa [#allocation3], 0
    loop: start=0, step=1, limit=4
    $region2: #{cropped_vgg19.5} parent=1 // loop_pre_header
      _
    $region3: #{cropped_vgg19.5} parent=1 // loop_header
      %s10 = sphi 0, %s14
      %p11 = scmp.ge.s32.totalorder %s10, 4
      %s20 = sphi 0, %s22
      %s23 = sphi 0, %s20
      %s24 = sphi 0, %s23
      %s40 = sphi 0, %s24
      %s44 = sphi 0, %s44
      %s46 = sphi 0, %s44
      %s47 = sphi 0, %s46
      %s61 = sphi 0, %s47
      %s65 = sphi 0, %s65
      %s67 = sphi 0, %s65
      %s68 = sphi 0, %s67
      %s82 = sphi 0, %s68
      %s88 = sphi 0, %s90
      %s91 = sphi 0, %s88
      %s92 = sphi 0, %s91
      %s108 = sphi 0, %s92
    $region4: #{cropped_vgg19.5} parent=1 // loop_header_branch
      %13 = sbr.rel (%p11) target = $region8
    $region5: #{cropped_vgg19.5} parent=1 // loop_body
      %s15 = ssub.s32 %s10, 1
      %s16 = ssub.s32 %s10, 2
      %s17 = sadd.s32 %s10, 1
      %s18 = ssub.s32 %s10, %s17
      %p19 = scmp.eq.s32.totalorder %s18, 0
      %s21 = sadd.s32 %s20, 1
      %s22 = scalar_select %p19, %s20, %s21
      %p25 = pneg %p19
      %p26 = scmp.eq.s32.totalorder %s10, 1
      %p27 = por %p25, %p26
      %p28 = scmp.ne.s32.totalorder %s20, %s23
      %p29 = scmp.eq.s32.totalorder %s10, 0
      %p30 = por %p28, %p29
      %p31 = scmp.ne.s32.totalorder %s20, %s23
      %p32 = scmp.eq.s32.totalorder %s15, 1
      %p33 = por %p31, %p32
      %p34 = scmp.ne.s32.totalorder %s23, %s24
      %p35 = scmp.eq.s32.totalorder %s15, 0
      %p36 = por %p34, %p35
      %p37 = scmp.ne.s32.totalorder %s23, %s24
      %p38 = scmp.eq.s32.totalorder %s16, 1
      %p39 = por %p37, %p38
      %p41 = scmp.ne.s32.totalorder %s24, %s40
      %p42 = scmp.eq.s32.totalorder %s16, 0
      %p43 = por %p41, %p42
      %s45 = sadd.s32 %s44, 1
      %p48 = scmp.eq.s32.totalorder %s10, 1
      %p49 = scmp.ne.s32.totalorder %s44, %s46
      %p50 = scmp.eq.s32.totalorder %s10, 0
      %p51 = por %p49, %p50
      %p52 = scmp.ne.s32.totalorder %s44, %s46
      %p53 = scmp.eq.s32.totalorder %s15, 1
      %p54 = por %p52, %p53
      %p55 = scmp.ne.s32.totalorder %s46, %s47
      %p56 = scmp.eq.s32.totalorder %s15, 0
      %p57 = por %p55, %p56
      %p58 = scmp.ne.s32.totalorder %s46, %s47
      %p59 = scmp.eq.s32.totalorder %s16, 1
      %p60 = por %p58, %p59
      %p62 = scmp.ne.s32.totalorder %s47, %s61
      %p63 = scmp.eq.s32.totalorder %s16, 0
      %p64 = por %p62, %p63
      %s66 = sadd.s32 %s65, 1
      %p69 = scmp.eq.s32.totalorder %s10, 1
      %p70 = scmp.ne.s32.totalorder %s65, %s67
      %p71 = scmp.eq.s32.totalorder %s10, 0
      %p72 = por %p70, %p71
      %p73 = scmp.ne.s32.totalorder %s65, %s67
      %p74 = scmp.eq.s32.totalorder %s15, 1
      %p75 = por %p73, %p74
      %p76 = scmp.ne.s32.totalorder %s67, %s68
      %p77 = scmp.eq.s32.totalorder %s15, 0
      %p78 = por %p76, %p77
      %p79 = scmp.ne.s32.totalorder %s67, %s68
      %p80 = scmp.eq.s32.totalorder %s16, 1
      %p81 = por %p79, %p80
      %p83 = scmp.ne.s32.totalorder %s68, %s82
      %p84 = scmp.eq.s32.totalorder %s16, 0
      %p85 = por %p83, %p84
      %s86 = ssub.s32 %s10, %s17
      %p87 = scmp.eq.s32.totalorder %s86, 0
      %s89 = sadd.s32 %s88, 1
      %s90 = scalar_select %p87, %s88, %s89
      %p93 = pneg %p87
      %p94 = scmp.eq.s32.totalorder %s10, 1
      %p95 = por %p93, %p94
      %p96 = scmp.ne.s32.totalorder %s88, %s91
      %p97 = scmp.eq.s32.totalorder %s10, 0
      %p98 = por %p96, %p97
      %p99 = scmp.ne.s32.totalorder %s88, %s91
      %p100 = scmp.eq.s32.totalorder %s15, 1
      %p101 = por %p99, %p100
      %p102 = scmp.ne.s32.totalorder %s91, %s92
      %p103 = scmp.eq.s32.totalorder %s15, 0
      %p104 = por %p102, %p103
      %p105 = scmp.ne.s32.totalorder %s91, %s92
      %p106 = scmp.eq.s32.totalorder %s16, 1
      %p107 = por %p105, %p106
      %p109 = scmp.ne.s32.totalorder %s92, %s108
      %p110 = scmp.eq.s32.totalorder %s16, 0
      %p111 = por %p109, %p110
      %p112 = scmp.le.s32.totalorder 1, %s10
      %p113 = scmp.lt.s32.totalorder %s10, 3
      %p114 = pnand %p112, %p113
      %p115 = pneg %p114
      // Predicated region
      $region9: #{cropped_vgg19.5} parent=5 // pred_check
        _
      $region10: #{cropped_vgg19.5} parent=5 // pred_check_branch
        %117 = sbr.rel (%p114) target = $region12
      $region11: #{cropped_vgg19.5} parent=5 // pred_region
        %s118 = ssub.s32 %s10, 1
        // Predicated region
        $region13: #{cropped_vgg19.5} parent=11 // pred_check
          %p119 = pneg %p57
        $region14: #{cropped_vgg19.5} parent=11 // pred_check_branch
          %121 = sbr.rel (%p119) target = $region16
        $region15: #{cropped_vgg19.5} parent=11 // pred_region
          _
        $region16: #{cropped_vgg19.5} parent=11 // pred_fallthru
          _
        // Predicated region
        $region17: #{cropped_vgg19.5} parent=11 // pred_check
          %p122 = pneg %p78
        $region18: #{cropped_vgg19.5} parent=11 // pred_check_branch
          %124 = sbr.rel (%p122) target = $region20
        $region19: #{cropped_vgg19.5} parent=11 // pred_region
          %126 = vsyncadd [#allocation3], 0
          %s128 = sshll.u32 %s2, 4
          %s129 = int_to_ptr.hbm [resolvable:$true] %s128
          %s130 = sshll.u32 [#allocation2], 4
          %s131 = int_to_ptr.vmem [resolvable:$true] %s130
          %133 = dma.hbm_to_vmem [thread:$0]  %s129, 16, %s131, [#allocation3]
        $region20: #{cropped_vgg19.5} parent=11 // pred_fallthru
          _
      $region12: #{cropped_vgg19.5} parent=5 // pred_fallthru
        _
      %p134 = scmp.lt.s32.totalorder %s10, 2
      // Predicated region
      $region21: #{cropped_vgg19.5} parent=5 // pred_check
        %p135 = pneg %p134
      $region22: #{cropped_vgg19.5} parent=5 // pred_check_branch
        %137 = sbr.rel (%p135) target = $region24
      $region23: #{cropped_vgg19.5} parent=5 // pred_region
        // Predicated region
        $region25: #{cropped_vgg19.5} parent=23 // pred_check
          %p138 = pneg %p30
        $region26: #{cropped_vgg19.5} parent=23 // pred_check_branch
          %140 = sbr.rel (%p138) target = $region28
        $region27: #{cropped_vgg19.5} parent=23 // pred_region
          %s141 = smul.u32 32, %s10
          %p142 = scmp.lt.s32.totalorder %s141, 63
          %s143 = scalar_select %p142, %s141, 63
          %s144 = smul.addr %s143, 5
          %s145 = smul.addr %s144, 4
          %s146 = scalar_lea.vmem %s0, %s145
          %s147 = smul.u32 32, %s10
        $region28: #{cropped_vgg19.5} parent=23 // pred_fallthru
          _
      $region24: #{cropped_vgg19.5} parent=5 // pred_fallthru
        _
      %p148 = scmp.le.s32.totalorder 1, %s10
      %p149 = scmp.lt.s32.totalorder %s10, 3
      %p150 = pnand %p148, %p149
      %p151 = pneg %p150
      // Predicated region
      $region29: #{cropped_vgg19.5} parent=5 // pred_check
        _
      $region30: #{cropped_vgg19.5} parent=5 // pred_check_branch
        %153 = sbr.rel (%p150) target = $region32
      $region31: #{cropped_vgg19.5} parent=5 // pred_region
        %s154 = ssub.s32 %s10, 1
        // Predicated region
        $region33: #{cropped_vgg19.5} parent=31 // pred_check
          %p155 = pneg %p78
        $region34: #{cropped_vgg19.5} parent=31 // pred_check_branch
          %157 = sbr.rel (%p155) target = $region36
        $region35: #{cropped_vgg19.5} parent=31 // pred_region
          %159 = dma.done [#allocation3], 16
        $region36: #{cropped_vgg19.5} parent=31 // pred_fallthru
          _
        %s160 = smul.u32 32, %s15
        %p161 = scmp.lt.s32.totalorder %s160, 63
        %s162 = scalar_select %p161, %s160, 63
        %s163 = smul.addr %s162, 5
        %s164 = smul.addr %s163, 4
        %s165 = scalar_lea.vmem %s0, %s164
        %p166 = pneg %p36
        %p167 = pneg %p33
        %p168 = pneg %p57
        %p169 = pneg %p54
        %p170 = pneg %p78
        %p171 = pneg %p75
        %p172 = pneg %p104
        %p173 = pneg %p101
        %s174 = smul.u32 32, %s15
        %p175 = scmp.lt.s32.totalorder %s174, 63
        %s176 = scalar_select %p175, %s174, 63
        %s177 = smul.addr %s176, 4
        %s178 = scalar_lea.vmem %s3, %s177
        %s179 = smul.u32 32, %s15
        %p180 = scmp.lt.s32.totalorder %s179, 63
        %s181 = scalar_select %p180, %s179, 63
        %s182 = smul.addr %s181, 5
        %s183 = smul.addr %s182, 4
        %s184 = scalar_lea.vmem %s0, %s183
        %s185 = smul.u32 32, %s15
        %s186 = smul.u32 32, %s15
        %p187 = scmp.lt.s32.totalorder %s186, 63
        %s188 = scalar_select %p187, %s186, 63
        %s189 = smul.addr %s188, 4
        %s190 = scalar_lea.vmem %s3, %s189
        %s191 = smul.u32 32, %s15
        %v193 = vld [vmem:[%s184] sm:$0xff]
        %v194 = vld [vmem:[%s184 + $0x8] sm:$0xff]
        %v195 = vld [vmem:[%s184 + $0x10] sm:$0xf]
        %v196 = vld [vmem:[%s184 + $0x14] sm:$0xff]
        %v197 = vld [vmem:[%s184 + $0x1c] sm:$0xff]
        %v198 = vld [vmem:[%s184 + $0x24] sm:$0xf]
        %v199 = vld [vmem:[%s184 + $0x28] sm:$0xff]
        %v200 = vld [vmem:[%s184 + $0x30] sm:$0xff]
        %v201 = vld [vmem:[%s184 + $0x38] sm:$0xf]
        %v202 = vld [vmem:[%s184 + $0x3c] sm:$0xff]
        %v203 = vld [vmem:[%s184 + $0x44] sm:$0xff]
        %v204 = vld [vmem:[%s184 + $0x4c] sm:$0xf]
        %v205 = vld [vmem:[%s184 + $0x50] sm:$0xff]
        %v206 = vld [vmem:[%s184 + $0x58] sm:$0xff]
        %v207 = vld [vmem:[%s184 + $0x60] sm:$0xf]
        %v208 = vld [vmem:[%s184 + $0x64] sm:$0xff]
        %v209 = vld [vmem:[%s184 + $0x6c] sm:$0xff]
        %v210 = vld [vmem:[%s184 + $0x74] sm:$0xf]
        %v211 = vld [vmem:[%s184 + $0x78] sm:$0xff]
        %v212 = vld [vmem:[%s184 + $0x80] sm:$0xff]
        %v213 = vld [vmem:[%s184 + $0x88] sm:$0xf]
        %v214 = vld [vmem:[%s184 + $0x8c] sm:$0xff]
        %v215 = vld [vmem:[%s184 + $0x94] sm:$0xff]
        %v216 = vld [vmem:[%s184 + $0x9c] sm:$0xf]
        %v217 = vld [vmem:[%s184 + $0xa0] sm:$0xff]
        %v218 = vld [vmem:[%s184 + $0xa8] sm:$0xff]
        %v219 = vld [vmem:[%s184 + $0xb0] sm:$0xf]
        %v220 = vld [vmem:[%s184 + $0xb4] sm:$0xff]
        %v221 = vld [vmem:[%s184 + $0xbc] sm:$0xff]
        %v222 = vld [vmem:[%s184 + $0xc4] sm:$0xf]
        %v223 = vld [vmem:[%s184 + $0xc8] sm:$0xff]
        %v224 = vld [vmem:[%s184 + $0xd0] sm:$0xff]
        %v225 = vld [vmem:[%s184 + $0xd8] sm:$0xf]
        %v226 = vld [vmem:[%s184 + $0xdc] sm:$0xff]
        %v227 = vld [vmem:[%s184 + $0xe4] sm:$0xff]
        %v228 = vld [vmem:[%s184 + $0xec] sm:$0xf]
        %v229 = vld [vmem:[%s184 + $0xf0] sm:$0xff]
        %v230 = vld [vmem:[%s184 + $0xf8] sm:$0xff]
        %v231 = vld [vmem:[%s184 + $0x100] sm:$0xf]
        %v232 = vld [vmem:[%s184 + $0x104] sm:$0xff]
        %v233 = vld [vmem:[%s184 + $0x10c] sm:$0xff]
        %v234 = vld [vmem:[%s184 + $0x114] sm:$0xf]
        %v235 = vld [vmem:[%s184 + $0x118] sm:$0xff]
        %v236 = vld [vmem:[%s184 + $0x120] sm:$0xff]
        %v237 = vld [vmem:[%s184 + $0x128] sm:$0xf]
        %v238 = vld [vmem:[%s184 + $0x12c] sm:$0xff]
        %v239 = vld [vmem:[%s184 + $0x134] sm:$0xff]
        %v240 = vld [vmem:[%s184 + $0x13c] sm:$0xf]
        %v241 = vld [vmem:[%s184 + $0x140] sm:$0xff]
        %v242 = vld [vmem:[%s184 + $0x148] sm:$0xff]
        %v243 = vld [vmem:[%s184 + $0x150] sm:$0xf]
        %v244 = vld [vmem:[%s184 + $0x154] sm:$0xff]
        %v245 = vld [vmem:[%s184 + $0x15c] sm:$0xff]
        %v246 = vld [vmem:[%s184 + $0x164] sm:$0xf]
        %v247 = vld [vmem:[%s184 + $0x168] sm:$0xff]
        %v248 = vld [vmem:[%s184 + $0x170] sm:$0xff]
        %v249 = vld [vmem:[%s184 + $0x178] sm:$0xf]
        %v250 = vld [vmem:[%s184 + $0x17c] sm:$0xff]
        %v251 = vld [vmem:[%s184 + $0x184] sm:$0xff]
        %v252 = vld [vmem:[%s184 + $0x18c] sm:$0xf]
        %v253 = vld [vmem:[%s184 + $0x190] sm:$0xff]
        %v254 = vld [vmem:[%s184 + $0x198] sm:$0xff]
        %v255 = vld [vmem:[%s184 + $0x1a0] sm:$0xf]
        %v256 = vld [vmem:[%s184 + $0x1a4] sm:$0xff]
        %v257 = vld [vmem:[%s184 + $0x1ac] sm:$0xff]
        %v258 = vld [vmem:[%s184 + $0x1b4] sm:$0xf]
        %v259 = vld [vmem:[%s184 + $0x1b8] sm:$0xff]
        %v260 = vld [vmem:[%s184 + $0x1c0] sm:$0xff]
        %v261 = vld [vmem:[%s184 + $0x1c8] sm:$0xf]
        %v262 = vld [vmem:[%s184 + $0x1cc] sm:$0xff]
        %v263 = vld [vmem:[%s184 + $0x1d4] sm:$0xff]
        %v264 = vld [vmem:[%s184 + $0x1dc] sm:$0xf]
        %v265 = vld [vmem:[%s184 + $0x1e0] sm:$0xff]
        %v266 = vld [vmem:[%s184 + $0x1e8] sm:$0xff]
        %v267 = vld [vmem:[%s184 + $0x1f0] sm:$0xf]
        %v268 = vld [vmem:[%s184 + $0x1f4] sm:$0xff]
        %v269 = vld [vmem:[%s184 + $0x1fc] sm:$0xff]
        %v270 = vld [vmem:[%s184 + $0x204] sm:$0xf]
        %v271 = vld [vmem:[%s184 + $0x208] sm:$0xff]
        %v272 = vld [vmem:[%s184 + $0x210] sm:$0xff]
        %v273 = vld [vmem:[%s184 + $0x218] sm:$0xf]
        %v274 = vld [vmem:[%s184 + $0x21c] sm:$0xff]
        %v275 = vld [vmem:[%s184 + $0x224] sm:$0xff]
        %v276 = vld [vmem:[%s184 + $0x22c] sm:$0xf]
        %v277 = vld [vmem:[%s184 + $0x230] sm:$0xff]
        %v278 = vld [vmem:[%s184 + $0x238] sm:$0xff]
        %v279 = vld [vmem:[%s184 + $0x240] sm:$0xf]
        %v280 = vld [vmem:[%s184 + $0x244] sm:$0xff]
        %v281 = vld [vmem:[%s184 + $0x24c] sm:$0xff]
        %v282 = vld [vmem:[%s184 + $0x254] sm:$0xf]
        %v283 = vld [vmem:[%s184 + $0x258] sm:$0xff]
        %v284 = vld [vmem:[%s184 + $0x260] sm:$0xff]
        %v285 = vld [vmem:[%s184 + $0x268] sm:$0xf]
        %v286 = vld [vmem:[%s184 + $0x26c] sm:$0xff]
        %v287 = vld [vmem:[%s184 + $0x274] sm:$0xff]
        %v288 = vld [vmem:[%s184 + $0x27c] sm:$0xf]
        %v289 = vld [vmem:[%s1] sm:$0xf]
        %v290 = vld [vmem:[%s1 + $0x4] sm:$0xf]
        %v291 = vld [vmem:[%s1 + $0x8] sm:$0xf]
        %v292 = vld [vmem:[%s1 + $0xc] sm:$0xf]
        %v293 = vld [vmem:[%s1 + $0x10] sm:$0xf]
        %v294 = vld [vmem:[%s1 + $0x14] sm:$0xf]
        %v295 = vld [vmem:[%s1 + $0x18] sm:$0xf]
        %v296 = vld [vmem:[%s1 + $0x1c] sm:$0xf]
        %v297 = vld [vmem:[%s1 + $0x20] sm:$0xf]
        %v298 = vld [vmem:[%s1 + $0x24] sm:$0xf]
        %v299 = vld [vmem:[%s1 + $0x28] sm:$0xf]
        %v300 = vld [vmem:[%s1 + $0x2c] sm:$0xf]
        %v301 = vld [vmem:[%s1 + $0x30] sm:$0xf]
        %v302 = vld [vmem:[%s1 + $0x34] sm:$0xf]
        %v303 = vld [vmem:[%s1 + $0x38] sm:$0xf]
        %v304 = vld [vmem:[%s1 + $0x3c] sm:$0xf]
        %v305 = vld [vmem:[%s1 + $0x40] sm:$0xf]
        %v306 = vld [vmem:[%s1 + $0x44] sm:$0xf]
        %v307 = vld [vmem:[%s1 + $0x48] sm:$0xf]
        %v308 = vld [vmem:[%s1 + $0x4c] sm:$0xf]
        %v309 = vld [vmem:[%s1 + $0x50] sm:$0xf]
        %v310 = vld [vmem:[%s1 + $0x54] sm:$0xf]
        %v311 = vld [vmem:[%s1 + $0x58] sm:$0xf]
        %v312 = vld [vmem:[%s1 + $0x5c] sm:$0xf]
        %v313 = vld [vmem:[%s1 + $0x60] sm:$0xf]
        %v314 = vld [vmem:[%s1 + $0x64] sm:$0xf]
        %v315 = vld [vmem:[%s1 + $0x68] sm:$0xf]
        %v316 = vld [vmem:[%s1 + $0x6c] sm:$0xf]
        %v317 = vld [vmem:[%s1 + $0x70] sm:$0xf]
        %v318 = vld [vmem:[%s1 + $0x74] sm:$0xf]
        %v319 = vld [vmem:[%s1 + $0x78] sm:$0xf]
        %v320 = vld [vmem:[%s1 + $0x7c] sm:$0xf]
        %v321 = vld [vmem:[%s1 + $0x80] sm:$0xf]
        %v322 = vld [vmem:[%s1 + $0x84] sm:$0xf]
        %v323 = vld [vmem:[%s1 + $0x88] sm:$0xf]
        %v324 = vld [vmem:[%s1 + $0x8c] sm:$0xf]
        %v325 = vld [vmem:[%s1 + $0x90] sm:$0xf]
        %v326 = vld [vmem:[%s1 + $0x94] sm:$0xf]
        %v327 = vld [vmem:[%s1 + $0x98] sm:$0xf]
        %v328 = vld [vmem:[%s1 + $0x9c] sm:$0xf]
        %v329 = vld [vmem:[%s1 + $0xa0] sm:$0xf]
        %v330 = vld [vmem:[%s1 + $0xa4] sm:$0xf]
        %v331 = vld [vmem:[%s1 + $0xa8] sm:$0xf]
        %v332 = vld [vmem:[%s1 + $0xac] sm:$0xf]
        %v333 = vld [vmem:[%s1 + $0xb0] sm:$0xf]
        %v334 = vld [vmem:[%s1 + $0xb4] sm:$0xf]
        %v335 = vld [vmem:[%s1 + $0xb8] sm:$0xf]
        %v336 = vld [vmem:[%s1 + $0xbc] sm:$0xf]
        %v337 = vld [vmem:[%s1 + $0xc0] sm:$0xf]
        %v338 = vld [vmem:[%s1 + $0xc4] sm:$0xf]
        %v339 = vld [vmem:[%s1 + $0xc8] sm:$0xf]
        %v340 = vld [vmem:[%s1 + $0xcc] sm:$0xf]
        %v341 = vld [vmem:[%s1 + $0xd0] sm:$0xf]
        %v342 = vld [vmem:[%s1 + $0xd4] sm:$0xf]
        %v343 = vld [vmem:[%s1 + $0xd8] sm:$0xf]
        %v344 = vld [vmem:[%s1 + $0xdc] sm:$0xf]
        %v345 = vld [vmem:[%s1 + $0xe0] sm:$0xf]
        %v346 = vld [vmem:[%s1 + $0xe4] sm:$0xf]
        %v347 = vld [vmem:[%s1 + $0xe8] sm:$0xf]
        %v348 = vld [vmem:[%s1 + $0xec] sm:$0xf]
        %v349 = vld [vmem:[%s1 + $0xf0] sm:$0xf]
        %v350 = vld [vmem:[%s1 + $0xf4] sm:$0xf]
        %v351 = vld [vmem:[%s1 + $0xf8] sm:$0xf]
        %v352 = vld [vmem:[%s1 + $0xfc] sm:$0xf]
        %v353 = vld [vmem:[%s1 + $0x100] sm:$0xf]
        %v354 = vld [vmem:[%s1 + $0x104] sm:$0xf]
        %v355 = vld [vmem:[%s1 + $0x108] sm:$0xf]
        %v356 = vld [vmem:[%s1 + $0x10c] sm:$0xf]
        %v357 = vld [vmem:[%s1 + $0x110] sm:$0xf]
        %v358 = vld [vmem:[%s1 + $0x114] sm:$0xf]
        %v359 = vld [vmem:[%s1 + $0x118] sm:$0xf]
        %v360 = vld [vmem:[%s1 + $0x11c] sm:$0xf]
        %v361 = vld [vmem:[#allocation2] sm:$0x1]
        %v363 = vperm.slane %v361, 0
        %v461 = vunpack.c.l.b16 %v193
        %v462 = vunpack.c.h.b16 %v193
        %v463 = vunpack.c.l.b16 %v194
        %v464 = vunpack.c.h.b16 %v194
        %v465 = vunpack.c.l.b16 %v195
        %v466 = vunpack.c.l.b16 %v196
        %v467 = vunpack.c.h.b16 %v196
        %v468 = vunpack.c.l.b16 %v197
        %v469 = vunpack.c.h.b16 %v197
        %v470 = vunpack.c.l.b16 %v198
        %v471 = vunpack.c.l.b16 %v199
        %v472 = vunpack.c.h.b16 %v199
        %v473 = vunpack.c.l.b16 %v200
        %v474 = vunpack.c.h.b16 %v200
        %v475 = vunpack.c.l.b16 %v201
        %v476 = vunpack.c.l.b16 %v202
        %v477 = vunpack.c.h.b16 %v202
        %v478 = vunpack.c.l.b16 %v203
        %v479 = vunpack.c.h.b16 %v203
        %v480 = vunpack.c.l.b16 %v204
        %v481 = vunpack.c.l.b16 %v205
        %v482 = vunpack.c.h.b16 %v205
        %v483 = vunpack.c.l.b16 %v206
        %v484 = vunpack.c.h.b16 %v206
        %v485 = vunpack.c.l.b16 %v207
        %v486 = vunpack.c.l.b16 %v208
        %v487 = vunpack.c.h.b16 %v208
        %v488 = vunpack.c.l.b16 %v209
        %v489 = vunpack.c.h.b16 %v209
        %v490 = vunpack.c.l.b16 %v210
        %v491 = vunpack.c.l.b16 %v211
        %v492 = vunpack.c.h.b16 %v211
        %v493 = vunpack.c.l.b16 %v212
        %v494 = vunpack.c.h.b16 %v212
        %v495 = vunpack.c.l.b16 %v213
        %v496 = vunpack.c.l.b16 %v214
        %v497 = vunpack.c.h.b16 %v214
        %v498 = vunpack.c.l.b16 %v215
        %v499 = vunpack.c.h.b16 %v215
        %v500 = vunpack.c.l.b16 %v216
        %v501 = vunpack.c.l.b16 %v217
        %v502 = vunpack.c.h.b16 %v217
        %v503 = vunpack.c.l.b16 %v218
        %v504 = vunpack.c.h.b16 %v218
        %v505 = vunpack.c.l.b16 %v219
        %v506 = vunpack.c.l.b16 %v220
        %v507 = vunpack.c.h.b16 %v220
        %v508 = vunpack.c.l.b16 %v221
        %v509 = vunpack.c.h.b16 %v221
        %v510 = vunpack.c.l.b16 %v222
        %v511 = vunpack.c.l.b16 %v223
        %v512 = vunpack.c.h.b16 %v223
        %v513 = vunpack.c.l.b16 %v224
        %v514 = vunpack.c.h.b16 %v224
        %v515 = vunpack.c.l.b16 %v225
        %v516 = vunpack.c.l.b16 %v226
        %v517 = vunpack.c.h.b16 %v226
        %v518 = vunpack.c.l.b16 %v227
        %v519 = vunpack.c.h.b16 %v227
        %v520 = vunpack.c.l.b16 %v228
        %v521 = vunpack.c.l.b16 %v229
        %v522 = vunpack.c.h.b16 %v229
        %v523 = vunpack.c.l.b16 %v230
        %v524 = vunpack.c.h.b16 %v230
        %v525 = vunpack.c.l.b16 %v231
        %v526 = vunpack.c.l.b16 %v232
        %v527 = vunpack.c.h.b16 %v232
        %v528 = vunpack.c.l.b16 %v233
        %v529 = vunpack.c.h.b16 %v233
        %v530 = vunpack.c.l.b16 %v234
        %v531 = vunpack.c.l.b16 %v235
        %v532 = vunpack.c.h.b16 %v235
        %v533 = vunpack.c.l.b16 %v236
        %v534 = vunpack.c.h.b16 %v236
        %v535 = vunpack.c.l.b16 %v237
        %v536 = vunpack.c.l.b16 %v238
        %v537 = vunpack.c.h.b16 %v238
        %v538 = vunpack.c.l.b16 %v239
        %v539 = vunpack.c.h.b16 %v239
        %v540 = vunpack.c.l.b16 %v240
        %v541 = vunpack.c.l.b16 %v241
        %v542 = vunpack.c.h.b16 %v241
        %v543 = vunpack.c.l.b16 %v242
        %v544 = vunpack.c.h.b16 %v242
        %v545 = vunpack.c.l.b16 %v243
        %v546 = vunpack.c.l.b16 %v244
        %v547 = vunpack.c.h.b16 %v244
        %v548 = vunpack.c.l.b16 %v245
        %v549 = vunpack.c.h.b16 %v245
        %v550 = vunpack.c.l.b16 %v246
        %v551 = vunpack.c.l.b16 %v247
        %v552 = vunpack.c.h.b16 %v247
        %v553 = vunpack.c.l.b16 %v248
        %v554 = vunpack.c.h.b16 %v248
        %v555 = vunpack.c.l.b16 %v249
        %v556 = vunpack.c.l.b16 %v250
        %v557 = vunpack.c.h.b16 %v250
        %v558 = vunpack.c.l.b16 %v251
        %v559 = vunpack.c.h.b16 %v251
        %v560 = vunpack.c.l.b16 %v252
        %v561 = vunpack.c.l.b16 %v253
        %v562 = vunpack.c.h.b16 %v253
        %v563 = vunpack.c.l.b16 %v254
        %v564 = vunpack.c.h.b16 %v254
        %v565 = vunpack.c.l.b16 %v255
        %v566 = vunpack.c.l.b16 %v256
        %v567 = vunpack.c.h.b16 %v256
        %v568 = vunpack.c.l.b16 %v257
        %v569 = vunpack.c.h.b16 %v257
        %v570 = vunpack.c.l.b16 %v258
        %v571 = vunpack.c.l.b16 %v259
        %v572 = vunpack.c.h.b16 %v259
        %v573 = vunpack.c.l.b16 %v260
        %v574 = vunpack.c.h.b16 %v260
        %v575 = vunpack.c.l.b16 %v261
        %v576 = vunpack.c.l.b16 %v262
        %v577 = vunpack.c.h.b16 %v262
        %v578 = vunpack.c.l.b16 %v263
        %v579 = vunpack.c.h.b16 %v263
        %v580 = vunpack.c.l.b16 %v264
        %v581 = vunpack.c.l.b16 %v265
        %v582 = vunpack.c.h.b16 %v265
        %v583 = vunpack.c.l.b16 %v266
        %v584 = vunpack.c.h.b16 %v266
        %v585 = vunpack.c.l.b16 %v267
        %v586 = vunpack.c.l.b16 %v268
        %v587 = vunpack.c.h.b16 %v268
        %v588 = vunpack.c.l.b16 %v269
        %v589 = vunpack.c.h.b16 %v269
        %v590 = vunpack.c.l.b16 %v270
        %v591 = vunpack.c.l.b16 %v271
        %v592 = vunpack.c.h.b16 %v271
        %v593 = vunpack.c.l.b16 %v272
        %v594 = vunpack.c.h.b16 %v272
        %v595 = vunpack.c.l.b16 %v273
        %v596 = vunpack.c.l.b16 %v274
        %v597 = vunpack.c.h.b16 %v274
        %v598 = vunpack.c.l.b16 %v275
        %v599 = vunpack.c.h.b16 %v275
        %v600 = vunpack.c.l.b16 %v276
        %v601 = vunpack.c.l.b16 %v277
        %v602 = vunpack.c.h.b16 %v277
        %v603 = vunpack.c.l.b16 %v278
        %v604 = vunpack.c.h.b16 %v278
        %v605 = vunpack.c.l.b16 %v279
        %v606 = vunpack.c.l.b16 %v280
        %v607 = vunpack.c.h.b16 %v280
        %v608 = vunpack.c.l.b16 %v281
        %v609 = vunpack.c.h.b16 %v281
        %v610 = vunpack.c.l.b16 %v282
        %v611 = vunpack.c.l.b16 %v283
        %v612 = vunpack.c.h.b16 %v283
        %v613 = vunpack.c.l.b16 %v284
        %v614 = vunpack.c.h.b16 %v284
        %v615 = vunpack.c.l.b16 %v285
        %v616 = vunpack.c.l.b16 %v286
        %v617 = vunpack.c.h.b16 %v286
        %v618 = vunpack.c.l.b16 %v287
        %v619 = vunpack.c.h.b16 %v287
        %v620 = vunpack.c.l.b16 %v288
        %v621 = vpack.c.b16 %v466, %v461
        %v622 = vpack.c.b16 %v467, %v462
        %v623 = vpack.c.b16 %v468, %v463
        %v624 = vpack.c.b16 %v469, %v464
        %v625 = vpack.c.b16 %v470, %v465
        %v626 = vpack.c.b16 %v476, %v471
        %v627 = vpack.c.b16 %v477, %v472
        %v628 = vpack.c.b16 %v478, %v473
        %v629 = vpack.c.b16 %v479, %v474
        %v630 = vpack.c.b16 %v480, %v475
        %v631 = vpack.c.b16 %v486, %v481
        %v632 = vpack.c.b16 %v487, %v482
        %v633 = vpack.c.b16 %v488, %v483
        %v634 = vpack.c.b16 %v489, %v484
        %v635 = vpack.c.b16 %v490, %v485
        %v636 = vpack.c.b16 %v496, %v491
        %v637 = vpack.c.b16 %v497, %v492
        %v638 = vpack.c.b16 %v498, %v493
        %v639 = vpack.c.b16 %v499, %v494
        %v640 = vpack.c.b16 %v500, %v495
        %v641 = vpack.c.b16 %v506, %v501
        %v642 = vpack.c.b16 %v507, %v502
        %v643 = vpack.c.b16 %v508, %v503
        %v644 = vpack.c.b16 %v509, %v504
        %v645 = vpack.c.b16 %v510, %v505
        %v646 = vpack.c.b16 %v516, %v511
        %v647 = vpack.c.b16 %v517, %v512
        %v648 = vpack.c.b16 %v518, %v513
        %v649 = vpack.c.b16 %v519, %v514
        %v650 = vpack.c.b16 %v520, %v515
        %v651 = vpack.c.b16 %v526, %v521
        %v652 = vpack.c.b16 %v527, %v522
        %v653 = vpack.c.b16 %v528, %v523
        %v654 = vpack.c.b16 %v529, %v524
        %v655 = vpack.c.b16 %v530, %v525
        %v656 = vpack.c.b16 %v536, %v531
        %v657 = vpack.c.b16 %v537, %v532
        %v658 = vpack.c.b16 %v538, %v533
        %v659 = vpack.c.b16 %v539, %v534
        %v660 = vpack.c.b16 %v540, %v535
        %v661 = vpack.c.b16 %v546, %v541
        %v662 = vpack.c.b16 %v547, %v542
        %v663 = vpack.c.b16 %v548, %v543
        %v664 = vpack.c.b16 %v549, %v544
        %v665 = vpack.c.b16 %v550, %v545
        %v666 = vpack.c.b16 %v556, %v551
        %v667 = vpack.c.b16 %v557, %v552
        %v668 = vpack.c.b16 %v558, %v553
        %v669 = vpack.c.b16 %v559, %v554
        %v670 = vpack.c.b16 %v560, %v555
        %v671 = vpack.c.b16 %v566, %v561
        %v672 = vpack.c.b16 %v567, %v562
        %v673 = vpack.c.b16 %v568, %v563
        %v674 = vpack.c.b16 %v569, %v564
        %v675 = vpack.c.b16 %v570, %v565
        %v676 = vpack.c.b16 %v576, %v571
        %v677 = vpack.c.b16 %v577, %v572
        %v678 = vpack.c.b16 %v578, %v573
        %v679 = vpack.c.b16 %v579, %v574
        %v680 = vpack.c.b16 %v580, %v575
        %v681 = vpack.c.b16 %v586, %v581
        %v682 = vpack.c.b16 %v587, %v582
        %v683 = vpack.c.b16 %v588, %v583
        %v684 = vpack.c.b16 %v589, %v584
        %v685 = vpack.c.b16 %v590, %v585
        %v686 = vpack.c.b16 %v596, %v591
        %v687 = vpack.c.b16 %v597, %v592
        %v688 = vpack.c.b16 %v598, %v593
        %v689 = vpack.c.b16 %v599, %v594
        %v690 = vpack.c.b16 %v600, %v595
        %v691 = vpack.c.b16 %v606, %v601
        %v692 = vpack.c.b16 %v607, %v602
        %v693 = vpack.c.b16 %v608, %v603
        %v694 = vpack.c.b16 %v609, %v604
        %v695 = vpack.c.b16 %v610, %v605
        %v696 = vpack.c.b16 %v616, %v611
        %v697 = vpack.c.b16 %v617, %v612
        %v698 = vpack.c.b16 %v618, %v613
        %v699 = vpack.c.b16 %v619, %v614
        %v700 = vpack.c.b16 %v620, %v615
        %v837 = vunpack.c.l.b16 %v289
        %v838 = vunpack.c.l.b16 %v290
        %v839 = vunpack.c.l.b16 %v291
        %v840 = vunpack.c.l.b16 %v292
        %v841 = vunpack.c.l.b16 %v293
        %v842 = vunpack.c.l.b16 %v294
        %v843 = vunpack.c.l.b16 %v295
        %v844 = vunpack.c.l.b16 %v296
        %v845 = vunpack.c.l.b16 %v297
        %v846 = vunpack.c.l.b16 %v298
        %v847 = vunpack.c.l.b16 %v299
        %v848 = vunpack.c.l.b16 %v300
        %v849 = vunpack.c.l.b16 %v301
        %v850 = vunpack.c.l.b16 %v302
        %v851 = vunpack.c.l.b16 %v303
        %v852 = vunpack.c.l.b16 %v304
        %v853 = vunpack.c.l.b16 %v305
        %v854 = vunpack.c.l.b16 %v306
        %v855 = vunpack.c.l.b16 %v307
        %v856 = vunpack.c.l.b16 %v308
        %v857 = vunpack.c.l.b16 %v309
        %v858 = vunpack.c.l.b16 %v310
        %v859 = vunpack.c.l.b16 %v311
        %v860 = vunpack.c.l.b16 %v312
        %v861 = vunpack.c.l.b16 %v313
        %v862 = vunpack.c.l.b16 %v314
        %v863 = vunpack.c.l.b16 %v315
        %v864 = vunpack.c.l.b16 %v316
        %v865 = vunpack.c.l.b16 %v317
        %v866 = vunpack.c.l.b16 %v318
        %v867 = vunpack.c.l.b16 %v319
        %v868 = vunpack.c.l.b16 %v320
        %v869 = vunpack.c.l.b16 %v321
        %v870 = vunpack.c.l.b16 %v322
        %v871 = vunpack.c.l.b16 %v323
        %v872 = vunpack.c.l.b16 %v324
        %v873 = vunpack.c.l.b16 %v325
        %v874 = vunpack.c.l.b16 %v326
        %v875 = vunpack.c.l.b16 %v327
        %v876 = vunpack.c.l.b16 %v328
        %v877 = vunpack.c.l.b16 %v329
        %v878 = vunpack.c.l.b16 %v330
        %v879 = vunpack.c.l.b16 %v331
        %v880 = vunpack.c.l.b16 %v332
        %v881 = vunpack.c.l.b16 %v333
        %v882 = vunpack.c.l.b16 %v334
        %v883 = vunpack.c.l.b16 %v335
        %v884 = vunpack.c.l.b16 %v336
        %v885 = vunpack.c.l.b16 %v337
        %v886 = vunpack.c.l.b16 %v338
        %v887 = vunpack.c.l.b16 %v339
        %v888 = vunpack.c.l.b16 %v340
        %v889 = vunpack.c.l.b16 %v341
        %v890 = vunpack.c.l.b16 %v342
        %v891 = vunpack.c.l.b16 %v343
        %v892 = vunpack.c.l.b16 %v344
        %v893 = vunpack.c.l.b16 %v345
        %v894 = vunpack.c.l.b16 %v346
        %v895 = vunpack.c.l.b16 %v347
        %v896 = vunpack.c.l.b16 %v348
        %v897 = vunpack.c.l.b16 %v349
        %v898 = vunpack.c.l.b16 %v350
        %v899 = vunpack.c.l.b16 %v351
        %v900 = vunpack.c.l.b16 %v352
        %v901 = vunpack.c.l.b16 %v353
        %v902 = vunpack.c.l.b16 %v354
        %v903 = vunpack.c.l.b16 %v355
        %v904 = vunpack.c.l.b16 %v356
        %v905 = vunpack.c.l.b16 %v357
        %v906 = vunpack.c.l.b16 %v358
        %v907 = vunpack.c.l.b16 %v359
        %v908 = vunpack.c.l.b16 %v360
        %v909 = vpack.c.b16 %v838, %v837
        %v910 = vpack.c.b16 %v840, %v839
        %v911 = vpack.c.b16 %v842, %v841
        %v912 = vpack.c.b16 %v844, %v843
        %v913 = vpack.c.b16 %v846, %v845
        %v914 = vpack.c.b16 %v848, %v847
        %v915 = vpack.c.b16 %v850, %v849
        %v916 = vpack.c.b16 %v852, %v851
        %v917 = vpack.c.b16 %v854, %v853
        %v918 = vpack.c.b16 %v856, %v855
        %v919 = vpack.c.b16 %v858, %v857
        %v920 = vpack.c.b16 %v860, %v859
        %v921 = vpack.c.b16 %v862, %v861
        %v922 = vpack.c.b16 %v864, %v863
        %v923 = vpack.c.b16 %v866, %v865
        %v924 = vpack.c.b16 %v868, %v867
        %v925 = vpack.c.b16 %v870, %v869
        %v926 = vpack.c.b16 %v872, %v871
        %v927 = vpack.c.b16 %v874, %v873
        %v928 = vpack.c.b16 %v876, %v875
        %v929 = vpack.c.b16 %v878, %v877
        %v930 = vpack.c.b16 %v880, %v879
        %v931 = vpack.c.b16 %v882, %v881
        %v932 = vpack.c.b16 %v884, %v883
        %v933 = vpack.c.b16 %v886, %v885
        %v934 = vpack.c.b16 %v888, %v887
        %v935 = vpack.c.b16 %v890, %v889
        %v936 = vpack.c.b16 %v892, %v891
        %v937 = vpack.c.b16 %v894, %v893
        %v938 = vpack.c.b16 %v896, %v895
        %v939 = vpack.c.b16 %v898, %v897
        %v940 = vpack.c.b16 %v900, %v899
        %v941 = vpack.c.b16 %v902, %v901
        %v942 = vpack.c.b16 %v904, %v903
        %v943 = vpack.c.b16 %v906, %v905
        %v944 = vpack.c.b16 %v908, %v907
        %vm981 = vcmask 523264
        %v983 = vsel %vm981, %v625, 0
        %v986 = vsel %vm981, %v630, 0
        %v989 = vsel %vm981, %v635, 0
        %v992 = vsel %vm981, %v640, 0
        %v995 = vsel %vm981, %v645, 0
        %v998 = vsel %vm981, %v650, 0
        %v1001 = vsel %vm981, %v655, 0
        %v1004 = vsel %vm981, %v660, 0
        %v1007 = vsel %vm981, %v665, 0
        %v1010 = vsel %vm981, %v670, 0
        %v1013 = vsel %vm981, %v675, 0
        %v1016 = vsel %vm981, %v680, 0
        %v1019 = vsel %vm981, %v685, 0
        %v1022 = vsel %vm981, %v690, 0
        %v1025 = vsel %vm981, %v695, 0
        %v1028 = vsel %vm981, %v700, 0
        %1030 = vmatpush.bf16.msra.mxu0 %v916
        %1031 = vmatpush.bf16.msra.mxu0 %v915
        %1032 = vmatpush.bf16.msra.mxu0 %v914
        %1033 = vmatpush.bf16.msra.mxu0 %v913
        %1034 = vmatpush.bf16.msra.mxu0 %v912
        %1035 = vmatpush.bf16.msra.mxu0 %v911
        %1036 = vmatpush.bf16.msra.mxu0 %v910
        %1037 = vmatpush.bf16.msra.mxu0 %v909
        %1038 = vmatmul.bf16.gmra.mxu0 %v621
        %v1039 = vpop.f32.mrf.mxu0
        %v1040 = vadd.f32 %v363, %v1039
        %v1041 = vpop.f32.mrf.mxu0
        %v1042 = vadd.f32 %v363, %v1041
        %1043 = vmatmul.bf16.gmra.mxu0 %v626
        %v1044 = vpop.f32.mrf.mxu0
        %v1045 = vadd.f32 %v363, %v1044
        %v1046 = vpop.f32.mrf.mxu0
        %v1047 = vadd.f32 %v363, %v1046
        %1048 = vmatmul.bf16.gmra.mxu0 %v631
        %v1049 = vpop.f32.mrf.mxu0
        %v1050 = vadd.f32 %v363, %v1049
        %v1051 = vpop.f32.mrf.mxu0
        %v1052 = vadd.f32 %v363, %v1051
        %1053 = vmatmul.bf16.gmra.mxu0 %v636
        %v1054 = vpop.f32.mrf.mxu0
        %v1055 = vadd.f32 %v363, %v1054
        %v1056 = vpop.f32.mrf.mxu0
        %v1057 = vadd.f32 %v363, %v1056
        %1058 = vmatmul.bf16.gmra.mxu0 %v641
        %v1059 = vpop.f32.mrf.mxu0
        %v1060 = vadd.f32 %v363, %v1059
        %v1061 = vpop.f32.mrf.mxu0
        %v1062 = vadd.f32 %v363, %v1061
        %1063 = vmatmul.bf16.gmra.mxu0 %v646
        %v1064 = vpop.f32.mrf.mxu0
        %v1065 = vadd.f32 %v363, %v1064
        %v1066 = vpop.f32.mrf.mxu0
        %v1067 = vadd.f32 %v363, %v1066
        %1068 = vmatmul.bf16.gmra.mxu0 %v651
        %v1069 = vpop.f32.mrf.mxu0
        %v1070 = vadd.f32 %v363, %v1069
        %v1071 = vpop.f32.mrf.mxu0
        %v1072 = vadd.f32 %v363, %v1071
        %1073 = vmatmul.bf16.gmra.mxu0 %v656
        %v1074 = vpop.f32.mrf.mxu0
        %v1075 = vadd.f32 %v363, %v1074
        %v1076 = vpop.f32.mrf.mxu0
        %v1077 = vadd.f32 %v363, %v1076
        %1078 = vmatmul.bf16.gmra.mxu0 %v661
        %v1079 = vpop.f32.mrf.mxu0
        %v1080 = vadd.f32 %v363, %v1079
        %v1081 = vpop.f32.mrf.mxu0
        %v1082 = vadd.f32 %v363, %v1081
        %1083 = vmatmul.bf16.gmra.mxu0 %v666
        %v1084 = vpop.f32.mrf.mxu0
        %v1085 = vadd.f32 %v363, %v1084
        %v1086 = vpop.f32.mrf.mxu0
        %v1087 = vadd.f32 %v363, %v1086
        %1088 = vmatmul.bf16.gmra.mxu0 %v671
        %v1089 = vpop.f32.mrf.mxu0
        %v1090 = vadd.f32 %v363, %v1089
        %v1091 = vpop.f32.mrf.mxu0
        %v1092 = vadd.f32 %v363, %v1091
        %1093 = vmatmul.bf16.gmra.mxu0 %v676
        %v1094 = vpop.f32.mrf.mxu0
        %v1095 = vadd.f32 %v363, %v1094
        %v1096 = vpop.f32.mrf.mxu0
        %v1097 = vadd.f32 %v363, %v1096
        %1098 = vmatmul.bf16.gmra.mxu0 %v681
        %v1099 = vpop.f32.mrf.mxu0
        %v1100 = vadd.f32 %v363, %v1099
        %v1101 = vpop.f32.mrf.mxu0
        %v1102 = vadd.f32 %v363, %v1101
        %1103 = vmatmul.bf16.gmra.mxu0 %v686
        %v1104 = vpop.f32.mrf.mxu0
        %v1105 = vadd.f32 %v363, %v1104
        %v1106 = vpop.f32.mrf.mxu0
        %v1107 = vadd.f32 %v363, %v1106
        %1108 = vmatmul.bf16.gmra.mxu0 %v691
        %v1109 = vpop.f32.mrf.mxu0
        %v1110 = vadd.f32 %v363, %v1109
        %v1111 = vpop.f32.mrf.mxu0
        %v1112 = vadd.f32 %v363, %v1111
        %1113 = vmatmul.bf16.gmra.mxu0 %v696
        %v1114 = vpop.f32.mrf.mxu0
        %v1115 = vadd.f32 %v363, %v1114
        %v1116 = vpop.f32.mrf.mxu0
        %v1117 = vadd.f32 %v363, %v1116
        %1118 = vdwg.mxu0
        %1119 = vmatpush.bf16.msra.mxu0 %v924
        %1120 = vmatpush.bf16.msra.mxu0 %v923
        %1121 = vmatpush.bf16.msra.mxu0 %v922
        %1122 = vmatpush.bf16.msra.mxu0 %v921
        %1123 = vmatpush.bf16.msra.mxu0 %v920
        %1124 = vmatpush.bf16.msra.mxu0 %v919
        %1125 = vmatpush.bf16.msra.mxu0 %v918
        %1126 = vmatpush.bf16.msra.mxu0 %v917
        %1127 = vmatmul.bf16.gmra.mxu0 %v622
        %v1128 = vpop.f32.mrf.mxu0
        %v1129 = vadd.f32 %v1040, %v1128
        %v1130 = vpop.f32.mrf.mxu0
        %v1131 = vadd.f32 %v1042, %v1130
        %1132 = vmatmul.bf16.gmra.mxu0 %v627
        %v1133 = vpop.f32.mrf.mxu0
        %v1134 = vadd.f32 %v1045, %v1133
        %v1135 = vpop.f32.mrf.mxu0
        %v1136 = vadd.f32 %v1047, %v1135
        %1137 = vmatmul.bf16.gmra.mxu0 %v632
        %v1138 = vpop.f32.mrf.mxu0
        %v1139 = vadd.f32 %v1050, %v1138
        %v1140 = vpop.f32.mrf.mxu0
        %v1141 = vadd.f32 %v1052, %v1140
        %1142 = vmatmul.bf16.gmra.mxu0 %v637
        %v1143 = vpop.f32.mrf.mxu0
        %v1144 = vadd.f32 %v1055, %v1143
        %v1145 = vpop.f32.mrf.mxu0
        %v1146 = vadd.f32 %v1057, %v1145
        %1147 = vmatmul.bf16.gmra.mxu0 %v642
        %v1148 = vpop.f32.mrf.mxu0
        %v1149 = vadd.f32 %v1060, %v1148
        %v1150 = vpop.f32.mrf.mxu0
        %v1151 = vadd.f32 %v1062, %v1150
        %1152 = vmatmul.bf16.gmra.mxu0 %v647
        %v1153 = vpop.f32.mrf.mxu0
        %v1154 = vadd.f32 %v1065, %v1153
        %v1155 = vpop.f32.mrf.mxu0
        %v1156 = vadd.f32 %v1067, %v1155
        %1157 = vmatmul.bf16.gmra.mxu0 %v652
        %v1158 = vpop.f32.mrf.mxu0
        %v1159 = vadd.f32 %v1070, %v1158
        %v1160 = vpop.f32.mrf.mxu0
        %v1161 = vadd.f32 %v1072, %v1160
        %1162 = vmatmul.bf16.gmra.mxu0 %v657
        %v1163 = vpop.f32.mrf.mxu0
        %v1164 = vadd.f32 %v1075, %v1163
        %v1165 = vpop.f32.mrf.mxu0
        %v1166 = vadd.f32 %v1077, %v1165
        %1167 = vmatmul.bf16.gmra.mxu0 %v662
        %v1168 = vpop.f32.mrf.mxu0
        %v1169 = vadd.f32 %v1080, %v1168
        %v1170 = vpop.f32.mrf.mxu0
        %v1171 = vadd.f32 %v1082, %v1170
        %1172 = vmatmul.bf16.gmra.mxu0 %v667
        %v1173 = vpop.f32.mrf.mxu0
        %v1174 = vadd.f32 %v1085, %v1173
        %v1175 = vpop.f32.mrf.mxu0
        %v1176 = vadd.f32 %v1087, %v1175
        %1177 = vmatmul.bf16.gmra.mxu0 %v672
        %v1178 = vpop.f32.mrf.mxu0
        %v1179 = vadd.f32 %v1090, %v1178
        %v1180 = vpop.f32.mrf.mxu0
        %v1181 = vadd.f32 %v1092, %v1180
        %1182 = vmatmul.bf16.gmra.mxu0 %v677
        %v1183 = vpop.f32.mrf.mxu0
        %v1184 = vadd.f32 %v1095, %v1183
        %v1185 = vpop.f32.mrf.mxu0
        %v1186 = vadd.f32 %v1097, %v1185
        %1187 = vmatmul.bf16.gmra.mxu0 %v682
        %v1188 = vpop.f32.mrf.mxu0
        %v1189 = vadd.f32 %v1100, %v1188
        %v1190 = vpop.f32.mrf.mxu0
        %v1191 = vadd.f32 %v1102, %v1190
        %1192 = vmatmul.bf16.gmra.mxu0 %v687
        %v1193 = vpop.f32.mrf.mxu0
        %v1194 = vadd.f32 %v1105, %v1193
        %v1195 = vpop.f32.mrf.mxu0
        %v1196 = vadd.f32 %v1107, %v1195
        %1197 = vmatmul.bf16.gmra.mxu0 %v692
        %v1198 = vpop.f32.mrf.mxu0
        %v1199 = vadd.f32 %v1110, %v1198
        %v1200 = vpop.f32.mrf.mxu0
        %v1201 = vadd.f32 %v1112, %v1200
        %1202 = vmatmul.bf16.gmra.mxu0 %v697
        %v1203 = vpop.f32.mrf.mxu0
        %v1204 = vadd.f32 %v1115, %v1203
        %v1205 = vpop.f32.mrf.mxu0
        %v1206 = vadd.f32 %v1117, %v1205
        %1207 = vdwg.mxu0
        %1208 = vmatpush.bf16.msra.mxu0 %v932
        %1209 = vmatpush.bf16.msra.mxu0 %v931
        %1210 = vmatpush.bf16.msra.mxu0 %v930
        %1211 = vmatpush.bf16.msra.mxu0 %v929
        %1212 = vmatpush.bf16.msra.mxu0 %v928
        %1213 = vmatpush.bf16.msra.mxu0 %v927
        %1214 = vmatpush.bf16.msra.mxu0 %v926
        %1215 = vmatpush.bf16.msra.mxu0 %v925
        %1216 = vmatmul.bf16.gmra.mxu0 %v623
        %v1217 = vpop.f32.mrf.mxu0
        %v1218 = vadd.f32 %v1129, %v1217
        %v1219 = vpop.f32.mrf.mxu0
        %v1220 = vadd.f32 %v1131, %v1219
        %1221 = vmatmul.bf16.gmra.mxu0 %v628
        %v1222 = vpop.f32.mrf.mxu0
        %v1223 = vadd.f32 %v1134, %v1222
        %v1224 = vpop.f32.mrf.mxu0
        %v1225 = vadd.f32 %v1136, %v1224
        %1226 = vmatmul.bf16.gmra.mxu0 %v633
        %v1227 = vpop.f32.mrf.mxu0
        %v1228 = vadd.f32 %v1139, %v1227
        %v1229 = vpop.f32.mrf.mxu0
        %v1230 = vadd.f32 %v1141, %v1229
        %1231 = vmatmul.bf16.gmra.mxu0 %v638
        %v1232 = vpop.f32.mrf.mxu0
        %v1233 = vadd.f32 %v1144, %v1232
        %v1234 = vpop.f32.mrf.mxu0
        %v1235 = vadd.f32 %v1146, %v1234
        %1236 = vmatmul.bf16.gmra.mxu0 %v643
        %v1237 = vpop.f32.mrf.mxu0
        %v1238 = vadd.f32 %v1149, %v1237
        %v1239 = vpop.f32.mrf.mxu0
        %v1240 = vadd.f32 %v1151, %v1239
        %1241 = vmatmul.bf16.gmra.mxu0 %v648
        %v1242 = vpop.f32.mrf.mxu0
        %v1243 = vadd.f32 %v1154, %v1242
        %v1244 = vpop.f32.mrf.mxu0
        %v1245 = vadd.f32 %v1156, %v1244
        %1246 = vmatmul.bf16.gmra.mxu0 %v653
        %v1247 = vpop.f32.mrf.mxu0
        %v1248 = vadd.f32 %v1159, %v1247
        %v1249 = vpop.f32.mrf.mxu0
        %v1250 = vadd.f32 %v1161, %v1249
        %1251 = vmatmul.bf16.gmra.mxu0 %v658
        %v1252 = vpop.f32.mrf.mxu0
        %v1253 = vadd.f32 %v1164, %v1252
        %v1254 = vpop.f32.mrf.mxu0
        %v1255 = vadd.f32 %v1166, %v1254
        %1256 = vmatmul.bf16.gmra.mxu0 %v663
        %v1257 = vpop.f32.mrf.mxu0
        %v1258 = vadd.f32 %v1169, %v1257
        %v1259 = vpop.f32.mrf.mxu0
        %v1260 = vadd.f32 %v1171, %v1259
        %1261 = vmatmul.bf16.gmra.mxu0 %v668
        %v1262 = vpop.f32.mrf.mxu0
        %v1263 = vadd.f32 %v1174, %v1262
        %v1264 = vpop.f32.mrf.mxu0
        %v1265 = vadd.f32 %v1176, %v1264
        %1266 = vmatmul.bf16.gmra.mxu0 %v673
        %v1267 = vpop.f32.mrf.mxu0
        %v1268 = vadd.f32 %v1179, %v1267
        %v1269 = vpop.f32.mrf.mxu0
        %v1270 = vadd.f32 %v1181, %v1269
        %1271 = vmatmul.bf16.gmra.mxu0 %v678
        %v1272 = vpop.f32.mrf.mxu0
        %v1273 = vadd.f32 %v1184, %v1272
        %v1274 = vpop.f32.mrf.mxu0
        %v1275 = vadd.f32 %v1186, %v1274
        %1276 = vmatmul.bf16.gmra.mxu0 %v683
        %v1277 = vpop.f32.mrf.mxu0
        %v1278 = vadd.f32 %v1189, %v1277
        %v1279 = vpop.f32.mrf.mxu0
        %v1280 = vadd.f32 %v1191, %v1279
        %1281 = vmatmul.bf16.gmra.mxu0 %v688
        %v1282 = vpop.f32.mrf.mxu0
        %v1283 = vadd.f32 %v1194, %v1282
        %v1284 = vpop.f32.mrf.mxu0
        %v1285 = vadd.f32 %v1196, %v1284
        %1286 = vmatmul.bf16.gmra.mxu0 %v693
        %v1287 = vpop.f32.mrf.mxu0
        %v1288 = vadd.f32 %v1199, %v1287
        %v1289 = vpop.f32.mrf.mxu0
        %v1290 = vadd.f32 %v1201, %v1289
        %1291 = vmatmul.bf16.gmra.mxu0 %v698
        %v1292 = vpop.f32.mrf.mxu0
        %v1293 = vadd.f32 %v1204, %v1292
        %v1294 = vpop.f32.mrf.mxu0
        %v1295 = vadd.f32 %v1206, %v1294
        %1296 = vdwg.mxu0
        %1297 = vmatpush.bf16.msra.mxu0 %v940
        %1298 = vmatpush.bf16.msra.mxu0 %v939
        %1299 = vmatpush.bf16.msra.mxu0 %v938
        %1300 = vmatpush.bf16.msra.mxu0 %v937
        %1301 = vmatpush.bf16.msra.mxu0 %v936
        %1302 = vmatpush.bf16.msra.mxu0 %v935
        %1303 = vmatpush.bf16.msra.mxu0 %v934
        %1304 = vmatpush.bf16.msra.mxu0 %v933
        %1305 = vmatmul.bf16.gmra.mxu0 %v624
        %v1306 = vpop.f32.mrf.mxu0
        %v1307 = vadd.f32 %v1218, %v1306
        %v1308 = vpop.f32.mrf.mxu0
        %v1309 = vadd.f32 %v1220, %v1308
        %1310 = vmatmul.bf16.gmra.mxu0 %v629
        %v1311 = vpop.f32.mrf.mxu0
        %v1312 = vadd.f32 %v1223, %v1311
        %v1313 = vpop.f32.mrf.mxu0
        %v1314 = vadd.f32 %v1225, %v1313
        %1315 = vmatmul.bf16.gmra.mxu0 %v634
        %v1316 = vpop.f32.mrf.mxu0
        %v1317 = vadd.f32 %v1228, %v1316
        %v1318 = vpop.f32.mrf.mxu0
        %v1319 = vadd.f32 %v1230, %v1318
        %1320 = vmatmul.bf16.gmra.mxu0 %v639
        %v1321 = vpop.f32.mrf.mxu0
        %v1322 = vadd.f32 %v1233, %v1321
        %v1323 = vpop.f32.mrf.mxu0
        %v1324 = vadd.f32 %v1235, %v1323
        %1325 = vmatmul.bf16.gmra.mxu0 %v644
        %v1326 = vpop.f32.mrf.mxu0
        %v1327 = vadd.f32 %v1238, %v1326
        %v1328 = vpop.f32.mrf.mxu0
        %v1329 = vadd.f32 %v1240, %v1328
        %1330 = vmatmul.bf16.gmra.mxu0 %v649
        %v1331 = vpop.f32.mrf.mxu0
        %v1332 = vadd.f32 %v1243, %v1331
        %v1333 = vpop.f32.mrf.mxu0
        %v1334 = vadd.f32 %v1245, %v1333
        %1335 = vmatmul.bf16.gmra.mxu0 %v654
        %v1336 = vpop.f32.mrf.mxu0
        %v1337 = vadd.f32 %v1248, %v1336
        %v1338 = vpop.f32.mrf.mxu0
        %v1339 = vadd.f32 %v1250, %v1338
        %1340 = vmatmul.bf16.gmra.mxu0 %v659
        %v1341 = vpop.f32.mrf.mxu0
        %v1342 = vadd.f32 %v1253, %v1341
        %v1343 = vpop.f32.mrf.mxu0
        %v1344 = vadd.f32 %v1255, %v1343
        %1345 = vmatmul.bf16.gmra.mxu0 %v664
        %v1346 = vpop.f32.mrf.mxu0
        %v1347 = vadd.f32 %v1258, %v1346
        %v1348 = vpop.f32.mrf.mxu0
        %v1349 = vadd.f32 %v1260, %v1348
        %1350 = vmatmul.bf16.gmra.mxu0 %v669
        %v1351 = vpop.f32.mrf.mxu0
        %v1352 = vadd.f32 %v1263, %v1351
        %v1353 = vpop.f32.mrf.mxu0
        %v1354 = vadd.f32 %v1265, %v1353
        %1355 = vmatmul.bf16.gmra.mxu0 %v674
        %v1356 = vpop.f32.mrf.mxu0
        %v1357 = vadd.f32 %v1268, %v1356
        %v1358 = vpop.f32.mrf.mxu0
        %v1359 = vadd.f32 %v1270, %v1358
        %1360 = vmatmul.bf16.gmra.mxu0 %v679
        %v1361 = vpop.f32.mrf.mxu0
        %v1362 = vadd.f32 %v1273, %v1361
        %v1363 = vpop.f32.mrf.mxu0
        %v1364 = vadd.f32 %v1275, %v1363
        %1365 = vmatmul.bf16.gmra.mxu0 %v684
        %v1366 = vpop.f32.mrf.mxu0
        %v1367 = vadd.f32 %v1278, %v1366
        %v1368 = vpop.f32.mrf.mxu0
        %v1369 = vadd.f32 %v1280, %v1368
        %1370 = vmatmul.bf16.gmra.mxu0 %v689
        %v1371 = vpop.f32.mrf.mxu0
        %v1372 = vadd.f32 %v1283, %v1371
        %v1373 = vpop.f32.mrf.mxu0
        %v1374 = vadd.f32 %v1285, %v1373
        %1375 = vmatmul.bf16.gmra.mxu0 %v694
        %v1376 = vpop.f32.mrf.mxu0
        %v1377 = vadd.f32 %v1288, %v1376
        %v1378 = vpop.f32.mrf.mxu0
        %v1379 = vadd.f32 %v1290, %v1378
        %1380 = vmatmul.bf16.gmra.mxu0 %v699
        %v1381 = vpop.f32.mrf.mxu0
        %v1382 = vadd.f32 %v1293, %v1381
        %v1383 = vpop.f32.mrf.mxu0
        %v1384 = vadd.f32 %v1295, %v1383
        %1385 = vdwg.mxu0
        %1386 = vmatpush.bf16.msra.mxu0 0
        %1387 = vmatpush.bf16.msra.mxu0 0
        %1388 = vmatpush.bf16.msra.mxu0 0
        %1389 = vmatpush.bf16.msra.mxu0 0
        %1390 = vmatpush.bf16.msra.mxu0 %v944
        %1391 = vmatpush.bf16.msra.mxu0 %v943
        %1392 = vmatpush.bf16.msra.mxu0 %v942
        %1393 = vmatpush.bf16.msra.mxu0 %v941
        %1394 = vmatmul.bf16.gmra.mxu0 %v983
        %v1395 = vpop.f32.mrf.mxu0
        %v1396 = vadd.f32 %v1307, %v1395
        %v1397 = vpop.f32.mrf.mxu0
        %v1398 = vadd.f32 %v1309, %v1397
        %1399 = vmatmul.bf16.gmra.mxu0 %v986
        %v1400 = vpop.f32.mrf.mxu0
        %v1401 = vadd.f32 %v1312, %v1400
        %v1402 = vpop.f32.mrf.mxu0
        %v1403 = vadd.f32 %v1314, %v1402
        %1404 = vmatmul.bf16.gmra.mxu0 %v989
        %v1405 = vpop.f32.mrf.mxu0
        %v1406 = vadd.f32 %v1317, %v1405
        %v1407 = vpop.f32.mrf.mxu0
        %v1408 = vadd.f32 %v1319, %v1407
        %1409 = vmatmul.bf16.gmra.mxu0 %v992
        %v1410 = vpop.f32.mrf.mxu0
        %v1411 = vadd.f32 %v1322, %v1410
        %v1412 = vpop.f32.mrf.mxu0
        %v1413 = vadd.f32 %v1324, %v1412
        %1414 = vmatmul.bf16.gmra.mxu0 %v995
        %v1415 = vpop.f32.mrf.mxu0
        %v1416 = vadd.f32 %v1327, %v1415
        %v1417 = vpop.f32.mrf.mxu0
        %v1418 = vadd.f32 %v1329, %v1417
        %1419 = vmatmul.bf16.gmra.mxu0 %v998
        %v1420 = vpop.f32.mrf.mxu0
        %v1421 = vadd.f32 %v1332, %v1420
        %v1422 = vpop.f32.mrf.mxu0
        %v1423 = vadd.f32 %v1334, %v1422
        %1424 = vmatmul.bf16.gmra.mxu0 %v1001
        %v1425 = vpop.f32.mrf.mxu0
        %v1426 = vadd.f32 %v1337, %v1425
        %v1427 = vpop.f32.mrf.mxu0
        %v1428 = vadd.f32 %v1339, %v1427
        %1429 = vmatmul.bf16.gmra.mxu0 %v1004
        %v1430 = vpop.f32.mrf.mxu0
        %v1431 = vadd.f32 %v1342, %v1430
        %v1432 = vpop.f32.mrf.mxu0
        %v1433 = vadd.f32 %v1344, %v1432
        %1434 = vmatmul.bf16.gmra.mxu0 %v1007
        %v1435 = vpop.f32.mrf.mxu0
        %v1436 = vadd.f32 %v1347, %v1435
        %v1437 = vpop.f32.mrf.mxu0
        %v1438 = vadd.f32 %v1349, %v1437
        %1439 = vmatmul.bf16.gmra.mxu0 %v1010
        %v1440 = vpop.f32.mrf.mxu0
        %v1441 = vadd.f32 %v1352, %v1440
        %v1442 = vpop.f32.mrf.mxu0
        %v1443 = vadd.f32 %v1354, %v1442
        %1444 = vmatmul.bf16.gmra.mxu0 %v1013
        %v1445 = vpop.f32.mrf.mxu0
        %v1446 = vadd.f32 %v1357, %v1445
        %v1447 = vpop.f32.mrf.mxu0
        %v1448 = vadd.f32 %v1359, %v1447
        %1449 = vmatmul.bf16.gmra.mxu0 %v1016
        %v1450 = vpop.f32.mrf.mxu0
        %v1451 = vadd.f32 %v1362, %v1450
        %v1452 = vpop.f32.mrf.mxu0
        %v1453 = vadd.f32 %v1364, %v1452
        %1454 = vmatmul.bf16.gmra.mxu0 %v1019
        %v1455 = vpop.f32.mrf.mxu0
        %v1456 = vadd.f32 %v1367, %v1455
        %v1457 = vpop.f32.mrf.mxu0
        %v1458 = vadd.f32 %v1369, %v1457
        %1459 = vmatmul.bf16.gmra.mxu0 %v1022
        %v1460 = vpop.f32.mrf.mxu0
        %v1461 = vadd.f32 %v1372, %v1460
        %v1462 = vpop.f32.mrf.mxu0
        %v1463 = vadd.f32 %v1374, %v1462
        %1464 = vmatmul.bf16.gmra.mxu0 %v1025
        %v1465 = vpop.f32.mrf.mxu0
        %v1466 = vadd.f32 %v1377, %v1465
        %v1467 = vpop.f32.mrf.mxu0
        %v1468 = vadd.f32 %v1379, %v1467
        %1469 = vmatmul.bf16.gmra.mxu0 %v1028
        %v1470 = vpop.f32.mrf.mxu0
        %v1471 = vadd.f32 %v1382, %v1470
        %v1472 = vpop.f32.mrf.mxu0
        %v1473 = vadd.f32 %v1384, %v1472
        %1474 = vdwg.mxu0
        %v1475 = vmax.f32 %v1396, 0.0
        %v1476 = vmax.f32 %v1398, 0.0
        %v1477 = vmax.f32 %v1401, 0.0
        %v1478 = vmax.f32 %v1403, 0.0
        %v1479 = vmax.f32 %v1406, 0.0
        %v1480 = vmax.f32 %v1408, 0.0
        %v1481 = vmax.f32 %v1411, 0.0
        %v1482 = vmax.f32 %v1413, 0.0
        %v1483 = vmax.f32 %v1416, 0.0
        %v1484 = vmax.f32 %v1418, 0.0
        %v1485 = vmax.f32 %v1421, 0.0
        %v1486 = vmax.f32 %v1423, 0.0
        %v1487 = vmax.f32 %v1426, 0.0
        %v1488 = vmax.f32 %v1428, 0.0
        %v1489 = vmax.f32 %v1431, 0.0
        %v1490 = vmax.f32 %v1433, 0.0
        %v1491 = vmax.f32 %v1436, 0.0
        %v1492 = vmax.f32 %v1438, 0.0
        %v1493 = vmax.f32 %v1441, 0.0
        %v1494 = vmax.f32 %v1443, 0.0
        %v1495 = vmax.f32 %v1446, 0.0
        %v1496 = vmax.f32 %v1448, 0.0
        %v1497 = vmax.f32 %v1451, 0.0
        %v1498 = vmax.f32 %v1453, 0.0
        %v1499 = vmax.f32 %v1456, 0.0
        %v1500 = vmax.f32 %v1458, 0.0
        %v1501 = vmax.f32 %v1461, 0.0
        %v1502 = vmax.f32 %v1463, 0.0
        %v1503 = vmax.f32 %v1466, 0.0
        %v1504 = vmax.f32 %v1468, 0.0
        %v1505 = vmax.f32 %v1471, 0.0
        %v1506 = vmax.f32 %v1473, 0.0
        %v1507 = vpack.c.bf16 %v1475, %v1475
        %v1508 = vpack.c.bf16 %v1476, %v1476
        %v1509 = vpack.c.bf16 %v1477, %v1477
        %v1510 = vpack.c.bf16 %v1478, %v1478
        %v1511 = vpack.c.bf16 %v1479, %v1479
        %v1512 = vpack.c.bf16 %v1480, %v1480
        %v1513 = vpack.c.bf16 %v1481, %v1481
        %v1514 = vpack.c.bf16 %v1482, %v1482
        %v1515 = vpack.c.bf16 %v1483, %v1483
        %v1516 = vpack.c.bf16 %v1484, %v1484
        %v1517 = vpack.c.bf16 %v1485, %v1485
        %v1518 = vpack.c.bf16 %v1486, %v1486
        %v1519 = vpack.c.bf16 %v1487, %v1487
        %v1520 = vpack.c.bf16 %v1488, %v1488
        %v1521 = vpack.c.bf16 %v1489, %v1489
        %v1522 = vpack.c.bf16 %v1490, %v1490
        %v1523 = vpack.c.bf16 %v1491, %v1491
        %v1524 = vpack.c.bf16 %v1492, %v1492
        %v1525 = vpack.c.bf16 %v1493, %v1493
        %v1526 = vpack.c.bf16 %v1494, %v1494
        %v1527 = vpack.c.bf16 %v1495, %v1495
        %v1528 = vpack.c.bf16 %v1496, %v1496
        %v1529 = vpack.c.bf16 %v1497, %v1497
        %v1530 = vpack.c.bf16 %v1498, %v1498
        %v1531 = vpack.c.bf16 %v1499, %v1499
        %v1532 = vpack.c.bf16 %v1500, %v1500
        %v1533 = vpack.c.bf16 %v1501, %v1501
        %v1534 = vpack.c.bf16 %v1502, %v1502
        %v1535 = vpack.c.bf16 %v1503, %v1503
        %v1536 = vpack.c.bf16 %v1504, %v1504
        %v1537 = vpack.c.bf16 %v1505, %v1505
        %v1538 = vpack.c.bf16 %v1506, %v1506
        %vm1539 = vcmask 519168
        %1540 = vst.msk [vmem:[%s190] sm:$0xf] %vm1539, %v1507
        %1541 = vst.msk [vmem:[%s190 + $0x4] sm:$0xf] %vm1539, %v1508
        %1542 = vst.msk [vmem:[%s190 + $0x8] sm:$0xf] %vm1539, %v1509
        %1543 = vst.msk [vmem:[%s190 + $0xc] sm:$0xf] %vm1539, %v1510
        %1544 = vst.msk [vmem:[%s190 + $0x10] sm:$0xf] %vm1539, %v1511
        %1545 = vst.msk [vmem:[%s190 + $0x14] sm:$0xf] %vm1539, %v1512
        %1546 = vst.msk [vmem:[%s190 + $0x18] sm:$0xf] %vm1539, %v1513
        %1547 = vst.msk [vmem:[%s190 + $0x1c] sm:$0xf] %vm1539, %v1514
        %1548 = vst.msk [vmem:[%s190 + $0x20] sm:$0xf] %vm1539, %v1515
        %1549 = vst.msk [vmem:[%s190 + $0x24] sm:$0xf] %vm1539, %v1516
        %1550 = vst.msk [vmem:[%s190 + $0x28] sm:$0xf] %vm1539, %v1517
        %1551 = vst.msk [vmem:[%s190 + $0x2c] sm:$0xf] %vm1539, %v1518
        %1552 = vst.msk [vmem:[%s190 + $0x30] sm:$0xf] %vm1539, %v1519
        %1553 = vst.msk [vmem:[%s190 + $0x34] sm:$0xf] %vm1539, %v1520
        %1554 = vst.msk [vmem:[%s190 + $0x38] sm:$0xf] %vm1539, %v1521
        %1555 = vst.msk [vmem:[%s190 + $0x3c] sm:$0xf] %vm1539, %v1522
        %1556 = vst.msk [vmem:[%s190 + $0x40] sm:$0xf] %vm1539, %v1523
        %1557 = vst.msk [vmem:[%s190 + $0x44] sm:$0xf] %vm1539, %v1524
        %1558 = vst.msk [vmem:[%s190 + $0x48] sm:$0xf] %vm1539, %v1525
        %1559 = vst.msk [vmem:[%s190 + $0x4c] sm:$0xf] %vm1539, %v1526
        %1560 = vst.msk [vmem:[%s190 + $0x50] sm:$0xf] %vm1539, %v1527
        %1561 = vst.msk [vmem:[%s190 + $0x54] sm:$0xf] %vm1539, %v1528
        %1562 = vst.msk [vmem:[%s190 + $0x58] sm:$0xf] %vm1539, %v1529
        %1563 = vst.msk [vmem:[%s190 + $0x5c] sm:$0xf] %vm1539, %v1530
        %1564 = vst.msk [vmem:[%s190 + $0x60] sm:$0xf] %vm1539, %v1531
        %1565 = vst.msk [vmem:[%s190 + $0x64] sm:$0xf] %vm1539, %v1532
        %1566 = vst.msk [vmem:[%s190 + $0x68] sm:$0xf] %vm1539, %v1533
        %1567 = vst.msk [vmem:[%s190 + $0x6c] sm:$0xf] %vm1539, %v1534
        %1568 = vst.msk [vmem:[%s190 + $0x70] sm:$0xf] %vm1539, %v1535
        %1569 = vst.msk [vmem:[%s190 + $0x74] sm:$0xf] %vm1539, %v1536
        %1570 = vst.msk [vmem:[%s190 + $0x78] sm:$0xf] %vm1539, %v1537
        %1571 = vst.msk [vmem:[%s190 + $0x7c] sm:$0xf] %vm1539, %v1538
        %s1572 = smul.u32 32, %s15
        %p1573 = scmp.lt.s32.totalorder %s1572, 63
        %s1574 = scalar_select %p1573, %s1572, 63
        %s1575 = smul.addr %s1574, 4
        %s1576 = scalar_lea.vmem %s3, %s1575
        // Predicated region
        $region37: #{cropped_vgg19.5} parent=31 // pred_check
          %p1577 = pneg %p101
        $region38: #{cropped_vgg19.5} parent=31 // pred_check_branch
          %1579 = sbr.rel (%p1577) target = $region40
        $region39: #{cropped_vgg19.5} parent=31 // pred_region
          %s1580 = smul.u32 32, %s15
        $region40: #{cropped_vgg19.5} parent=31 // pred_fallthru
          _
      $region32: #{cropped_vgg19.5} parent=5 // pred_fallthru
        _
      %p1581 = scmp.le.s32.totalorder 2, %s10
      // Predicated region
      $region41: #{cropped_vgg19.5} parent=5 // pred_check
        %p1582 = pneg %p1581
      $region42: #{cropped_vgg19.5} parent=5 // pred_check_branch
        %1584 = sbr.rel (%p1582) target = $region44
      $region43: #{cropped_vgg19.5} parent=5 // pred_region
        %s1585 = ssub.s32 %s10, 2
        // Predicated region
        $region45: #{cropped_vgg19.5} parent=43 // pred_check
          %p1586 = pneg %p107
        $region46: #{cropped_vgg19.5} parent=43 // pred_check_branch
          %1588 = sbr.rel (%p1586) target = $region48
        $region47: #{cropped_vgg19.5} parent=43 // pred_region
          %s1589 = smul.u32 32, %s16
          %p1590 = scmp.lt.s32.totalorder %s1589, 63
          %s1591 = scalar_select %p1590, %s1589, 63
          %s1592 = smul.addr %s1591, 4
          %s1593 = scalar_lea.vmem %s3, %s1592
        $region48: #{cropped_vgg19.5} parent=43 // pred_fallthru
          _
      $region44: #{cropped_vgg19.5} parent=5 // pred_fallthru
        _
    $region6: #{cropped_vgg19.5} parent=1 // loop_footer
      %s14 = sadd.s32 1, %s10
    $region7: #{cropped_vgg19.5} parent=1 // loop_footer_branch
      %9 = sbr.rel target = $region3
    $region8: #{cropped_vgg19.5} parent=1 // loop_exit
      _
    %1594 = vsyncpa [#allocation3], 1
    %s1595 = scalar_lea.sflag [#allocation3], 1
    %1596 = vsyncpa %s1595, 1

// kernel: cropped_vgg19.6
$region0: #{cropped_vgg19.6}
  #allocation0 [shape = 'u32[]', space=smem, size = 0x4, offset = 0x4, fixed_abs, tag = 'smem constant byte address 0x4 - core index']
  #allocation1 [shape = 'u32[72,128]{1,0:T(1,128)}', space=vmem, size = 0x9000, scoped, tag = 'internal scratch']
  %s0 = inlined_call_operand.vmem [shape: bf16[128,576], index: 0, kind: input, shape index: {}]
  %s1 = inlined_call_operand.vmem [shape: bf16[576,128], index: 1, kind: input, shape index: {}]
  %s2 = inlined_call_operand.vmem [shape: f32[1,128], index: 2, kind: input, shape index: {}]
  %s3 = inlined_call_operand.hbm [shape: f32[128,128], index: 3, kind: output, shape index: {0}]
  %s4 = inlined_call_operand.vmem [shape: bf16[128,128], index: 4, kind: output, shape index: {1}]
  %5 = xla_tuple %s3, %s4
  %s6 = sld [smem:[#allocation0]]
  $region53: #{cropped_vgg19.6} parent=0
    _
  %s8 = ssub.s32 1, %s6
  %s9 = scalar_select 0, %s8, %s6
  $region1: #{cropped_vgg19.6} parent=0
    #allocation2 [shape = 'u8[65536]{0}', space=vmem, size = 0x10000, scoped, tag = 'output window, operand 0']
    #allocation3 [shape = 's32[2]{0}', space=sflag, size = 0x8, scoped, tag = 'scoped memory for cropped_vgg19.6']
    %10 = vsyncpa [#allocation3], 0
    %s11 = scalar_lea.sflag [#allocation3], 1
    %12 = vsyncpa %s11, 0
    loop: start=0, step=1, limit=4
    $region2: #{cropped_vgg19.6} parent=1 // loop_pre_header
      _
    $region3: #{cropped_vgg19.6} parent=1 // loop_header
      %s14 = sphi 0, %s18
      %p15 = scmp.ge.s32.totalorder %s14, 4
      %s24 = sphi 0, %s26
      %s27 = sphi 0, %s24
      %s28 = sphi 0, %s27
      %s44 = sphi 0, %s28
      %s48 = sphi 0, %s48
      %s50 = sphi 0, %s48
      %s51 = sphi 0, %s50
      %s65 = sphi 0, %s51
      %s69 = sphi 0, %s69
      %s71 = sphi 0, %s69
      %s72 = sphi 0, %s71
      %s86 = sphi 0, %s72
      %s92 = sphi 0, %s94
      %s95 = sphi 0, %s92
      %s96 = sphi 0, %s95
      %s112 = sphi 0, %s96
      %s118 = sphi 0, %s120
      %s121 = sphi 0, %s118
      %s122 = sphi 0, %s121
      %s138 = sphi 0, %s122
    $region4: #{cropped_vgg19.6} parent=1 // loop_header_branch
      %17 = sbr.rel (%p15) target = $region8
    $region5: #{cropped_vgg19.6} parent=1 // loop_body
      %s19 = ssub.s32 %s14, 1
      %s20 = ssub.s32 %s14, 2
      %s21 = sadd.s32 %s14, 1
      %s22 = ssub.s32 %s14, %s21
      %p23 = scmp.eq.s32.totalorder %s22, 0
      %s25 = sadd.s32 %s24, 1
      %s26 = scalar_select %p23, %s24, %s25
      %p29 = pneg %p23
      %p30 = scmp.eq.s32.totalorder %s14, 1
      %p31 = por %p29, %p30
      %p32 = scmp.ne.s32.totalorder %s24, %s27
      %p33 = scmp.eq.s32.totalorder %s14, 0
      %p34 = por %p32, %p33
      %p35 = scmp.ne.s32.totalorder %s24, %s27
      %p36 = scmp.eq.s32.totalorder %s19, 1
      %p37 = por %p35, %p36
      %p38 = scmp.ne.s32.totalorder %s27, %s28
      %p39 = scmp.eq.s32.totalorder %s19, 0
      %p40 = por %p38, %p39
      %p41 = scmp.ne.s32.totalorder %s27, %s28
      %p42 = scmp.eq.s32.totalorder %s20, 1
      %p43 = por %p41, %p42
      %p45 = scmp.ne.s32.totalorder %s28, %s44
      %p46 = scmp.eq.s32.totalorder %s20, 0
      %p47 = por %p45, %p46
      %s49 = sadd.s32 %s48, 1
      %p52 = scmp.eq.s32.totalorder %s14, 1
      %p53 = scmp.ne.s32.totalorder %s48, %s50
      %p54 = scmp.eq.s32.totalorder %s14, 0
      %p55 = por %p53, %p54
      %p56 = scmp.ne.s32.totalorder %s48, %s50
      %p57 = scmp.eq.s32.totalorder %s19, 1
      %p58 = por %p56, %p57
      %p59 = scmp.ne.s32.totalorder %s50, %s51
      %p60 = scmp.eq.s32.totalorder %s19, 0
      %p61 = por %p59, %p60
      %p62 = scmp.ne.s32.totalorder %s50, %s51
      %p63 = scmp.eq.s32.totalorder %s20, 1
      %p64 = por %p62, %p63
      %p66 = scmp.ne.s32.totalorder %s51, %s65
      %p67 = scmp.eq.s32.totalorder %s20, 0
      %p68 = por %p66, %p67
      %s70 = sadd.s32 %s69, 1
      %p73 = scmp.eq.s32.totalorder %s14, 1
      %p74 = scmp.ne.s32.totalorder %s69, %s71
      %p75 = scmp.eq.s32.totalorder %s14, 0
      %p76 = por %p74, %p75
      %p77 = scmp.ne.s32.totalorder %s69, %s71
      %p78 = scmp.eq.s32.totalorder %s19, 1
      %p79 = por %p77, %p78
      %p80 = scmp.ne.s32.totalorder %s71, %s72
      %p81 = scmp.eq.s32.totalorder %s19, 0
      %p82 = por %p80, %p81
      %p83 = scmp.ne.s32.totalorder %s71, %s72
      %p84 = scmp.eq.s32.totalorder %s20, 1
      %p85 = por %p83, %p84
      %p87 = scmp.ne.s32.totalorder %s72, %s86
      %p88 = scmp.eq.s32.totalorder %s20, 0
      %p89 = por %p87, %p88
      %s90 = ssub.s32 %s14, %s21
      %p91 = scmp.eq.s32.totalorder %s90, 0
      %s93 = sadd.s32 %s92, 1
      %s94 = scalar_select %p91, %s92, %s93
      %p97 = pneg %p91
      %p98 = scmp.eq.s32.totalorder %s14, 1
      %p99 = por %p97, %p98
      %p100 = scmp.ne.s32.totalorder %s92, %s95
      %p101 = scmp.eq.s32.totalorder %s14, 0
      %p102 = por %p100, %p101
      %p103 = scmp.ne.s32.totalorder %s92, %s95
      %p104 = scmp.eq.s32.totalorder %s19, 1
      %p105 = por %p103, %p104
      %p106 = scmp.ne.s32.totalorder %s95, %s96
      %p107 = scmp.eq.s32.totalorder %s19, 0
      %p108 = por %p106, %p107
      %p109 = scmp.ne.s32.totalorder %s95, %s96
      %p110 = scmp.eq.s32.totalorder %s20, 1
      %p111 = por %p109, %p110
      %p113 = scmp.ne.s32.totalorder %s96, %s112
      %p114 = scmp.eq.s32.totalorder %s20, 0
      %p115 = por %p113, %p114
      %s116 = ssub.s32 %s14, %s21
      %p117 = scmp.eq.s32.totalorder %s116, 0
      %s119 = sadd.s32 %s118, 1
      %s120 = scalar_select %p117, %s118, %s119
      %p123 = pneg %p117
      %p124 = scmp.eq.s32.totalorder %s14, 1
      %p125 = por %p123, %p124
      %p126 = scmp.ne.s32.totalorder %s118, %s121
      %p127 = scmp.eq.s32.totalorder %s14, 0
      %p128 = por %p126, %p127
      %p129 = scmp.ne.s32.totalorder %s118, %s121
      %p130 = scmp.eq.s32.totalorder %s19, 1
      %p131 = por %p129, %p130
      %p132 = scmp.ne.s32.totalorder %s121, %s122
      %p133 = scmp.eq.s32.totalorder %s19, 0
      %p134 = por %p132, %p133
      %p135 = scmp.ne.s32.totalorder %s121, %s122
      %p136 = scmp.eq.s32.totalorder %s20, 1
      %p137 = por %p135, %p136
      %p139 = scmp.ne.s32.totalorder %s122, %s138
      %p140 = scmp.eq.s32.totalorder %s20, 0
      %p141 = por %p139, %p140
      %p142 = scmp.le.s32.totalorder 1, %s14
      %p143 = scmp.lt.s32.totalorder %s14, 3
      %p144 = pnand %p142, %p143
      %p145 = pneg %p144
      // Predicated region
      $region9: #{cropped_vgg19.6} parent=5 // pred_check
        _
      $region10: #{cropped_vgg19.6} parent=5 // pred_check_branch
        %147 = sbr.rel (%p144) target = $region12
      $region11: #{cropped_vgg19.6} parent=5 // pred_region
        %s148 = ssub.s32 %s14, 1
        // Predicated region
        $region13: #{cropped_vgg19.6} parent=11 // pred_check
          %p149 = pneg %p61
        $region14: #{cropped_vgg19.6} parent=11 // pred_check_branch
          %151 = sbr.rel (%p149) target = $region16
        $region15: #{cropped_vgg19.6} parent=11 // pred_region
          _
        $region16: #{cropped_vgg19.6} parent=11 // pred_fallthru
          _
        // Predicated region
        $region17: #{cropped_vgg19.6} parent=11 // pred_check
          %p152 = pneg %p82
        $region18: #{cropped_vgg19.6} parent=11 // pred_check_branch
          %154 = sbr.rel (%p152) target = $region20
        $region19: #{cropped_vgg19.6} parent=11 // pred_region
          _
        $region20: #{cropped_vgg19.6} parent=11 // pred_fallthru
          _
      $region12: #{cropped_vgg19.6} parent=5 // pred_fallthru
        _
      %p155 = scmp.lt.s32.totalorder %s14, 2
      // Predicated region
      $region21: #{cropped_vgg19.6} parent=5 // pred_check
        %p156 = pneg %p155
      $region22: #{cropped_vgg19.6} parent=5 // pred_check_branch
        %158 = sbr.rel (%p156) target = $region24
      $region23: #{cropped_vgg19.6} parent=5 // pred_region
        // Predicated region
        $region25: #{cropped_vgg19.6} parent=23 // pred_check
          %p159 = pneg %p34
        $region26: #{cropped_vgg19.6} parent=23 // pred_check_branch
          %161 = sbr.rel (%p159) target = $region28
        $region27: #{cropped_vgg19.6} parent=23 // pred_region
          %s162 = smul.u32 8, %s14
          %p163 = scmp.lt.s32.totalorder %s162, 15
          %s164 = scalar_select %p163, %s162, 15
          %s165 = smul.addr %s164, 5
          %s166 = smul.addr %s165, 4
          %s167 = scalar_lea.vmem %s0, %s166
          %s168 = smul.u32 8, %s14
        $region28: #{cropped_vgg19.6} parent=23 // pred_fallthru
          _
      $region24: #{cropped_vgg19.6} parent=5 // pred_fallthru
        _
      %p169 = scmp.le.s32.totalorder 1, %s14
      %p170 = scmp.lt.s32.totalorder %s14, 3
      %p171 = pnand %p169, %p170
      %p172 = pneg %p171
      // Predicated region
      $region29: #{cropped_vgg19.6} parent=5 // pred_check
        _
      $region30: #{cropped_vgg19.6} parent=5 // pred_check_branch
        %174 = sbr.rel (%p171) target = $region32
      $region31: #{cropped_vgg19.6} parent=5 // pred_region
        %s175 = ssub.s32 %s14, 1
        %s176 = smul.u32 8, %s19
        %p177 = scmp.lt.s32.totalorder %s176, 15
        %s178 = scalar_select %p177, %s176, 15
        %s179 = smul.addr %s178, 5
        %s180 = smul.addr %s179, 4
        %s181 = scalar_lea.vmem %s0, %s180
        %p182 = pneg %p40
        %p183 = pneg %p37
        %p184 = pneg %p61
        %p185 = pneg %p58
        %p186 = pneg %p82
        %p187 = pneg %p79
        %p188 = pneg %p108
        %p189 = pneg %p105
        %s190 = sand.u32 %s95, 1
        %s191 = scalar_lea.sflag [#allocation3], %s190
        %s192 = sand.u32 %s95, 1
        %s193 = smul.addr %s192, 64
        %s194 = scalar_lea.vmem [#allocation2], %s193
        %p195 = pneg %p134
        %p196 = pneg %p131
        %s197 = smul.u32 8, %s19
        %p198 = scmp.lt.s32.totalorder %s197, 15
        %s199 = scalar_select %p198, %s197, 15
        %s200 = smul.addr %s199, 4
        %s201 = scalar_lea.vmem %s4, %s200
        %s202 = smul.u32 8, %s19
        %p203 = scmp.lt.s32.totalorder %s202, 15
        %s204 = scalar_select %p203, %s202, 15
        %s205 = smul.addr %s204, 5
        %s206 = smul.addr %s205, 4
        %s207 = scalar_lea.vmem %s0, %s206
        %s208 = smul.u32 8, %s19
        %s209 = smul.u32 8, %s19
        %s210 = smul.u32 8, %s19
        %p211 = scmp.lt.s32.totalorder %s210, 15
        %s212 = scalar_select %p211, %s210, 15
        %s213 = smul.addr %s212, 4
        %s214 = scalar_lea.vmem %s4, %s213
        %s215 = smul.u32 8, %s19
        %v217 = vld [vmem:[%s207] sm:$0xff]
        %v218 = vld [vmem:[%s207 + $0x8] sm:$0xff]
        %v219 = vld [vmem:[%s207 + $0x10] sm:$0xf]
        %v220 = vld [vmem:[%s207 + $0x14] sm:$0xff]
        %v221 = vld [vmem:[%s207 + $0x1c] sm:$0xff]
        %v222 = vld [vmem:[%s207 + $0x24] sm:$0xf]
        %v223 = vld [vmem:[%s207 + $0x28] sm:$0xff]
        %v224 = vld [vmem:[%s207 + $0x30] sm:$0xff]
        %v225 = vld [vmem:[%s207 + $0x38] sm:$0xf]
        %v226 = vld [vmem:[%s207 + $0x3c] sm:$0xff]
        %v227 = vld [vmem:[%s207 + $0x44] sm:$0xff]
        %v228 = vld [vmem:[%s207 + $0x4c] sm:$0xf]
        %v229 = vld [vmem:[%s207 + $0x50] sm:$0xff]
        %v230 = vld [vmem:[%s207 + $0x58] sm:$0xff]
        %v231 = vld [vmem:[%s207 + $0x60] sm:$0xf]
        %v232 = vld [vmem:[%s207 + $0x64] sm:$0xff]
        %v233 = vld [vmem:[%s207 + $0x6c] sm:$0xff]
        %v234 = vld [vmem:[%s207 + $0x74] sm:$0xf]
        %v235 = vld [vmem:[%s207 + $0x78] sm:$0xff]
        %v236 = vld [vmem:[%s207 + $0x80] sm:$0xff]
        %v237 = vld [vmem:[%s207 + $0x88] sm:$0xf]
        %v238 = vld [vmem:[%s207 + $0x8c] sm:$0xff]
        %v239 = vld [vmem:[%s207 + $0x94] sm:$0xff]
        %v240 = vld [vmem:[%s207 + $0x9c] sm:$0xf]
        %v241 = vld [vmem:[%s1] sm:$0xf]
        %v242 = vld [vmem:[%s1 + $0x4] sm:$0xf]
        %v243 = vld [vmem:[%s1 + $0x8] sm:$0xf]
        %v244 = vld [vmem:[%s1 + $0xc] sm:$0xf]
        %v245 = vld [vmem:[%s1 + $0x10] sm:$0xf]
        %v246 = vld [vmem:[%s1 + $0x14] sm:$0xf]
        %v247 = vld [vmem:[%s1 + $0x18] sm:$0xf]
        %v248 = vld [vmem:[%s1 + $0x1c] sm:$0xf]
        %v249 = vld [vmem:[%s1 + $0x20] sm:$0xf]
        %v250 = vld [vmem:[%s1 + $0x24] sm:$0xf]
        %v251 = vld [vmem:[%s1 + $0x28] sm:$0xf]
        %v252 = vld [vmem:[%s1 + $0x2c] sm:$0xf]
        %v253 = vld [vmem:[%s1 + $0x30] sm:$0xf]
        %v254 = vld [vmem:[%s1 + $0x34] sm:$0xf]
        %v255 = vld [vmem:[%s1 + $0x38] sm:$0xf]
        %v256 = vld [vmem:[%s1 + $0x3c] sm:$0xf]
        %v257 = vld [vmem:[%s1 + $0x40] sm:$0xf]
        %v258 = vld [vmem:[%s1 + $0x44] sm:$0xf]
        %v259 = vld [vmem:[%s1 + $0x48] sm:$0xf]
        %v260 = vld [vmem:[%s1 + $0x4c] sm:$0xf]
        %v261 = vld [vmem:[%s1 + $0x50] sm:$0xf]
        %v262 = vld [vmem:[%s1 + $0x54] sm:$0xf]
        %v263 = vld [vmem:[%s1 + $0x58] sm:$0xf]
        %v264 = vld [vmem:[%s1 + $0x5c] sm:$0xf]
        %v265 = vld [vmem:[%s1 + $0x60] sm:$0xf]
        %v266 = vld [vmem:[%s1 + $0x64] sm:$0xf]
        %v267 = vld [vmem:[%s1 + $0x68] sm:$0xf]
        %v268 = vld [vmem:[%s1 + $0x6c] sm:$0xf]
        %v269 = vld [vmem:[%s1 + $0x70] sm:$0xf]
        %v270 = vld [vmem:[%s1 + $0x74] sm:$0xf]
        %v271 = vld [vmem:[%s1 + $0x78] sm:$0xf]
        %v272 = vld [vmem:[%s1 + $0x7c] sm:$0xf]
        %v273 = vld [vmem:[%s1 + $0x80] sm:$0xf]
        %v274 = vld [vmem:[%s1 + $0x84] sm:$0xf]
        %v275 = vld [vmem:[%s1 + $0x88] sm:$0xf]
        %v276 = vld [vmem:[%s1 + $0x8c] sm:$0xf]
        %v277 = vld [vmem:[%s1 + $0x90] sm:$0xf]
        %v278 = vld [vmem:[%s1 + $0x94] sm:$0xf]
        %v279 = vld [vmem:[%s1 + $0x98] sm:$0xf]
        %v280 = vld [vmem:[%s1 + $0x9c] sm:$0xf]
        %v281 = vld [vmem:[%s1 + $0xa0] sm:$0xf]
        %v282 = vld [vmem:[%s1 + $0xa4] sm:$0xf]
        %v283 = vld [vmem:[%s1 + $0xa8] sm:$0xf]
        %v284 = vld [vmem:[%s1 + $0xac] sm:$0xf]
        %v285 = vld [vmem:[%s1 + $0xb0] sm:$0xf]
        %v286 = vld [vmem:[%s1 + $0xb4] sm:$0xf]
        %v287 = vld [vmem:[%s1 + $0xb8] sm:$0xf]
        %v288 = vld [vmem:[%s1 + $0xbc] sm:$0xf]
        %v289 = vld [vmem:[%s1 + $0xc0] sm:$0xf]
        %v290 = vld [vmem:[%s1 + $0xc4] sm:$0xf]
        %v291 = vld [vmem:[%s1 + $0xc8] sm:$0xf]
        %v292 = vld [vmem:[%s1 + $0xcc] sm:$0xf]
        %v293 = vld [vmem:[%s1 + $0xd0] sm:$0xf]
        %v294 = vld [vmem:[%s1 + $0xd4] sm:$0xf]
        %v295 = vld [vmem:[%s1 + $0xd8] sm:$0xf]
        %v296 = vld [vmem:[%s1 + $0xdc] sm:$0xf]
        %v297 = vld [vmem:[%s1 + $0xe0] sm:$0xf]
        %v298 = vld [vmem:[%s1 + $0xe4] sm:$0xf]
        %v299 = vld [vmem:[%s1 + $0xe8] sm:$0xf]
        %v300 = vld [vmem:[%s1 + $0xec] sm:$0xf]
        %v301 = vld [vmem:[%s1 + $0xf0] sm:$0xf]
        %v302 = vld [vmem:[%s1 + $0xf4] sm:$0xf]
        %v303 = vld [vmem:[%s1 + $0xf8] sm:$0xf]
        %v304 = vld [vmem:[%s1 + $0xfc] sm:$0xf]
        %v305 = vld [vmem:[%s1 + $0x100] sm:$0xf]
        %v306 = vld [vmem:[%s1 + $0x104] sm:$0xf]
        %v307 = vld [vmem:[%s1 + $0x108] sm:$0xf]
        %v308 = vld [vmem:[%s1 + $0x10c] sm:$0xf]
        %v309 = vld [vmem:[%s1 + $0x110] sm:$0xf]
        %v310 = vld [vmem:[%s1 + $0x114] sm:$0xf]
        %v311 = vld [vmem:[%s1 + $0x118] sm:$0xf]
        %v312 = vld [vmem:[%s1 + $0x11c] sm:$0xf]
        %v313 = vld [vmem:[%s2] sm:$0x1]
        %v315 = vperm.slane %v313, 0
        %v341 = vunpack.c.l.b16 %v217
        %v342 = vunpack.c.h.b16 %v217
        %v343 = vunpack.c.l.b16 %v218
        %v344 = vunpack.c.h.b16 %v218
        %v345 = vunpack.c.l.b16 %v219
        %v346 = vunpack.c.l.b16 %v220
        %v347 = vunpack.c.h.b16 %v220
        %v348 = vunpack.c.l.b16 %v221
        %v349 = vunpack.c.h.b16 %v221
        %v350 = vunpack.c.l.b16 %v222
        %v351 = vunpack.c.l.b16 %v223
        %v352 = vunpack.c.h.b16 %v223
        %v353 = vunpack.c.l.b16 %v224
        %v354 = vunpack.c.h.b16 %v224
        %v355 = vunpack.c.l.b16 %v225
        %v356 = vunpack.c.l.b16 %v226
        %v357 = vunpack.c.h.b16 %v226
        %v358 = vunpack.c.l.b16 %v227
        %v359 = vunpack.c.h.b16 %v227
        %v360 = vunpack.c.l.b16 %v228
        %v361 = vunpack.c.l.b16 %v229
        %v362 = vunpack.c.h.b16 %v229
        %v363 = vunpack.c.l.b16 %v230
        %v364 = vunpack.c.h.b16 %v230
        %v365 = vunpack.c.l.b16 %v231
        %v366 = vunpack.c.l.b16 %v232
        %v367 = vunpack.c.h.b16 %v232
        %v368 = vunpack.c.l.b16 %v233
        %v369 = vunpack.c.h.b16 %v233
        %v370 = vunpack.c.l.b16 %v234
        %v371 = vunpack.c.l.b16 %v235
        %v372 = vunpack.c.h.b16 %v235
        %v373 = vunpack.c.l.b16 %v236
        %v374 = vunpack.c.h.b16 %v236
        %v375 = vunpack.c.l.b16 %v237
        %v376 = vunpack.c.l.b16 %v238
        %v377 = vunpack.c.h.b16 %v238
        %v378 = vunpack.c.l.b16 %v239
        %v379 = vunpack.c.h.b16 %v239
        %v380 = vunpack.c.l.b16 %v240
        %v381 = vpack.c.b16 %v346, %v341
        %v382 = vpack.c.b16 %v347, %v342
        %v383 = vpack.c.b16 %v348, %v343
        %v384 = vpack.c.b16 %v349, %v344
        %v385 = vpack.c.b16 %v350, %v345
        %v386 = vpack.c.b16 %v356, %v351
        %v387 = vpack.c.b16 %v357, %v352
        %v388 = vpack.c.b16 %v358, %v353
        %v389 = vpack.c.b16 %v359, %v354
        %v390 = vpack.c.b16 %v360, %v355
        %v391 = vpack.c.b16 %v366, %v361
        %v392 = vpack.c.b16 %v367, %v362
        %v393 = vpack.c.b16 %v368, %v363
        %v394 = vpack.c.b16 %v369, %v364
        %v395 = vpack.c.b16 %v370, %v365
        %v396 = vpack.c.b16 %v376, %v371
        %v397 = vpack.c.b16 %v377, %v372
        %v398 = vpack.c.b16 %v378, %v373
        %v399 = vpack.c.b16 %v379, %v374
        %v400 = vpack.c.b16 %v380, %v375
        %v489 = vunpack.c.l.b16 %v241
        %v490 = vunpack.c.l.b16 %v242
        %v491 = vunpack.c.l.b16 %v243
        %v492 = vunpack.c.l.b16 %v244
        %v493 = vunpack.c.l.b16 %v245
        %v494 = vunpack.c.l.b16 %v246
        %v495 = vunpack.c.l.b16 %v247
        %v496 = vunpack.c.l.b16 %v248
        %v497 = vunpack.c.l.b16 %v249
        %v498 = vunpack.c.l.b16 %v250
        %v499 = vunpack.c.l.b16 %v251
        %v500 = vunpack.c.l.b16 %v252
        %v501 = vunpack.c.l.b16 %v253
        %v502 = vunpack.c.l.b16 %v254
        %v503 = vunpack.c.l.b16 %v255
        %v504 = vunpack.c.l.b16 %v256
        %v505 = vunpack.c.l.b16 %v257
        %v506 = vunpack.c.l.b16 %v258
        %v507 = vunpack.c.l.b16 %v259
        %v508 = vunpack.c.l.b16 %v260
        %v509 = vunpack.c.l.b16 %v261
        %v510 = vunpack.c.l.b16 %v262
        %v511 = vunpack.c.l.b16 %v263
        %v512 = vunpack.c.l.b16 %v264
        %v513 = vunpack.c.l.b16 %v265
        %v514 = vunpack.c.l.b16 %v266
        %v515 = vunpack.c.l.b16 %v267
        %v516 = vunpack.c.l.b16 %v268
        %v517 = vunpack.c.l.b16 %v269
        %v518 = vunpack.c.l.b16 %v270
        %v519 = vunpack.c.l.b16 %v271
        %v520 = vunpack.c.l.b16 %v272
        %v521 = vunpack.c.l.b16 %v273
        %v522 = vunpack.c.l.b16 %v274
        %v523 = vunpack.c.l.b16 %v275
        %v524 = vunpack.c.l.b16 %v276
        %v525 = vunpack.c.l.b16 %v277
        %v526 = vunpack.c.l.b16 %v278
        %v527 = vunpack.c.l.b16 %v279
        %v528 = vunpack.c.l.b16 %v280
        %v529 = vunpack.c.l.b16 %v281
        %v530 = vunpack.c.l.b16 %v282
        %v531 = vunpack.c.l.b16 %v283
        %v532 = vunpack.c.l.b16 %v284
        %v533 = vunpack.c.l.b16 %v285
        %v534 = vunpack.c.l.b16 %v286
        %v535 = vunpack.c.l.b16 %v287
        %v536 = vunpack.c.l.b16 %v288
        %v537 = vunpack.c.l.b16 %v289
        %v538 = vunpack.c.l.b16 %v290
        %v539 = vunpack.c.l.b16 %v291
        %v540 = vunpack.c.l.b16 %v292
        %v541 = vunpack.c.l.b16 %v293
        %v542 = vunpack.c.l.b16 %v294
        %v543 = vunpack.c.l.b16 %v295
        %v544 = vunpack.c.l.b16 %v296
        %v545 = vunpack.c.l.b16 %v297
        %v546 = vunpack.c.l.b16 %v298
        %v547 = vunpack.c.l.b16 %v299
        %v548 = vunpack.c.l.b16 %v300
        %v549 = vunpack.c.l.b16 %v301
        %v550 = vunpack.c.l.b16 %v302
        %v551 = vunpack.c.l.b16 %v303
        %v552 = vunpack.c.l.b16 %v304
        %v553 = vunpack.c.l.b16 %v305
        %v554 = vunpack.c.l.b16 %v306
        %v555 = vunpack.c.l.b16 %v307
        %v556 = vunpack.c.l.b16 %v308
        %v557 = vunpack.c.l.b16 %v309
        %v558 = vunpack.c.l.b16 %v310
        %v559 = vunpack.c.l.b16 %v311
        %v560 = vunpack.c.l.b16 %v312
        %v561 = vpack.c.b16 %v490, %v489
        %v562 = vpack.c.b16 %v492, %v491
        %v563 = vpack.c.b16 %v494, %v493
        %v564 = vpack.c.b16 %v496, %v495
        %v565 = vpack.c.b16 %v498, %v497
        %v566 = vpack.c.b16 %v500, %v499
        %v567 = vpack.c.b16 %v502, %v501
        %v568 = vpack.c.b16 %v504, %v503
        %v569 = vpack.c.b16 %v506, %v505
        %v570 = vpack.c.b16 %v508, %v507
        %v571 = vpack.c.b16 %v510, %v509
        %v572 = vpack.c.b16 %v512, %v511
        %v573 = vpack.c.b16 %v514, %v513
        %v574 = vpack.c.b16 %v516, %v515
        %v575 = vpack.c.b16 %v518, %v517
        %v576 = vpack.c.b16 %v520, %v519
        %v577 = vpack.c.b16 %v522, %v521
        %v578 = vpack.c.b16 %v524, %v523
        %v579 = vpack.c.b16 %v526, %v525
        %v580 = vpack.c.b16 %v528, %v527
        %v581 = vpack.c.b16 %v530, %v529
        %v582 = vpack.c.b16 %v532, %v531
        %v583 = vpack.c.b16 %v534, %v533
        %v584 = vpack.c.b16 %v536, %v535
        %v585 = vpack.c.b16 %v538, %v537
        %v586 = vpack.c.b16 %v540, %v539
        %v587 = vpack.c.b16 %v542, %v541
        %v588 = vpack.c.b16 %v544, %v543
        %v589 = vpack.c.b16 %v546, %v545
        %v590 = vpack.c.b16 %v548, %v547
        %v591 = vpack.c.b16 %v550, %v549
        %v592 = vpack.c.b16 %v552, %v551
        %v593 = vpack.c.b16 %v554, %v553
        %v594 = vpack.c.b16 %v556, %v555
        %v595 = vpack.c.b16 %v558, %v557
        %v596 = vpack.c.b16 %v560, %v559
        %vm633 = vcmask 523264
        %v635 = vsel %vm633, %v385, 0
        %v638 = vsel %vm633, %v390, 0
        %v641 = vsel %vm633, %v395, 0
        %v644 = vsel %vm633, %v400, 0
        %646 = vmatpush.bf16.msra.mxu0 %v568
        %647 = vmatpush.bf16.msra.mxu0 %v567
        %648 = vmatpush.bf16.msra.mxu0 %v566
        %649 = vmatpush.bf16.msra.mxu0 %v565
        %650 = vmatpush.bf16.msra.mxu0 %v564
        %651 = vmatpush.bf16.msra.mxu0 %v563
        %652 = vmatpush.bf16.msra.mxu0 %v562
        %653 = vmatpush.bf16.msra.mxu0 %v561
        %654 = vmatmul.bf16.gmra.mxu0 %v381
        %v655 = vpop.f32.mrf.mxu0
        %v656 = vadd.f32 %v315, %v655
        %v657 = vpop.f32.mrf.mxu0
        %v658 = vadd.f32 %v315, %v657
        %659 = vmatmul.bf16.gmra.mxu0 %v386
        %v660 = vpop.f32.mrf.mxu0
        %v661 = vadd.f32 %v315, %v660
        %v662 = vpop.f32.mrf.mxu0
        %v663 = vadd.f32 %v315, %v662
        %664 = vmatmul.bf16.gmra.mxu0 %v391
        %v665 = vpop.f32.mrf.mxu0
        %v666 = vadd.f32 %v315, %v665
        %v667 = vpop.f32.mrf.mxu0
        %v668 = vadd.f32 %v315, %v667
        %669 = vmatmul.bf16.gmra.mxu0 %v396
        %v670 = vpop.f32.mrf.mxu0
        %v671 = vadd.f32 %v315, %v670
        %v672 = vpop.f32.mrf.mxu0
        %v673 = vadd.f32 %v315, %v672
        %674 = vdwg.mxu0
        %675 = vmatpush.bf16.msra.mxu0 %v576
        %676 = vmatpush.bf16.msra.mxu0 %v575
        %677 = vmatpush.bf16.msra.mxu0 %v574
        %678 = vmatpush.bf16.msra.mxu0 %v573
        %679 = vmatpush.bf16.msra.mxu0 %v572
        %680 = vmatpush.bf16.msra.mxu0 %v571
        %681 = vmatpush.bf16.msra.mxu0 %v570
        %682 = vmatpush.bf16.msra.mxu0 %v569
        %683 = vmatmul.bf16.gmra.mxu0 %v382
        %v684 = vpop.f32.mrf.mxu0
        %v685 = vadd.f32 %v656, %v684
        %v686 = vpop.f32.mrf.mxu0
        %v687 = vadd.f32 %v658, %v686
        %688 = vmatmul.bf16.gmra.mxu0 %v387
        %v689 = vpop.f32.mrf.mxu0
        %v690 = vadd.f32 %v661, %v689
        %v691 = vpop.f32.mrf.mxu0
        %v692 = vadd.f32 %v663, %v691
        %693 = vmatmul.bf16.gmra.mxu0 %v392
        %v694 = vpop.f32.mrf.mxu0
        %v695 = vadd.f32 %v666, %v694
        %v696 = vpop.f32.mrf.mxu0
        %v697 = vadd.f32 %v668, %v696
        %698 = vmatmul.bf16.gmra.mxu0 %v397
        %v699 = vpop.f32.mrf.mxu0
        %v700 = vadd.f32 %v671, %v699
        %v701 = vpop.f32.mrf.mxu0
        %v702 = vadd.f32 %v673, %v701
        %703 = vdwg.mxu0
        %704 = vmatpush.bf16.msra.mxu0 %v584
        %705 = vmatpush.bf16.msra.mxu0 %v583
        %706 = vmatpush.bf16.msra.mxu0 %v582
        %707 = vmatpush.bf16.msra.mxu0 %v581
        %708 = vmatpush.bf16.msra.mxu0 %v580
        %709 = vmatpush.bf16.msra.mxu0 %v579
        %710 = vmatpush.bf16.msra.mxu0 %v578
        %711 = vmatpush.bf16.msra.mxu0 %v577
        %712 = vmatmul.bf16.gmra.mxu0 %v383
        %v713 = vpop.f32.mrf.mxu0
        %v714 = vadd.f32 %v685, %v713
        %v715 = vpop.f32.mrf.mxu0
        %v716 = vadd.f32 %v687, %v715
        %717 = vmatmul.bf16.gmra.mxu0 %v388
        %v718 = vpop.f32.mrf.mxu0
        %v719 = vadd.f32 %v690, %v718
        %v720 = vpop.f32.mrf.mxu0
        %v721 = vadd.f32 %v692, %v720
        %722 = vmatmul.bf16.gmra.mxu0 %v393
        %v723 = vpop.f32.mrf.mxu0
        %v724 = vadd.f32 %v695, %v723
        %v725 = vpop.f32.mrf.mxu0
        %v726 = vadd.f32 %v697, %v725
        %727 = vmatmul.bf16.gmra.mxu0 %v398
        %v728 = vpop.f32.mrf.mxu0
        %v729 = vadd.f32 %v700, %v728
        %v730 = vpop.f32.mrf.mxu0
        %v731 = vadd.f32 %v702, %v730
        %732 = vdwg.mxu0
        %733 = vmatpush.bf16.msra.mxu0 %v592
        %734 = vmatpush.bf16.msra.mxu0 %v591
        %735 = vmatpush.bf16.msra.mxu0 %v590
        %736 = vmatpush.bf16.msra.mxu0 %v589
        %737 = vmatpush.bf16.msra.mxu0 %v588
        %738 = vmatpush.bf16.msra.mxu0 %v587
        %739 = vmatpush.bf16.msra.mxu0 %v586
        %740 = vmatpush.bf16.msra.mxu0 %v585
        %741 = vmatmul.bf16.gmra.mxu0 %v384
        %v742 = vpop.f32.mrf.mxu0
        %v743 = vadd.f32 %v714, %v742
        %v744 = vpop.f32.mrf.mxu0
        %v745 = vadd.f32 %v716, %v744
        %746 = vmatmul.bf16.gmra.mxu0 %v389
        %v747 = vpop.f32.mrf.mxu0
        %v748 = vadd.f32 %v719, %v747
        %v749 = vpop.f32.mrf.mxu0
        %v750 = vadd.f32 %v721, %v749
        %751 = vmatmul.bf16.gmra.mxu0 %v394
        %v752 = vpop.f32.mrf.mxu0
        %v753 = vadd.f32 %v724, %v752
        %v754 = vpop.f32.mrf.mxu0
        %v755 = vadd.f32 %v726, %v754
        %756 = vmatmul.bf16.gmra.mxu0 %v399
        %v757 = vpop.f32.mrf.mxu0
        %v758 = vadd.f32 %v729, %v757
        %v759 = vpop.f32.mrf.mxu0
        %v760 = vadd.f32 %v731, %v759
        %761 = vdwg.mxu0
        %762 = vmatpush.bf16.msra.mxu0 0
        %763 = vmatpush.bf16.msra.mxu0 0
        %764 = vmatpush.bf16.msra.mxu0 0
        %765 = vmatpush.bf16.msra.mxu0 0
        %766 = vmatpush.bf16.msra.mxu0 %v596
        %767 = vmatpush.bf16.msra.mxu0 %v595
        %768 = vmatpush.bf16.msra.mxu0 %v594
        %769 = vmatpush.bf16.msra.mxu0 %v593
        %770 = vmatmul.bf16.gmra.mxu0 %v635
        %v771 = vpop.f32.mrf.mxu0
        %v772 = vadd.f32 %v743, %v771
        %v773 = vpop.f32.mrf.mxu0
        %v774 = vadd.f32 %v745, %v773
        %775 = vmatmul.bf16.gmra.mxu0 %v638
        %v776 = vpop.f32.mrf.mxu0
        %v777 = vadd.f32 %v748, %v776
        %v778 = vpop.f32.mrf.mxu0
        %v779 = vadd.f32 %v750, %v778
        %780 = vmatmul.bf16.gmra.mxu0 %v641
        %v781 = vpop.f32.mrf.mxu0
        %v782 = vadd.f32 %v753, %v781
        %v783 = vpop.f32.mrf.mxu0
        %v784 = vadd.f32 %v755, %v783
        %785 = vmatmul.bf16.gmra.mxu0 %v644
        %v786 = vpop.f32.mrf.mxu0
        %v787 = vadd.f32 %v758, %v786
        %v788 = vpop.f32.mrf.mxu0
        %v789 = vadd.f32 %v760, %v788
        %790 = vdwg.mxu0
        %791 = vst [vmem:[%s194] sm:$0xff] %v772
        %792 = vst [vmem:[%s194 + $0x8] sm:$0xff] %v774
        %793 = vst [vmem:[%s194 + $0x10] sm:$0xff] %v777
        %794 = vst [vmem:[%s194 + $0x18] sm:$0xff] %v779
        %795 = vst [vmem:[%s194 + $0x20] sm:$0xff] %v782
        %796 = vst [vmem:[%s194 + $0x28] sm:$0xff] %v784
        %797 = vst [vmem:[%s194 + $0x30] sm:$0xff] %v787
        %798 = vst [vmem:[%s194 + $0x38] sm:$0xff] %v789
        %v799 = vmax.f32 %v772, 0.0
        %v800 = vmax.f32 %v774, 0.0
        %v801 = vmax.f32 %v777, 0.0
        %v802 = vmax.f32 %v779, 0.0
        %v803 = vmax.f32 %v782, 0.0
        %v804 = vmax.f32 %v784, 0.0
        %v805 = vmax.f32 %v787, 0.0
        %v806 = vmax.f32 %v789, 0.0
        %v807 = vpack.c.bf16 %v799, %v799
        %v808 = vpack.c.bf16 %v800, %v800
        %v809 = vpack.c.bf16 %v801, %v801
        %v810 = vpack.c.bf16 %v802, %v802
        %v811 = vpack.c.bf16 %v803, %v803
        %v812 = vpack.c.bf16 %v804, %v804
        %v813 = vpack.c.bf16 %v805, %v805
        %v814 = vpack.c.bf16 %v806, %v806
        %815 = vst [vmem:[%s214] sm:$0xf] %v807
        %816 = vst [vmem:[%s214 + $0x4] sm:$0xf] %v808
        %817 = vst [vmem:[%s214 + $0x8] sm:$0xf] %v809
        %818 = vst [vmem:[%s214 + $0xc] sm:$0xf] %v810
        %819 = vst [vmem:[%s214 + $0x10] sm:$0xf] %v811
        %820 = vst [vmem:[%s214 + $0x14] sm:$0xf] %v812
        %821 = vst [vmem:[%s214 + $0x18] sm:$0xf] %v813
        %822 = vst [vmem:[%s214 + $0x1c] sm:$0xf] %v814
        %s823 = sand.u32 %s95, 1
        %s824 = scalar_lea.sflag [#allocation3], %s823
        %s825 = sand.u32 %s95, 1
        %s826 = smul.addr %s825, 64
        %s827 = scalar_lea.vmem [#allocation2], %s826
        %s828 = smul.u32 8, %s19
        %p829 = scmp.lt.s32.totalorder %s828, 15
        %s830 = scalar_select %p829, %s828, 15
        %s831 = smul.addr %s830, 4
        %s832 = scalar_lea.vmem %s4, %s831
        // Predicated region
        $region33: #{cropped_vgg19.6} parent=31 // pred_check
          %p833 = pneg %p105
        $region34: #{cropped_vgg19.6} parent=31 // pred_check_branch
          %835 = sbr.rel (%p833) target = $region36
        $region35: #{cropped_vgg19.6} parent=31 // pred_region
          %s836 = smul.u32 8, %s19
          %838 = vsyncadd %s824, 0
          %s839 = smul.addr %s836, 8
          %s840 = scalar_lea.hbm %s3, %s839
          %s841 = sshll.u32 %s827, 4
          %s842 = int_to_ptr.vmem [resolvable:$true] %s841
          %s843 = sshll.u32 %s840, 4
          %s844 = int_to_ptr.hbm [resolvable:$true] %s843
          %849 = dma.vmem_to_hbm [thread:$0]  %s842, 1024, %s844, %s824, 128, 128, 8
        $region36: #{cropped_vgg19.6} parent=31 // pred_fallthru
          _
        // Predicated region
        $region37: #{cropped_vgg19.6} parent=31 // pred_check
          %p850 = pneg %p131
        $region38: #{cropped_vgg19.6} parent=31 // pred_check_branch
          %852 = sbr.rel (%p850) target = $region40
        $region39: #{cropped_vgg19.6} parent=31 // pred_region
          %s853 = smul.u32 8, %s19
        $region40: #{cropped_vgg19.6} parent=31 // pred_fallthru
          _
      $region32: #{cropped_vgg19.6} parent=5 // pred_fallthru
        _
      %p854 = scmp.le.s32.totalorder 2, %s14
      // Predicated region
      $region41: #{cropped_vgg19.6} parent=5 // pred_check
        %p855 = pneg %p854
      $region42: #{cropped_vgg19.6} parent=5 // pred_check_branch
        %857 = sbr.rel (%p855) target = $region44
      $region43: #{cropped_vgg19.6} parent=5 // pred_region
        %s858 = ssub.s32 %s14, 2
        // Predicated region
        $region45: #{cropped_vgg19.6} parent=43 // pred_check
          %p859 = pneg %p111
        $region46: #{cropped_vgg19.6} parent=43 // pred_check_branch
          %861 = sbr.rel (%p859) target = $region48
        $region47: #{cropped_vgg19.6} parent=43 // pred_region
          %s862 = sand.u32 %s96, 1
          %s863 = scalar_lea.sflag [#allocation3], %s862
          %s864 = sand.u32 %s96, 1
          %s865 = smul.addr %s864, 64
          %s866 = scalar_lea.vmem [#allocation2], %s865
          %868 = dma.done %s863, 1024
        $region48: #{cropped_vgg19.6} parent=43 // pred_fallthru
          _
        // Predicated region
        $region49: #{cropped_vgg19.6} parent=43 // pred_check
          %p869 = pneg %p137
        $region50: #{cropped_vgg19.6} parent=43 // pred_check_branch
          %871 = sbr.rel (%p869) target = $region52
        $region51: #{cropped_vgg19.6} parent=43 // pred_region
          %s872 = smul.u32 8, %s20
          %p873 = scmp.lt.s32.totalorder %s872, 15
          %s874 = scalar_select %p873, %s872, 15
          %s875 = smul.addr %s874, 4
          %s876 = scalar_lea.vmem %s4, %s875
        $region52: #{cropped_vgg19.6} parent=43 // pred_fallthru
          _
      $region44: #{cropped_vgg19.6} parent=5 // pred_fallthru
        _
    $region6: #{cropped_vgg19.6} parent=1 // loop_footer
      %s18 = sadd.s32 1, %s14
    $region7: #{cropped_vgg19.6} parent=1 // loop_footer_branch
      %13 = sbr.rel target = $region3
    $region8: #{cropped_vgg19.6} parent=1 // loop_exit
      _
    %877 = vsyncpa [#allocation3], 1
    %s878 = scalar_lea.sflag [#allocation3], 1
    %879 = vsyncpa %s878, 1

// kernel: cropped_vgg19.7
$region0: #{cropped_vgg19.7}
  #allocation0 [shape = 'u32[]', space=smem, size = 0x4, offset = 0x4, fixed_abs, tag = 'smem constant byte address 0x4 - core index']
  #allocation1 [shape = 'u32[72,128]{1,0:T(1,128)}', space=vmem, size = 0x9000, scoped, tag = 'internal scratch']
  %s0 = inlined_call_operand.vmem [shape: bf16[128,1152], index: 0, kind: input, shape index: {}]
  %s1 = inlined_call_operand.vmem [shape: bf16[1152,128], index: 1, kind: input, shape index: {}]
  %s2 = inlined_call_operand.vmem [shape: f32[1,128], index: 2, kind: input, shape index: {}]
  %s3 = inlined_call_operand.vmem [shape: bf16[128,128], index: 3, kind: output, shape index: {}]
  %s4 = sld [smem:[#allocation0]]
  $region45: #{cropped_vgg19.7} parent=0
    _
  %s6 = ssub.s32 1, %s4
  %s7 = scalar_select 0, %s6, %s4
  loop: start=0, step=1, limit=4
  $region2: #{cropped_vgg19.7} parent=0 // loop_pre_header
    _
  $region3: #{cropped_vgg19.7} parent=0 // loop_header
    %s9 = sphi 0, %s13
    %p10 = scmp.ge.s32.totalorder %s9, 4
    %s19 = sphi 0, %s21
    %s22 = sphi 0, %s19
    %s23 = sphi 0, %s22
    %s39 = sphi 0, %s23
    %s43 = sphi 0, %s43
    %s45 = sphi 0, %s43
    %s46 = sphi 0, %s45
    %s60 = sphi 0, %s46
    %s64 = sphi 0, %s64
    %s66 = sphi 0, %s64
    %s67 = sphi 0, %s66
    %s81 = sphi 0, %s67
    %s87 = sphi 0, %s89
    %s90 = sphi 0, %s87
    %s91 = sphi 0, %s90
    %s107 = sphi 0, %s91
  $region4: #{cropped_vgg19.7} parent=0 // loop_header_branch
    %12 = sbr.rel (%p10) target = $region8
  $region5: #{cropped_vgg19.7} parent=0 // loop_body
    %s14 = ssub.s32 %s9, 1
    %s15 = ssub.s32 %s9, 2
    %s16 = sadd.s32 %s9, 1
    %s17 = ssub.s32 %s9, %s16
    %p18 = scmp.eq.s32.totalorder %s17, 0
    %s20 = sadd.s32 %s19, 1
    %s21 = scalar_select %p18, %s19, %s20
    %p24 = pneg %p18
    %p25 = scmp.eq.s32.totalorder %s9, 1
    %p26 = por %p24, %p25
    %p27 = scmp.ne.s32.totalorder %s19, %s22
    %p28 = scmp.eq.s32.totalorder %s9, 0
    %p29 = por %p27, %p28
    %p30 = scmp.ne.s32.totalorder %s19, %s22
    %p31 = scmp.eq.s32.totalorder %s14, 1
    %p32 = por %p30, %p31
    %p33 = scmp.ne.s32.totalorder %s22, %s23
    %p34 = scmp.eq.s32.totalorder %s14, 0
    %p35 = por %p33, %p34
    %p36 = scmp.ne.s32.totalorder %s22, %s23
    %p37 = scmp.eq.s32.totalorder %s15, 1
    %p38 = por %p36, %p37
    %p40 = scmp.ne.s32.totalorder %s23, %s39
    %p41 = scmp.eq.s32.totalorder %s15, 0
    %p42 = por %p40, %p41
    %s44 = sadd.s32 %s43, 1
    %p47 = scmp.eq.s32.totalorder %s9, 1
    %p48 = scmp.ne.s32.totalorder %s43, %s45
    %p49 = scmp.eq.s32.totalorder %s9, 0
    %p50 = por %p48, %p49
    %p51 = scmp.ne.s32.totalorder %s43, %s45
    %p52 = scmp.eq.s32.totalorder %s14, 1
    %p53 = por %p51, %p52
    %p54 = scmp.ne.s32.totalorder %s45, %s46
    %p55 = scmp.eq.s32.totalorder %s14, 0
    %p56 = por %p54, %p55
    %p57 = scmp.ne.s32.totalorder %s45, %s46
    %p58 = scmp.eq.s32.totalorder %s15, 1
    %p59 = por %p57, %p58
    %p61 = scmp.ne.s32.totalorder %s46, %s60
    %p62 = scmp.eq.s32.totalorder %s15, 0
    %p63 = por %p61, %p62
    %s65 = sadd.s32 %s64, 1
    %p68 = scmp.eq.s32.totalorder %s9, 1
    %p69 = scmp.ne.s32.totalorder %s64, %s66
    %p70 = scmp.eq.s32.totalorder %s9, 0
    %p71 = por %p69, %p70
    %p72 = scmp.ne.s32.totalorder %s64, %s66
    %p73 = scmp.eq.s32.totalorder %s14, 1
    %p74 = por %p72, %p73
    %p75 = scmp.ne.s32.totalorder %s66, %s67
    %p76 = scmp.eq.s32.totalorder %s14, 0
    %p77 = por %p75, %p76
    %p78 = scmp.ne.s32.totalorder %s66, %s67
    %p79 = scmp.eq.s32.totalorder %s15, 1
    %p80 = por %p78, %p79
    %p82 = scmp.ne.s32.totalorder %s67, %s81
    %p83 = scmp.eq.s32.totalorder %s15, 0
    %p84 = por %p82, %p83
    %s85 = ssub.s32 %s9, %s16
    %p86 = scmp.eq.s32.totalorder %s85, 0
    %s88 = sadd.s32 %s87, 1
    %s89 = scalar_select %p86, %s87, %s88
    %p92 = pneg %p86
    %p93 = scmp.eq.s32.totalorder %s9, 1
    %p94 = por %p92, %p93
    %p95 = scmp.ne.s32.totalorder %s87, %s90
    %p96 = scmp.eq.s32.totalorder %s9, 0
    %p97 = por %p95, %p96
    %p98 = scmp.ne.s32.totalorder %s87, %s90
    %p99 = scmp.eq.s32.totalorder %s14, 1
    %p100 = por %p98, %p99
    %p101 = scmp.ne.s32.totalorder %s90, %s91
    %p102 = scmp.eq.s32.totalorder %s14, 0
    %p103 = por %p101, %p102
    %p104 = scmp.ne.s32.totalorder %s90, %s91
    %p105 = scmp.eq.s32.totalorder %s15, 1
    %p106 = por %p104, %p105
    %p108 = scmp.ne.s32.totalorder %s91, %s107
    %p109 = scmp.eq.s32.totalorder %s15, 0
    %p110 = por %p108, %p109
    %p111 = scmp.le.s32.totalorder 1, %s9
    %p112 = scmp.lt.s32.totalorder %s9, 3
    %p113 = pnand %p111, %p112
    %p114 = pneg %p113
    // Predicated region
    $region9: #{cropped_vgg19.7} parent=5 // pred_check
      _
    $region10: #{cropped_vgg19.7} parent=5 // pred_check_branch
      %116 = sbr.rel (%p113) target = $region12
    $region11: #{cropped_vgg19.7} parent=5 // pred_region
      %s117 = ssub.s32 %s9, 1
      // Predicated region
      $region13: #{cropped_vgg19.7} parent=11 // pred_check
        %p118 = pneg %p56
      $region14: #{cropped_vgg19.7} parent=11 // pred_check_branch
        %120 = sbr.rel (%p118) target = $region16
      $region15: #{cropped_vgg19.7} parent=11 // pred_region
        _
      $region16: #{cropped_vgg19.7} parent=11 // pred_fallthru
        _
      // Predicated region
      $region17: #{cropped_vgg19.7} parent=11 // pred_check
        %p121 = pneg %p77
      $region18: #{cropped_vgg19.7} parent=11 // pred_check_branch
        %123 = sbr.rel (%p121) target = $region20
      $region19: #{cropped_vgg19.7} parent=11 // pred_region
        _
      $region20: #{cropped_vgg19.7} parent=11 // pred_fallthru
        _
    $region12: #{cropped_vgg19.7} parent=5 // pred_fallthru
      _
    %p124 = scmp.lt.s32.totalorder %s9, 2
    // Predicated region
    $region21: #{cropped_vgg19.7} parent=5 // pred_check
      %p125 = pneg %p124
    $region22: #{cropped_vgg19.7} parent=5 // pred_check_branch
      %127 = sbr.rel (%p125) target = $region24
    $region23: #{cropped_vgg19.7} parent=5 // pred_region
      // Predicated region
      $region25: #{cropped_vgg19.7} parent=23 // pred_check
        %p128 = pneg %p29
      $region26: #{cropped_vgg19.7} parent=23 // pred_check_branch
        %130 = sbr.rel (%p128) target = $region28
      $region27: #{cropped_vgg19.7} parent=23 // pred_region
        %s131 = smul.u32 8, %s9
        %p132 = scmp.lt.s32.totalorder %s131, 15
        %s133 = scalar_select %p132, %s131, 15
        %s134 = smul.addr %s133, 9
        %s135 = smul.addr %s134, 4
        %s136 = scalar_lea.vmem %s0, %s135
        %s137 = smul.u32 8, %s9
      $region28: #{cropped_vgg19.7} parent=23 // pred_fallthru
        _
    $region24: #{cropped_vgg19.7} parent=5 // pred_fallthru
      _
    %p138 = scmp.le.s32.totalorder 1, %s9
    %p139 = scmp.lt.s32.totalorder %s9, 3
    %p140 = pnand %p138, %p139
    %p141 = pneg %p140
    // Predicated region
    $region29: #{cropped_vgg19.7} parent=5 // pred_check
      _
    $region30: #{cropped_vgg19.7} parent=5 // pred_check_branch
      %143 = sbr.rel (%p140) target = $region32
    $region31: #{cropped_vgg19.7} parent=5 // pred_region
      %s144 = ssub.s32 %s9, 1
      %s145 = smul.u32 8, %s14
      %p146 = scmp.lt.s32.totalorder %s145, 15
      %s147 = scalar_select %p146, %s145, 15
      %s148 = smul.addr %s147, 9
      %s149 = smul.addr %s148, 4
      %s150 = scalar_lea.vmem %s0, %s149
      %p151 = pneg %p35
      %p152 = pneg %p32
      %p153 = pneg %p56
      %p154 = pneg %p53
      %p155 = pneg %p77
      %p156 = pneg %p74
      %p157 = pneg %p103
      %p158 = pneg %p100
      %s159 = smul.u32 8, %s14
      %p160 = scmp.lt.s32.totalorder %s159, 15
      %s161 = scalar_select %p160, %s159, 15
      %s162 = smul.addr %s161, 4
      %s163 = scalar_lea.vmem %s3, %s162
      %s164 = smul.u32 8, %s14
      %p165 = scmp.lt.s32.totalorder %s164, 15
      %s166 = scalar_select %p165, %s164, 15
      %s167 = smul.addr %s166, 9
      %s168 = smul.addr %s167, 4
      %s169 = scalar_lea.vmem %s0, %s168
      %s170 = smul.u32 8, %s14
      %s171 = smul.u32 8, %s14
      %p172 = scmp.lt.s32.totalorder %s171, 15
      %s173 = scalar_select %p172, %s171, 15
      %s174 = smul.addr %s173, 4
      %s175 = scalar_lea.vmem %s3, %s174
      %s176 = smul.u32 8, %s14
      %v177 = vld [vmem:[%s169] sm:$0xff]
      %v178 = vld [vmem:[%s169 + $0x8] sm:$0xff]
      %v179 = vld [vmem:[%s169 + $0x10] sm:$0xff]
      %v180 = vld [vmem:[%s169 + $0x18] sm:$0xff]
      %v181 = vld [vmem:[%s169 + $0x20] sm:$0xf]
      %v182 = vld [vmem:[%s169 + $0x24] sm:$0xff]
      %v183 = vld [vmem:[%s169 + $0x2c] sm:$0xff]
      %v184 = vld [vmem:[%s169 + $0x34] sm:$0xff]
      %v185 = vld [vmem:[%s169 + $0x3c] sm:$0xff]
      %v186 = vld [vmem:[%s169 + $0x44] sm:$0xf]
      %v187 = vld [vmem:[%s169 + $0x48] sm:$0xff]
      %v188 = vld [vmem:[%s169 + $0x50] sm:$0xff]
      %v189 = vld [vmem:[%s169 + $0x58] sm:$0xff]
      %v190 = vld [vmem:[%s169 + $0x60] sm:$0xff]
      %v191 = vld [vmem:[%s169 + $0x68] sm:$0xf]
      %v192 = vld [vmem:[%s169 + $0x6c] sm:$0xff]
      %v193 = vld [vmem:[%s169 + $0x74] sm:$0xff]
      %v194 = vld [vmem:[%s169 + $0x7c] sm:$0xff]
      %v195 = vld [vmem:[%s169 + $0x84] sm:$0xff]
      %v196 = vld [vmem:[%s169 + $0x8c] sm:$0xf]
      %v197 = vld [vmem:[%s169 + $0x90] sm:$0xff]
      %v198 = vld [vmem:[%s169 + $0x98] sm:$0xff]
      %v199 = vld [vmem:[%s169 + $0xa0] sm:$0xff]
      %v200 = vld [vmem:[%s169 + $0xa8] sm:$0xff]
      %v201 = vld [vmem:[%s169 + $0xb0] sm:$0xf]
      %v202 = vld [vmem:[%s169 + $0xb4] sm:$0xff]
      %v203 = vld [vmem:[%s169 + $0xbc] sm:$0xff]
      %v204 = vld [vmem:[%s169 + $0xc4] sm:$0xff]
      %v205 = vld [vmem:[%s169 + $0xcc] sm:$0xff]
      %v206 = vld [vmem:[%s169 + $0xd4] sm:$0xf]
      %v207 = vld [vmem:[%s169 + $0xd8] sm:$0xff]
      %v208 = vld [vmem:[%s169 + $0xe0] sm:$0xff]
      %v209 = vld [vmem:[%s169 + $0xe8] sm:$0xff]
      %v210 = vld [vmem:[%s169 + $0xf0] sm:$0xff]
      %v211 = vld [vmem:[%s169 + $0xf8] sm:$0xf]
      %v212 = vld [vmem:[%s169 + $0xfc] sm:$0xff]
      %v213 = vld [vmem:[%s169 + $0x104] sm:$0xff]
      %v214 = vld [vmem:[%s169 + $0x10c] sm:$0xff]
      %v215 = vld [vmem:[%s169 + $0x114] sm:$0xff]
      %v216 = vld [vmem:[%s169 + $0x11c] sm:$0xf]
      %v217 = vld [vmem:[%s1] sm:$0xf]
      %v218 = vld [vmem:[%s1 + $0x4] sm:$0xf]
      %v219 = vld [vmem:[%s1 + $0x8] sm:$0xf]
      %v220 = vld [vmem:[%s1 + $0xc] sm:$0xf]
      %v221 = vld [vmem:[%s1 + $0x10] sm:$0xf]
      %v222 = vld [vmem:[%s1 + $0x14] sm:$0xf]
      %v223 = vld [vmem:[%s1 + $0x18] sm:$0xf]
      %v224 = vld [vmem:[%s1 + $0x1c] sm:$0xf]
      %v225 = vld [vmem:[%s1 + $0x20] sm:$0xf]
      %v226 = vld [vmem:[%s1 + $0x24] sm:$0xf]
      %v227 = vld [vmem:[%s1 + $0x28] sm:$0xf]
      %v228 = vld [vmem:[%s1 + $0x2c] sm:$0xf]
      %v229 = vld [vmem:[%s1 + $0x30] sm:$0xf]
      %v230 = vld [vmem:[%s1 + $0x34] sm:$0xf]
      %v231 = vld [vmem:[%s1 + $0x38] sm:$0xf]
      %v232 = vld [vmem:[%s1 + $0x3c] sm:$0xf]
      %v233 = vld [vmem:[%s1 + $0x40] sm:$0xf]
      %v234 = vld [vmem:[%s1 + $0x44] sm:$0xf]
      %v235 = vld [vmem:[%s1 + $0x48] sm:$0xf]
      %v236 = vld [vmem:[%s1 + $0x4c] sm:$0xf]
      %v237 = vld [vmem:[%s1 + $0x50] sm:$0xf]
      %v238 = vld [vmem:[%s1 + $0x54] sm:$0xf]
      %v239 = vld [vmem:[%s1 + $0x58] sm:$0xf]
      %v240 = vld [vmem:[%s1 + $0x5c] sm:$0xf]
      %v241 = vld [vmem:[%s1 + $0x60] sm:$0xf]
      %v242 = vld [vmem:[%s1 + $0x64] sm:$0xf]
      %v243 = vld [vmem:[%s1 + $0x68] sm:$0xf]
      %v244 = vld [vmem:[%s1 + $0x6c] sm:$0xf]
      %v245 = vld [vmem:[%s1 + $0x70] sm:$0xf]
      %v246 = vld [vmem:[%s1 + $0x74] sm:$0xf]
      %v247 = vld [vmem:[%s1 + $0x78] sm:$0xf]
      %v248 = vld [vmem:[%s1 + $0x7c] sm:$0xf]
      %v249 = vld [vmem:[%s1 + $0x80] sm:$0xf]
      %v250 = vld [vmem:[%s1 + $0x84] sm:$0xf]
      %v251 = vld [vmem:[%s1 + $0x88] sm:$0xf]
      %v252 = vld [vmem:[%s1 + $0x8c] sm:$0xf]
      %v253 = vld [vmem:[%s1 + $0x90] sm:$0xf]
      %v254 = vld [vmem:[%s1 + $0x94] sm:$0xf]
      %v255 = vld [vmem:[%s1 + $0x98] sm:$0xf]
      %v256 = vld [vmem:[%s1 + $0x9c] sm:$0xf]
      %v257 = vld [vmem:[%s1 + $0xa0] sm:$0xf]
      %v258 = vld [vmem:[%s1 + $0xa4] sm:$0xf]
      %v259 = vld [vmem:[%s1 + $0xa8] sm:$0xf]
      %v260 = vld [vmem:[%s1 + $0xac] sm:$0xf]
      %v261 = vld [vmem:[%s1 + $0xb0] sm:$0xf]
      %v262 = vld [vmem:[%s1 + $0xb4] sm:$0xf]
      %v263 = vld [vmem:[%s1 + $0xb8] sm:$0xf]
      %v264 = vld [vmem:[%s1 + $0xbc] sm:$0xf]
      %v265 = vld [vmem:[%s1 + $0xc0] sm:$0xf]
      %v266 = vld [vmem:[%s1 + $0xc4] sm:$0xf]
      %v267 = vld [vmem:[%s1 + $0xc8] sm:$0xf]
      %v268 = vld [vmem:[%s1 + $0xcc] sm:$0xf]
      %v269 = vld [vmem:[%s1 + $0xd0] sm:$0xf]
      %v270 = vld [vmem:[%s1 + $0xd4] sm:$0xf]
      %v271 = vld [vmem:[%s1 + $0xd8] sm:$0xf]
      %v272 = vld [vmem:[%s1 + $0xdc] sm:$0xf]
      %v273 = vld [vmem:[%s1 + $0xe0] sm:$0xf]
      %v274 = vld [vmem:[%s1 + $0xe4] sm:$0xf]
      %v275 = vld [vmem:[%s1 + $0xe8] sm:$0xf]
      %v276 = vld [vmem:[%s1 + $0xec] sm:$0xf]
      %v277 = vld [vmem:[%s1 + $0xf0] sm:$0xf]
      %v278 = vld [vmem:[%s1 + $0xf4] sm:$0xf]
      %v279 = vld [vmem:[%s1 + $0xf8] sm:$0xf]
      %v280 = vld [vmem:[%s1 + $0xfc] sm:$0xf]
      %v281 = vld [vmem:[%s1 + $0x100] sm:$0xf]
      %v282 = vld [vmem:[%s1 + $0x104] sm:$0xf]
      %v283 = vld [vmem:[%s1 + $0x108] sm:$0xf]
      %v284 = vld [vmem:[%s1 + $0x10c] sm:$0xf]
      %v285 = vld [vmem:[%s1 + $0x110] sm:$0xf]
      %v286 = vld [vmem:[%s1 + $0x114] sm:$0xf]
      %v287 = vld [vmem:[%s1 + $0x118] sm:$0xf]
      %v288 = vld [vmem:[%s1 + $0x11c] sm:$0xf]
      %v289 = vld [vmem:[%s1 + $0x120] sm:$0xf]
      %v290 = vld [vmem:[%s1 + $0x124] sm:$0xf]
      %v291 = vld [vmem:[%s1 + $0x128] sm:$0xf]
      %v292 = vld [vmem:[%s1 + $0x12c] sm:$0xf]
      %v293 = vld [vmem:[%s1 + $0x130] sm:$0xf]
      %v294 = vld [vmem:[%s1 + $0x134] sm:$0xf]
      %v295 = vld [vmem:[%s1 + $0x138] sm:$0xf]
      %v296 = vld [vmem:[%s1 + $0x13c] sm:$0xf]
      %v297 = vld [vmem:[%s1 + $0x140] sm:$0xf]
      %v298 = vld [vmem:[%s1 + $0x144] sm:$0xf]
      %v299 = vld [vmem:[%s1 + $0x148] sm:$0xf]
      %v300 = vld [vmem:[%s1 + $0x14c] sm:$0xf]
      %v301 = vld [vmem:[%s1 + $0x150] sm:$0xf]
      %v302 = vld [vmem:[%s1 + $0x154] sm:$0xf]
      %v303 = vld [vmem:[%s1 + $0x158] sm:$0xf]
      %v304 = vld [vmem:[%s1 + $0x15c] sm:$0xf]
      %v305 = vld [vmem:[%s1 + $0x160] sm:$0xf]
      %v306 = vld [vmem:[%s1 + $0x164] sm:$0xf]
      %v307 = vld [vmem:[%s1 + $0x168] sm:$0xf]
      %v308 = vld [vmem:[%s1 + $0x16c] sm:$0xf]
      %v309 = vld [vmem:[%s1 + $0x170] sm:$0xf]
      %v310 = vld [vmem:[%s1 + $0x174] sm:$0xf]
      %v311 = vld [vmem:[%s1 + $0x178] sm:$0xf]
      %v312 = vld [vmem:[%s1 + $0x17c] sm:$0xf]
      %v313 = vld [vmem:[%s1 + $0x180] sm:$0xf]
      %v314 = vld [vmem:[%s1 + $0x184] sm:$0xf]
      %v315 = vld [vmem:[%s1 + $0x188] sm:$0xf]
      %v316 = vld [vmem:[%s1 + $0x18c] sm:$0xf]
      %v317 = vld [vmem:[%s1 + $0x190] sm:$0xf]
      %v318 = vld [vmem:[%s1 + $0x194] sm:$0xf]
      %v319 = vld [vmem:[%s1 + $0x198] sm:$0xf]
      %v320 = vld [vmem:[%s1 + $0x19c] sm:$0xf]
      %v321 = vld [vmem:[%s1 + $0x1a0] sm:$0xf]
      %v322 = vld [vmem:[%s1 + $0x1a4] sm:$0xf]
      %v323 = vld [vmem:[%s1 + $0x1a8] sm:$0xf]
      %v324 = vld [vmem:[%s1 + $0x1ac] sm:$0xf]
      %v325 = vld [vmem:[%s1 + $0x1b0] sm:$0xf]
      %v326 = vld [vmem:[%s1 + $0x1b4] sm:$0xf]
      %v327 = vld [vmem:[%s1 + $0x1b8] sm:$0xf]
      %v328 = vld [vmem:[%s1 + $0x1bc] sm:$0xf]
      %v329 = vld [vmem:[%s1 + $0x1c0] sm:$0xf]
      %v330 = vld [vmem:[%s1 + $0x1c4] sm:$0xf]
      %v331 = vld [vmem:[%s1 + $0x1c8] sm:$0xf]
      %v332 = vld [vmem:[%s1 + $0x1cc] sm:$0xf]
      %v333 = vld [vmem:[%s1 + $0x1d0] sm:$0xf]
      %v334 = vld [vmem:[%s1 + $0x1d4] sm:$0xf]
      %v335 = vld [vmem:[%s1 + $0x1d8] sm:$0xf]
      %v336 = vld [vmem:[%s1 + $0x1dc] sm:$0xf]
      %v337 = vld [vmem:[%s1 + $0x1e0] sm:$0xf]
      %v338 = vld [vmem:[%s1 + $0x1e4] sm:$0xf]
      %v339 = vld [vmem:[%s1 + $0x1e8] sm:$0xf]
      %v340 = vld [vmem:[%s1 + $0x1ec] sm:$0xf]
      %v341 = vld [vmem:[%s1 + $0x1f0] sm:$0xf]
      %v342 = vld [vmem:[%s1 + $0x1f4] sm:$0xf]
      %v343 = vld [vmem:[%s1 + $0x1f8] sm:$0xf]
      %v344 = vld [vmem:[%s1 + $0x1fc] sm:$0xf]
      %v345 = vld [vmem:[%s1 + $0x200] sm:$0xf]
      %v346 = vld [vmem:[%s1 + $0x204] sm:$0xf]
      %v347 = vld [vmem:[%s1 + $0x208] sm:$0xf]
      %v348 = vld [vmem:[%s1 + $0x20c] sm:$0xf]
      %v349 = vld [vmem:[%s1 + $0x210] sm:$0xf]
      %v350 = vld [vmem:[%s1 + $0x214] sm:$0xf]
      %v351 = vld [vmem:[%s1 + $0x218] sm:$0xf]
      %v352 = vld [vmem:[%s1 + $0x21c] sm:$0xf]
      %v353 = vld [vmem:[%s1 + $0x220] sm:$0xf]
      %v354 = vld [vmem:[%s1 + $0x224] sm:$0xf]
      %v355 = vld [vmem:[%s1 + $0x228] sm:$0xf]
      %v356 = vld [vmem:[%s1 + $0x22c] sm:$0xf]
      %v357 = vld [vmem:[%s1 + $0x230] sm:$0xf]
      %v358 = vld [vmem:[%s1 + $0x234] sm:$0xf]
      %v359 = vld [vmem:[%s1 + $0x238] sm:$0xf]
      %v360 = vld [vmem:[%s1 + $0x23c] sm:$0xf]
      %v361 = vld [vmem:[%s2] sm:$0x1]
      %v363 = vperm.slane %v361, 0
      %v405 = vunpack.c.l.b16 %v177
      %v406 = vunpack.c.h.b16 %v177
      %v407 = vunpack.c.l.b16 %v178
      %v408 = vunpack.c.h.b16 %v178
      %v409 = vunpack.c.l.b16 %v179
      %v410 = vunpack.c.h.b16 %v179
      %v411 = vunpack.c.l.b16 %v180
      %v412 = vunpack.c.h.b16 %v180
      %v413 = vunpack.c.l.b16 %v181
      %v414 = vunpack.c.l.b16 %v182
      %v415 = vunpack.c.h.b16 %v182
      %v416 = vunpack.c.l.b16 %v183
      %v417 = vunpack.c.h.b16 %v183
      %v418 = vunpack.c.l.b16 %v184
      %v419 = vunpack.c.h.b16 %v184
      %v420 = vunpack.c.l.b16 %v185
      %v421 = vunpack.c.h.b16 %v185
      %v422 = vunpack.c.l.b16 %v186
      %v423 = vunpack.c.l.b16 %v187
      %v424 = vunpack.c.h.b16 %v187
      %v425 = vunpack.c.l.b16 %v188
      %v426 = vunpack.c.h.b16 %v188
      %v427 = vunpack.c.l.b16 %v189
      %v428 = vunpack.c.h.b16 %v189
      %v429 = vunpack.c.l.b16 %v190
      %v430 = vunpack.c.h.b16 %v190
      %v431 = vunpack.c.l.b16 %v191
      %v432 = vunpack.c.l.b16 %v192
      %v433 = vunpack.c.h.b16 %v192
      %v434 = vunpack.c.l.b16 %v193
      %v435 = vunpack.c.h.b16 %v193
      %v436 = vunpack.c.l.b16 %v194
      %v437 = vunpack.c.h.b16 %v194
      %v438 = vunpack.c.l.b16 %v195
      %v439 = vunpack.c.h.b16 %v195
      %v440 = vunpack.c.l.b16 %v196
      %v441 = vunpack.c.l.b16 %v197
      %v442 = vunpack.c.h.b16 %v197
      %v443 = vunpack.c.l.b16 %v198
      %v444 = vunpack.c.h.b16 %v198
      %v445 = vunpack.c.l.b16 %v199
      %v446 = vunpack.c.h.b16 %v199
      %v447 = vunpack.c.l.b16 %v200
      %v448 = vunpack.c.h.b16 %v200
      %v449 = vunpack.c.l.b16 %v201
      %v450 = vunpack.c.l.b16 %v202
      %v451 = vunpack.c.h.b16 %v202
      %v452 = vunpack.c.l.b16 %v203
      %v453 = vunpack.c.h.b16 %v203
      %v454 = vunpack.c.l.b16 %v204
      %v455 = vunpack.c.h.b16 %v204
      %v456 = vunpack.c.l.b16 %v205
      %v457 = vunpack.c.h.b16 %v205
      %v458 = vunpack.c.l.b16 %v206
      %v459 = vunpack.c.l.b16 %v207
      %v460 = vunpack.c.h.b16 %v207
      %v461 = vunpack.c.l.b16 %v208
      %v462 = vunpack.c.h.b16 %v208
      %v463 = vunpack.c.l.b16 %v209
      %v464 = vunpack.c.h.b16 %v209
      %v465 = vunpack.c.l.b16 %v210
      %v466 = vunpack.c.h.b16 %v210
      %v467 = vunpack.c.l.b16 %v211
      %v468 = vunpack.c.l.b16 %v212
      %v469 = vunpack.c.h.b16 %v212
      %v470 = vunpack.c.l.b16 %v213
      %v471 = vunpack.c.h.b16 %v213
      %v472 = vunpack.c.l.b16 %v214
      %v473 = vunpack.c.h.b16 %v214
      %v474 = vunpack.c.l.b16 %v215
      %v475 = vunpack.c.h.b16 %v215
      %v476 = vunpack.c.l.b16 %v216
      %v477 = vpack.c.b16 %v414, %v405
      %v478 = vpack.c.b16 %v415, %v406
      %v479 = vpack.c.b16 %v416, %v407
      %v480 = vpack.c.b16 %v417, %v408
      %v481 = vpack.c.b16 %v418, %v409
      %v482 = vpack.c.b16 %v419, %v410
      %v483 = vpack.c.b16 %v420, %v411
      %v484 = vpack.c.b16 %v421, %v412
      %v485 = vpack.c.b16 %v422, %v413
      %v486 = vpack.c.b16 %v432, %v423
      %v487 = vpack.c.b16 %v433, %v424
      %v488 = vpack.c.b16 %v434, %v425
      %v489 = vpack.c.b16 %v435, %v426
      %v490 = vpack.c.b16 %v436, %v427
      %v491 = vpack.c.b16 %v437, %v428
      %v492 = vpack.c.b16 %v438, %v429
      %v493 = vpack.c.b16 %v439, %v430
      %v494 = vpack.c.b16 %v440, %v431
      %v495 = vpack.c.b16 %v450, %v441
      %v496 = vpack.c.b16 %v451, %v442
      %v497 = vpack.c.b16 %v452, %v443
      %v498 = vpack.c.b16 %v453, %v444
      %v499 = vpack.c.b16 %v454, %v445
      %v500 = vpack.c.b16 %v455, %v446
      %v501 = vpack.c.b16 %v456, %v447
      %v502 = vpack.c.b16 %v457, %v448
      %v503 = vpack.c.b16 %v458, %v449
      %v504 = vpack.c.b16 %v468, %v459
      %v505 = vpack.c.b16 %v469, %v460
      %v506 = vpack.c.b16 %v470, %v461
      %v507 = vpack.c.b16 %v471, %v462
      %v508 = vpack.c.b16 %v472, %v463
      %v509 = vpack.c.b16 %v473, %v464
      %v510 = vpack.c.b16 %v474, %v465
      %v511 = vpack.c.b16 %v475, %v466
      %v512 = vpack.c.b16 %v476, %v467
      %v693 = vunpack.c.l.b16 %v217
      %v694 = vunpack.c.l.b16 %v218
      %v695 = vunpack.c.l.b16 %v219
      %v696 = vunpack.c.l.b16 %v220
      %v697 = vunpack.c.l.b16 %v221
      %v698 = vunpack.c.l.b16 %v222
      %v699 = vunpack.c.l.b16 %v223
      %v700 = vunpack.c.l.b16 %v224
      %v701 = vunpack.c.l.b16 %v225
      %v702 = vunpack.c.l.b16 %v226
      %v703 = vunpack.c.l.b16 %v227
      %v704 = vunpack.c.l.b16 %v228
      %v705 = vunpack.c.l.b16 %v229
      %v706 = vunpack.c.l.b16 %v230
      %v707 = vunpack.c.l.b16 %v231
      %v708 = vunpack.c.l.b16 %v232
      %v709 = vunpack.c.l.b16 %v233
      %v710 = vunpack.c.l.b16 %v234
      %v711 = vunpack.c.l.b16 %v235
      %v712 = vunpack.c.l.b16 %v236
      %v713 = vunpack.c.l.b16 %v237
      %v714 = vunpack.c.l.b16 %v238
      %v715 = vunpack.c.l.b16 %v239
      %v716 = vunpack.c.l.b16 %v240
      %v717 = vunpack.c.l.b16 %v241
      %v718 = vunpack.c.l.b16 %v242
      %v719 = vunpack.c.l.b16 %v243
      %v720 = vunpack.c.l.b16 %v244
      %v721 = vunpack.c.l.b16 %v245
      %v722 = vunpack.c.l.b16 %v246
      %v723 = vunpack.c.l.b16 %v247
      %v724 = vunpack.c.l.b16 %v248
      %v725 = vunpack.c.l.b16 %v249
      %v726 = vunpack.c.l.b16 %v250
      %v727 = vunpack.c.l.b16 %v251
      %v728 = vunpack.c.l.b16 %v252
      %v729 = vunpack.c.l.b16 %v253
      %v730 = vunpack.c.l.b16 %v254
      %v731 = vunpack.c.l.b16 %v255
      %v732 = vunpack.c.l.b16 %v256
      %v733 = vunpack.c.l.b16 %v257
      %v734 = vunpack.c.l.b16 %v258
      %v735 = vunpack.c.l.b16 %v259
      %v736 = vunpack.c.l.b16 %v260
      %v737 = vunpack.c.l.b16 %v261
      %v738 = vunpack.c.l.b16 %v262
      %v739 = vunpack.c.l.b16 %v263
      %v740 = vunpack.c.l.b16 %v264
      %v741 = vunpack.c.l.b16 %v265
      %v742 = vunpack.c.l.b16 %v266
      %v743 = vunpack.c.l.b16 %v267
      %v744 = vunpack.c.l.b16 %v268
      %v745 = vunpack.c.l.b16 %v269
      %v746 = vunpack.c.l.b16 %v270
      %v747 = vunpack.c.l.b16 %v271
      %v748 = vunpack.c.l.b16 %v272
      %v749 = vunpack.c.l.b16 %v273
      %v750 = vunpack.c.l.b16 %v274
      %v751 = vunpack.c.l.b16 %v275
      %v752 = vunpack.c.l.b16 %v276
      %v753 = vunpack.c.l.b16 %v277
      %v754 = vunpack.c.l.b16 %v278
      %v755 = vunpack.c.l.b16 %v279
      %v756 = vunpack.c.l.b16 %v280
      %v757 = vunpack.c.l.b16 %v281
      %v758 = vunpack.c.l.b16 %v282
      %v759 = vunpack.c.l.b16 %v283
      %v760 = vunpack.c.l.b16 %v284
      %v761 = vunpack.c.l.b16 %v285
      %v762 = vunpack.c.l.b16 %v286
      %v763 = vunpack.c.l.b16 %v287
      %v764 = vunpack.c.l.b16 %v288
      %v765 = vunpack.c.l.b16 %v289
      %v766 = vunpack.c.l.b16 %v290
      %v767 = vunpack.c.l.b16 %v291
      %v768 = vunpack.c.l.b16 %v292
      %v769 = vunpack.c.l.b16 %v293
      %v770 = vunpack.c.l.b16 %v294
      %v771 = vunpack.c.l.b16 %v295
      %v772 = vunpack.c.l.b16 %v296
      %v773 = vunpack.c.l.b16 %v297
      %v774 = vunpack.c.l.b16 %v298
      %v775 = vunpack.c.l.b16 %v299
      %v776 = vunpack.c.l.b16 %v300
      %v777 = vunpack.c.l.b16 %v301
      %v778 = vunpack.c.l.b16 %v302
      %v779 = vunpack.c.l.b16 %v303
      %v780 = vunpack.c.l.b16 %v304
      %v781 = vunpack.c.l.b16 %v305
      %v782 = vunpack.c.l.b16 %v306
      %v783 = vunpack.c.l.b16 %v307
      %v784 = vunpack.c.l.b16 %v308
      %v785 = vunpack.c.l.b16 %v309
      %v786 = vunpack.c.l.b16 %v310
      %v787 = vunpack.c.l.b16 %v311
      %v788 = vunpack.c.l.b16 %v312
      %v789 = vunpack.c.l.b16 %v313
      %v790 = vunpack.c.l.b16 %v314
      %v791 = vunpack.c.l.b16 %v315
      %v792 = vunpack.c.l.b16 %v316
      %v793 = vunpack.c.l.b16 %v317
      %v794 = vunpack.c.l.b16 %v318
      %v795 = vunpack.c.l.b16 %v319
      %v796 = vunpack.c.l.b16 %v320
      %v797 = vunpack.c.l.b16 %v321
      %v798 = vunpack.c.l.b16 %v322
      %v799 = vunpack.c.l.b16 %v323
      %v800 = vunpack.c.l.b16 %v324
      %v801 = vunpack.c.l.b16 %v325
      %v802 = vunpack.c.l.b16 %v326
      %v803 = vunpack.c.l.b16 %v327
      %v804 = vunpack.c.l.b16 %v328
      %v805 = vunpack.c.l.b16 %v329
      %v806 = vunpack.c.l.b16 %v330
      %v807 = vunpack.c.l.b16 %v331
      %v808 = vunpack.c.l.b16 %v332
      %v809 = vunpack.c.l.b16 %v333
      %v810 = vunpack.c.l.b16 %v334
      %v811 = vunpack.c.l.b16 %v335
      %v812 = vunpack.c.l.b16 %v336
      %v813 = vunpack.c.l.b16 %v337
      %v814 = vunpack.c.l.b16 %v338
      %v815 = vunpack.c.l.b16 %v339
      %v816 = vunpack.c.l.b16 %v340
      %v817 = vunpack.c.l.b16 %v341
      %v818 = vunpack.c.l.b16 %v342
      %v819 = vunpack.c.l.b16 %v343
      %v820 = vunpack.c.l.b16 %v344
      %v821 = vunpack.c.l.b16 %v345
      %v822 = vunpack.c.l.b16 %v346
      %v823 = vunpack.c.l.b16 %v347
      %v824 = vunpack.c.l.b16 %v348
      %v825 = vunpack.c.l.b16 %v349
      %v826 = vunpack.c.l.b16 %v350
      %v827 = vunpack.c.l.b16 %v351
      %v828 = vunpack.c.l.b16 %v352
      %v829 = vunpack.c.l.b16 %v353
      %v830 = vunpack.c.l.b16 %v354
      %v831 = vunpack.c.l.b16 %v355
      %v832 = vunpack.c.l.b16 %v356
      %v833 = vunpack.c.l.b16 %v357
      %v834 = vunpack.c.l.b16 %v358
      %v835 = vunpack.c.l.b16 %v359
      %v836 = vunpack.c.l.b16 %v360
      %v837 = vpack.c.b16 %v694, %v693
      %v838 = vpack.c.b16 %v696, %v695
      %v839 = vpack.c.b16 %v698, %v697
      %v840 = vpack.c.b16 %v700, %v699
      %v841 = vpack.c.b16 %v702, %v701
      %v842 = vpack.c.b16 %v704, %v703
      %v843 = vpack.c.b16 %v706, %v705
      %v844 = vpack.c.b16 %v708, %v707
      %v845 = vpack.c.b16 %v710, %v709
      %v846 = vpack.c.b16 %v712, %v711
      %v847 = vpack.c.b16 %v714, %v713
      %v848 = vpack.c.b16 %v716, %v715
      %v849 = vpack.c.b16 %v718, %v717
      %v850 = vpack.c.b16 %v720, %v719
      %v851 = vpack.c.b16 %v722, %v721
      %v852 = vpack.c.b16 %v724, %v723
      %v853 = vpack.c.b16 %v726, %v725
      %v854 = vpack.c.b16 %v728, %v727
      %v855 = vpack.c.b16 %v730, %v729
      %v856 = vpack.c.b16 %v732, %v731
      %v857 = vpack.c.b16 %v734, %v733
      %v858 = vpack.c.b16 %v736, %v735
      %v859 = vpack.c.b16 %v738, %v737
      %v860 = vpack.c.b16 %v740, %v739
      %v861 = vpack.c.b16 %v742, %v741
      %v862 = vpack.c.b16 %v744, %v743
      %v863 = vpack.c.b16 %v746, %v745
      %v864 = vpack.c.b16 %v748, %v747
      %v865 = vpack.c.b16 %v750, %v749
      %v866 = vpack.c.b16 %v752, %v751
      %v867 = vpack.c.b16 %v754, %v753
      %v868 = vpack.c.b16 %v756, %v755
      %v869 = vpack.c.b16 %v758, %v757
      %v870 = vpack.c.b16 %v760, %v759
      %v871 = vpack.c.b16 %v762, %v761
      %v872 = vpack.c.b16 %v764, %v763
      %v873 = vpack.c.b16 %v766, %v765
      %v874 = vpack.c.b16 %v768, %v767
      %v875 = vpack.c.b16 %v770, %v769
      %v876 = vpack.c.b16 %v772, %v771
      %v877 = vpack.c.b16 %v774, %v773
      %v878 = vpack.c.b16 %v776, %v775
      %v879 = vpack.c.b16 %v778, %v777
      %v880 = vpack.c.b16 %v780, %v779
      %v881 = vpack.c.b16 %v782, %v781
      %v882 = vpack.c.b16 %v784, %v783
      %v883 = vpack.c.b16 %v786, %v785
      %v884 = vpack.c.b16 %v788, %v787
      %v885 = vpack.c.b16 %v790, %v789
      %v886 = vpack.c.b16 %v792, %v791
      %v887 = vpack.c.b16 %v794, %v793
      %v888 = vpack.c.b16 %v796, %v795
      %v889 = vpack.c.b16 %v798, %v797
      %v890 = vpack.c.b16 %v800, %v799
      %v891 = vpack.c.b16 %v802, %v801
      %v892 = vpack.c.b16 %v804, %v803
      %v893 = vpack.c.b16 %v806, %v805
      %v894 = vpack.c.b16 %v808, %v807
      %v895 = vpack.c.b16 %v810, %v809
      %v896 = vpack.c.b16 %v812, %v811
      %v897 = vpack.c.b16 %v814, %v813
      %v898 = vpack.c.b16 %v816, %v815
      %v899 = vpack.c.b16 %v818, %v817
      %v900 = vpack.c.b16 %v820, %v819
      %v901 = vpack.c.b16 %v822, %v821
      %v902 = vpack.c.b16 %v824, %v823
      %v903 = vpack.c.b16 %v826, %v825
      %v904 = vpack.c.b16 %v828, %v827
      %v905 = vpack.c.b16 %v830, %v829
      %v906 = vpack.c.b16 %v832, %v831
      %v907 = vpack.c.b16 %v834, %v833
      %v908 = vpack.c.b16 %v836, %v835
      %981 = vmatpush.bf16.msra.mxu0 %v844
      %982 = vmatpush.bf16.msra.mxu0 %v843
      %983 = vmatpush.bf16.msra.mxu0 %v842
      %984 = vmatpush.bf16.msra.mxu0 %v841
      %985 = vmatpush.bf16.msra.mxu0 %v840
      %986 = vmatpush.bf16.msra.mxu0 %v839
      %987 = vmatpush.bf16.msra.mxu0 %v838
      %988 = vmatpush.bf16.msra.mxu0 %v837
      %989 = vmatmul.bf16.gmra.mxu0 %v477
      %v990 = vpop.f32.mrf.mxu0
      %v991 = vadd.f32 %v363, %v990
      %v992 = vpop.f32.mrf.mxu0
      %v993 = vadd.f32 %v363, %v992
      %994 = vmatmul.bf16.gmra.mxu0 %v486
      %v995 = vpop.f32.mrf.mxu0
      %v996 = vadd.f32 %v363, %v995
      %v997 = vpop.f32.mrf.mxu0
      %v998 = vadd.f32 %v363, %v997
      %999 = vmatmul.bf16.gmra.mxu0 %v495
      %v1000 = vpop.f32.mrf.mxu0
      %v1001 = vadd.f32 %v363, %v1000
      %v1002 = vpop.f32.mrf.mxu0
      %v1003 = vadd.f32 %v363, %v1002
      %1004 = vmatmul.bf16.gmra.mxu0 %v504
      %v1005 = vpop.f32.mrf.mxu0
      %v1006 = vadd.f32 %v363, %v1005
      %v1007 = vpop.f32.mrf.mxu0
      %v1008 = vadd.f32 %v363, %v1007
      %1009 = vdwg.mxu0
      %1010 = vmatpush.bf16.msra.mxu0 %v852
      %1011 = vmatpush.bf16.msra.mxu0 %v851
      %1012 = vmatpush.bf16.msra.mxu0 %v850
      %1013 = vmatpush.bf16.msra.mxu0 %v849
      %1014 = vmatpush.bf16.msra.mxu0 %v848
      %1015 = vmatpush.bf16.msra.mxu0 %v847
      %1016 = vmatpush.bf16.msra.mxu0 %v846
      %1017 = vmatpush.bf16.msra.mxu0 %v845
      %1018 = vmatmul.bf16.gmra.mxu0 %v478
      %v1019 = vpop.f32.mrf.mxu0
      %v1020 = vadd.f32 %v991, %v1019
      %v1021 = vpop.f32.mrf.mxu0
      %v1022 = vadd.f32 %v993, %v1021
      %1023 = vmatmul.bf16.gmra.mxu0 %v487
      %v1024 = vpop.f32.mrf.mxu0
      %v1025 = vadd.f32 %v996, %v1024
      %v1026 = vpop.f32.mrf.mxu0
      %v1027 = vadd.f32 %v998, %v1026
      %1028 = vmatmul.bf16.gmra.mxu0 %v496
      %v1029 = vpop.f32.mrf.mxu0
      %v1030 = vadd.f32 %v1001, %v1029
      %v1031 = vpop.f32.mrf.mxu0
      %v1032 = vadd.f32 %v1003, %v1031
      %1033 = vmatmul.bf16.gmra.mxu0 %v505
      %v1034 = vpop.f32.mrf.mxu0
      %v1035 = vadd.f32 %v1006, %v1034
      %v1036 = vpop.f32.mrf.mxu0
      %v1037 = vadd.f32 %v1008, %v1036
      %1038 = vdwg.mxu0
      %1039 = vmatpush.bf16.msra.mxu0 %v860
      %1040 = vmatpush.bf16.msra.mxu0 %v859
      %1041 = vmatpush.bf16.msra.mxu0 %v858
      %1042 = vmatpush.bf16.msra.mxu0 %v857
      %1043 = vmatpush.bf16.msra.mxu0 %v856
      %1044 = vmatpush.bf16.msra.mxu0 %v855
      %1045 = vmatpush.bf16.msra.mxu0 %v854
      %1046 = vmatpush.bf16.msra.mxu0 %v853
      %1047 = vmatmul.bf16.gmra.mxu0 %v479
      %v1048 = vpop.f32.mrf.mxu0
      %v1049 = vadd.f32 %v1020, %v1048
      %v1050 = vpop.f32.mrf.mxu0
      %v1051 = vadd.f32 %v1022, %v1050
      %1052 = vmatmul.bf16.gmra.mxu0 %v488
      %v1053 = vpop.f32.mrf.mxu0
      %v1054 = vadd.f32 %v1025, %v1053
      %v1055 = vpop.f32.mrf.mxu0
      %v1056 = vadd.f32 %v1027, %v1055
      %1057 = vmatmul.bf16.gmra.mxu0 %v497
      %v1058 = vpop.f32.mrf.mxu0
      %v1059 = vadd.f32 %v1030, %v1058
      %v1060 = vpop.f32.mrf.mxu0
      %v1061 = vadd.f32 %v1032, %v1060
      %1062 = vmatmul.bf16.gmra.mxu0 %v506
      %v1063 = vpop.f32.mrf.mxu0
      %v1064 = vadd.f32 %v1035, %v1063
      %v1065 = vpop.f32.mrf.mxu0
      %v1066 = vadd.f32 %v1037, %v1065
      %1067 = vdwg.mxu0
      %1068 = vmatpush.bf16.msra.mxu0 %v868
      %1069 = vmatpush.bf16.msra.mxu0 %v867
      %1070 = vmatpush.bf16.msra.mxu0 %v866
      %1071 = vmatpush.bf16.msra.mxu0 %v865
      %1072 = vmatpush.bf16.msra.mxu0 %v864
      %1073 = vmatpush.bf16.msra.mxu0 %v863
      %1074 = vmatpush.bf16.msra.mxu0 %v862
      %1075 = vmatpush.bf16.msra.mxu0 %v861
      %1076 = vmatmul.bf16.gmra.mxu0 %v480
      %v1077 = vpop.f32.mrf.mxu0
      %v1078 = vadd.f32 %v1049, %v1077
      %v1079 = vpop.f32.mrf.mxu0
      %v1080 = vadd.f32 %v1051, %v1079
      %1081 = vmatmul.bf16.gmra.mxu0 %v489
      %v1082 = vpop.f32.mrf.mxu0
      %v1083 = vadd.f32 %v1054, %v1082
      %v1084 = vpop.f32.mrf.mxu0
      %v1085 = vadd.f32 %v1056, %v1084
      %1086 = vmatmul.bf16.gmra.mxu0 %v498
      %v1087 = vpop.f32.mrf.mxu0
      %v1088 = vadd.f32 %v1059, %v1087
      %v1089 = vpop.f32.mrf.mxu0
      %v1090 = vadd.f32 %v1061, %v1089
      %1091 = vmatmul.bf16.gmra.mxu0 %v507
      %v1092 = vpop.f32.mrf.mxu0
      %v1093 = vadd.f32 %v1064, %v1092
      %v1094 = vpop.f32.mrf.mxu0
      %v1095 = vadd.f32 %v1066, %v1094
      %1096 = vdwg.mxu0
      %1097 = vmatpush.bf16.msra.mxu0 %v876
      %1098 = vmatpush.bf16.msra.mxu0 %v875
      %1099 = vmatpush.bf16.msra.mxu0 %v874
      %1100 = vmatpush.bf16.msra.mxu0 %v873
      %1101 = vmatpush.bf16.msra.mxu0 %v872
      %1102 = vmatpush.bf16.msra.mxu0 %v871
      %1103 = vmatpush.bf16.msra.mxu0 %v870
      %1104 = vmatpush.bf16.msra.mxu0 %v869
      %1105 = vmatmul.bf16.gmra.mxu0 %v481
      %v1106 = vpop.f32.mrf.mxu0
      %v1107 = vadd.f32 %v1078, %v1106
      %v1108 = vpop.f32.mrf.mxu0
      %v1109 = vadd.f32 %v1080, %v1108
      %1110 = vmatmul.bf16.gmra.mxu0 %v490
      %v1111 = vpop.f32.mrf.mxu0
      %v1112 = vadd.f32 %v1083, %v1111
      %v1113 = vpop.f32.mrf.mxu0
      %v1114 = vadd.f32 %v1085, %v1113
      %1115 = vmatmul.bf16.gmra.mxu0 %v499
      %v1116 = vpop.f32.mrf.mxu0
      %v1117 = vadd.f32 %v1088, %v1116
      %v1118 = vpop.f32.mrf.mxu0
      %v1119 = vadd.f32 %v1090, %v1118
      %1120 = vmatmul.bf16.gmra.mxu0 %v508
      %v1121 = vpop.f32.mrf.mxu0
      %v1122 = vadd.f32 %v1093, %v1121
      %v1123 = vpop.f32.mrf.mxu0
      %v1124 = vadd.f32 %v1095, %v1123
      %1125 = vdwg.mxu0
      %1126 = vmatpush.bf16.msra.mxu0 %v884
      %1127 = vmatpush.bf16.msra.mxu0 %v883
      %1128 = vmatpush.bf16.msra.mxu0 %v882
      %1129 = vmatpush.bf16.msra.mxu0 %v881
      %1130 = vmatpush.bf16.msra.mxu0 %v880
      %1131 = vmatpush.bf16.msra.mxu0 %v879
      %1132 = vmatpush.bf16.msra.mxu0 %v878
      %1133 = vmatpush.bf16.msra.mxu0 %v877
      %1134 = vmatmul.bf16.gmra.mxu0 %v482
      %v1135 = vpop.f32.mrf.mxu0
      %v1136 = vadd.f32 %v1107, %v1135
      %v1137 = vpop.f32.mrf.mxu0
      %v1138 = vadd.f32 %v1109, %v1137
      %1139 = vmatmul.bf16.gmra.mxu0 %v491
      %v1140 = vpop.f32.mrf.mxu0
      %v1141 = vadd.f32 %v1112, %v1140
      %v1142 = vpop.f32.mrf.mxu0
      %v1143 = vadd.f32 %v1114, %v1142
      %1144 = vmatmul.bf16.gmra.mxu0 %v500
      %v1145 = vpop.f32.mrf.mxu0
      %v1146 = vadd.f32 %v1117, %v1145
      %v1147 = vpop.f32.mrf.mxu0
      %v1148 = vadd.f32 %v1119, %v1147
      %1149 = vmatmul.bf16.gmra.mxu0 %v509
      %v1150 = vpop.f32.mrf.mxu0
      %v1151 = vadd.f32 %v1122, %v1150
      %v1152 = vpop.f32.mrf.mxu0
      %v1153 = vadd.f32 %v1124, %v1152
      %1154 = vdwg.mxu0
      %1155 = vmatpush.bf16.msra.mxu0 %v892
      %1156 = vmatpush.bf16.msra.mxu0 %v891
      %1157 = vmatpush.bf16.msra.mxu0 %v890
      %1158 = vmatpush.bf16.msra.mxu0 %v889
      %1159 = vmatpush.bf16.msra.mxu0 %v888
      %1160 = vmatpush.bf16.msra.mxu0 %v887
      %1161 = vmatpush.bf16.msra.mxu0 %v886
      %1162 = vmatpush.bf16.msra.mxu0 %v885
      %1163 = vmatmul.bf16.gmra.mxu0 %v483
      %v1164 = vpop.f32.mrf.mxu0
      %v1165 = vadd.f32 %v1136, %v1164
      %v1166 = vpop.f32.mrf.mxu0
      %v1167 = vadd.f32 %v1138, %v1166
      %1168 = vmatmul.bf16.gmra.mxu0 %v492
      %v1169 = vpop.f32.mrf.mxu0
      %v1170 = vadd.f32 %v1141, %v1169
      %v1171 = vpop.f32.mrf.mxu0
      %v1172 = vadd.f32 %v1143, %v1171
      %1173 = vmatmul.bf16.gmra.mxu0 %v501
      %v1174 = vpop.f32.mrf.mxu0
      %v1175 = vadd.f32 %v1146, %v1174
      %v1176 = vpop.f32.mrf.mxu0
      %v1177 = vadd.f32 %v1148, %v1176
      %1178 = vmatmul.bf16.gmra.mxu0 %v510
      %v1179 = vpop.f32.mrf.mxu0
      %v1180 = vadd.f32 %v1151, %v1179
      %v1181 = vpop.f32.mrf.mxu0
      %v1182 = vadd.f32 %v1153, %v1181
      %1183 = vdwg.mxu0
      %1184 = vmatpush.bf16.msra.mxu0 %v900
      %1185 = vmatpush.bf16.msra.mxu0 %v899
      %1186 = vmatpush.bf16.msra.mxu0 %v898
      %1187 = vmatpush.bf16.msra.mxu0 %v897
      %1188 = vmatpush.bf16.msra.mxu0 %v896
      %1189 = vmatpush.bf16.msra.mxu0 %v895
      %1190 = vmatpush.bf16.msra.mxu0 %v894
      %1191 = vmatpush.bf16.msra.mxu0 %v893
      %1192 = vmatmul.bf16.gmra.mxu0 %v484
      %v1193 = vpop.f32.mrf.mxu0
      %v1194 = vadd.f32 %v1165, %v1193
      %v1195 = vpop.f32.mrf.mxu0
      %v1196 = vadd.f32 %v1167, %v1195
      %1197 = vmatmul.bf16.gmra.mxu0 %v493
      %v1198 = vpop.f32.mrf.mxu0
      %v1199 = vadd.f32 %v1170, %v1198
      %v1200 = vpop.f32.mrf.mxu0
      %v1201 = vadd.f32 %v1172, %v1200
      %1202 = vmatmul.bf16.gmra.mxu0 %v502
      %v1203 = vpop.f32.mrf.mxu0
      %v1204 = vadd.f32 %v1175, %v1203
      %v1205 = vpop.f32.mrf.mxu0
      %v1206 = vadd.f32 %v1177, %v1205
      %1207 = vmatmul.bf16.gmra.mxu0 %v511
      %v1208 = vpop.f32.mrf.mxu0
      %v1209 = vadd.f32 %v1180, %v1208
      %v1210 = vpop.f32.mrf.mxu0
      %v1211 = vadd.f32 %v1182, %v1210
      %1212 = vdwg.mxu0
      %1213 = vmatpush.bf16.msra.mxu0 %v908
      %1214 = vmatpush.bf16.msra.mxu0 %v907
      %1215 = vmatpush.bf16.msra.mxu0 %v906
      %1216 = vmatpush.bf16.msra.mxu0 %v905
      %1217 = vmatpush.bf16.msra.mxu0 %v904
      %1218 = vmatpush.bf16.msra.mxu0 %v903
      %1219 = vmatpush.bf16.msra.mxu0 %v902
      %1220 = vmatpush.bf16.msra.mxu0 %v901
      %1221 = vmatmul.bf16.gmra.mxu0 %v485
      %v1222 = vpop.f32.mrf.mxu0
      %v1223 = vadd.f32 %v1194, %v1222
      %v1224 = vpop.f32.mrf.mxu0
      %v1225 = vadd.f32 %v1196, %v1224
      %1226 = vmatmul.bf16.gmra.mxu0 %v494
      %v1227 = vpop.f32.mrf.mxu0
      %v1228 = vadd.f32 %v1199, %v1227
      %v1229 = vpop.f32.mrf.mxu0
      %v1230 = vadd.f32 %v1201, %v1229
      %1231 = vmatmul.bf16.gmra.mxu0 %v503
      %v1232 = vpop.f32.mrf.mxu0
      %v1233 = vadd.f32 %v1204, %v1232
      %v1234 = vpop.f32.mrf.mxu0
      %v1235 = vadd.f32 %v1206, %v1234
      %1236 = vmatmul.bf16.gmra.mxu0 %v512
      %v1237 = vpop.f32.mrf.mxu0
      %v1238 = vadd.f32 %v1209, %v1237
      %v1239 = vpop.f32.mrf.mxu0
      %v1240 = vadd.f32 %v1211, %v1239
      %1241 = vdwg.mxu0
      %v1242 = vmax.f32 %v1223, 0.0
      %v1243 = vmax.f32 %v1225, 0.0
      %v1244 = vmax.f32 %v1228, 0.0
      %v1245 = vmax.f32 %v1230, 0.0
      %v1246 = vmax.f32 %v1233, 0.0
      %v1247 = vmax.f32 %v1235, 0.0
      %v1248 = vmax.f32 %v1238, 0.0
      %v1249 = vmax.f32 %v1240, 0.0
      %v1250 = vpack.c.bf16 %v1242, %v1242
      %v1251 = vpack.c.bf16 %v1243, %v1243
      %v1252 = vpack.c.bf16 %v1244, %v1244
      %v1253 = vpack.c.bf16 %v1245, %v1245
      %v1254 = vpack.c.bf16 %v1246, %v1246
      %v1255 = vpack.c.bf16 %v1247, %v1247
      %v1256 = vpack.c.bf16 %v1248, %v1248
      %v1257 = vpack.c.bf16 %v1249, %v1249
      %1258 = vst [vmem:[%s175] sm:$0xf] %v1250
      %1259 = vst [vmem:[%s175 + $0x4] sm:$0xf] %v1251
      %1260 = vst [vmem:[%s175 + $0x8] sm:$0xf] %v1252
      %1261 = vst [vmem:[%s175 + $0xc] sm:$0xf] %v1253
      %1262 = vst [vmem:[%s175 + $0x10] sm:$0xf] %v1254
      %1263 = vst [vmem:[%s175 + $0x14] sm:$0xf] %v1255
      %1264 = vst [vmem:[%s175 + $0x18] sm:$0xf] %v1256
      %1265 = vst [vmem:[%s175 + $0x1c] sm:$0xf] %v1257
      %s1266 = smul.u32 8, %s14
      %p1267 = scmp.lt.s32.totalorder %s1266, 15
      %s1268 = scalar_select %p1267, %s1266, 15
      %s1269 = smul.addr %s1268, 4
      %s1270 = scalar_lea.vmem %s3, %s1269
      // Predicated region
      $region33: #{cropped_vgg19.7} parent=31 // pred_check
        %p1271 = pneg %p100
      $region34: #{cropped_vgg19.7} parent=31 // pred_check_branch
        %1273 = sbr.rel (%p1271) target = $region36
      $region35: #{cropped_vgg19.7} parent=31 // pred_region
        %s1274 = smul.u32 8, %s14
      $region36: #{cropped_vgg19.7} parent=31 // pred_fallthru
        _
    $region32: #{cropped_vgg19.7} parent=5 // pred_fallthru
      _
    %p1275 = scmp.le.s32.totalorder 2, %s9
    // Predicated region
    $region37: #{cropped_vgg19.7} parent=5 // pred_check
      %p1276 = pneg %p1275
    $region38: #{cropped_vgg19.7} parent=5 // pred_check_branch
      %1278 = sbr.rel (%p1276) target = $region40
    $region39: #{cropped_vgg19.7} parent=5 // pred_region
      %s1279 = ssub.s32 %s9, 2
      // Predicated region
      $region41: #{cropped_vgg19.7} parent=39 // pred_check
        %p1280 = pneg %p106
      $region42: #{cropped_vgg19.7} parent=39 // pred_check_branch
        %1282 = sbr.rel (%p1280) target = $region44
      $region43: #{cropped_vgg19.7} parent=39 // pred_region
        %s1283 = smul.u32 8, %s15
        %p1284 = scmp.lt.s32.totalorder %s1283, 15
        %s1285 = scalar_select %p1284, %s1283, 15
        %s1286 = smul.addr %s1285, 4
        %s1287 = scalar_lea.vmem %s3, %s1286
      $region44: #{cropped_vgg19.7} parent=39 // pred_fallthru
        _
    $region40: #{cropped_vgg19.7} parent=5 // pred_fallthru
      _
  $region6: #{cropped_vgg19.7} parent=0 // loop_footer
    %s13 = sadd.s32 1, %s9
  $region7: #{cropped_vgg19.7} parent=0 // loop_footer_branch
    %8 = sbr.rel target = $region3
  $region8: #{cropped_vgg19.7} parent=0 // loop_exit
    _

</llo_original>
